<compile_context>
chip_gen: v5e
topology: v5e:2x2
jax: 0.10.0
libtpu: 0.0.40
codegen_flags: <defaults>
</compile_context>

<pallas_src>
import functools
import math

import numpy as np

import jax
import jax.numpy as jnp
from jax import lax
from jax.experimental import pallas as pl
from jax.experimental.pallas import tpu as pltpu

INPUT_DIM = 6
FEAT_PAD = 8              # input feature dim zero-padded to 8 (sublane aligned)
HIDDEN_DIM = 32           # hidden_dim (small synthetic size)
NUM_LAYERS = 2
NUM_HEADS = 4
HEAD_DIM = HIDDEN_DIM // NUM_HEADS
FF_DIM = HIDDEN_DIM * 2   # dim_feedforward = hidden_dim * 2
LN_EPS = 1e-5

# ----- packed parameter slab layout (all rows padded to MAT_COLS lanes) -----
MAT_COLS = 96                                  # max width (wqkv has 3H=96 cols)
EMBED_MAT_ROWS = 8                             # embed_w padded (6 -> 8 rows)
LAYER_MAT_ROWS = 3 * HIDDEN_DIM + FF_DIM       # wqkv(32)+wo(32)+w1(32)+w2(64)=160
MAT_TOTAL_ROWS = EMBED_MAT_ROWS + NUM_LAYERS * LAYER_MAT_ROWS          # 328

VEC_EMBED_ROWS = 3                             # embed_b, embed_ln_w, embed_ln_b
VEC_LAYER_ROWS = 8                             # bqkv, bo, ln1w, ln1b, b1, b2, ln2w, ln2b
FC_W_ROW = VEC_EMBED_ROWS + NUM_LAYERS * VEC_LAYER_ROWS                # 19
FC_B_ROW = FC_W_ROW + 1                                                # 20
VEC_TOTAL_ROWS = 24                            # 21 used, padded to multiple of 8


# ----------------------------- in-kernel helpers -----------------------------

def _layernorm(x, w, b, eps=LN_EPS):
    mu = jnp.mean(x, axis=-1, keepdims=True)
    var = jnp.mean((x - mu) ** 2, axis=-1, keepdims=True)
    return (x - mu) * lax.rsqrt(var + eps) * w + b


def _gelu_exact(x):
    # exact (erf-based) GELU, matching torch.nn.GELU() default
    return 0.5 * x * (1.0 + lax.erf(x * (1.0 / math.sqrt(2.0))))


# ------------------------------- fused Pallas kernel -------------------------------

def tfeita_fused_kernel(x_ref, bias_ref, dmat_ref, wm_ref, wv_ref, o_ref,
                        *, pairs, seq_len):
    """One grid step = `pairs` siamese pairs = pairs*2 sequences of length seq_len.

    x_ref   : (1, R, FEAT_PAD)          normalized, zero-padded inputs, R = pairs*2*seq_len
    bias_ref: (R, R)                    block-diagonal additive attention bias (0 / -1e30)
    dmat_ref: (pairs, R)                mean-pool/diff matrix: (D @ h)[p] = mean(seq1_p) - mean(seq2_p)
    wm_ref  : (MAT_TOTAL_ROWS, MAT_COLS) packed weight matrices
    wv_ref  : (VEC_TOTAL_ROWS, MAT_COLS) packed bias / LN / fc vectors (one per row)
    o_ref   : (1, pairs, 128)           lane-dense output slab (one scalar per pair, broadcast)
    """
    H = HIDDEN_DIM
    R = pairs * 2 * seq_len
    scale = 1.0 / math.sqrt(HEAD_DIM)

    x = x_ref[0].astype(jnp.float32)                                   # (R, 8)

    # --- embed: Linear(8->H) + LayerNorm + GELU (all sequences of the block at once) ---
    w_emb = wm_ref[0:EMBED_MAT_ROWS, 0:H]                              # (8, H)
    h = jnp.dot(x, w_emb, preferred_element_type=jnp.float32) + wv_ref[0:1, 0:H]
    h = _layernorm(h, wv_ref[1:2, 0:H], wv_ref[2:3, 0:H])
    h = _gelu_exact(h)                                                 # (R, H)

    attn_bias = bias_ref[...]                                          # (R, R)

    # --- 2x post-norm TransformerEncoderLayer ---
    for l in range(NUM_LAYERS):
        ml = EMBED_MAT_ROWS + l * LAYER_MAT_ROWS
        vl = VEC_EMBED_ROWS + l * VEC_LAYER_ROWS

        wqkv = wm_ref[ml:ml + H, 0:3 * H]                              # (H, 3H)
        w1 = wm_ref[ml + 2 * H:ml + 3 * H, 0:FF_DIM]                   # (H, FF)
        w2 = wm_ref[ml + 3 * H:ml + 3 * H + FF_DIM, 0:H]               # (FF, H)

        bqkv = wv_ref[vl + 0:vl + 1, 0:3 * H]
        bo = wv_ref[vl + 1:vl + 2, 0:H]
        ln1w = wv_ref[vl + 2:vl + 3, 0:H]
        ln1b = wv_ref[vl + 3:vl + 4, 0:H]
        b1 = wv_ref[vl + 4:vl + 5, 0:FF_DIM]
        b2 = wv_ref[vl + 5:vl + 6, 0:H]
        ln2w = wv_ref[vl + 6:vl + 7, 0:H]
        ln2b = wv_ref[vl + 7:vl + 8, 0:H]

        # multi-head self-attention (all sequences jointly, block-diag masked);
        # the output projection is fused per head: concat(heads) @ Wo == sum_n head_n @ Wo[n]
        qkv = jnp.dot(h, wqkv, preferred_element_type=jnp.float32) + bqkv   # (R, 3H)
        attn = jnp.zeros((R, H), jnp.float32)
        for n in range(NUM_HEADS):                                     # static unroll
            qh = qkv[:, n * HEAD_DIM:(n + 1) * HEAD_DIM]
            kh = qkv[:, H + n * HEAD_DIM:H + (n + 1) * HEAD_DIM]
            vh = qkv[:, 2 * H + n * HEAD_DIM:2 * H + (n + 1) * HEAD_DIM]
            s = lax.dot_general(qh, kh, (((1,), (1,)), ((), ())),      # q @ k^T
                                preferred_element_type=jnp.float32)
            s = s * scale + attn_bias                                  # (R, R)
            s = s - jnp.max(s, axis=-1, keepdims=True)
            p = jnp.exp(s)
            p = p * pl.reciprocal(jnp.sum(p, axis=-1, keepdims=True), approx=True)
            pv = jnp.dot(p, vh, preferred_element_type=jnp.float32)    # (R, HEAD_DIM)
            wo_n = wm_ref[ml + H + n * HEAD_DIM:ml + H + (n + 1) * HEAD_DIM, 0:H]
            attn = attn + jnp.dot(pv, wo_n, preferred_element_type=jnp.float32)
        attn = attn + bo
        h = _layernorm(h + attn, ln1w, ln1b)

        # feed-forward (ReLU, dropout = identity)
        ff = jnp.maximum(jnp.dot(h, w1, preferred_element_type=jnp.float32) + b1, 0.0)
        ff = jnp.dot(ff, w2, preferred_element_type=jnp.float32) + b2
        h = _layernorm(h + ff, ln2w, ln2b)

    # --- head: mean-pool both sequences + diff in one matmul, |.|, fc, sigmoid ---
    # (relu after abs is a no-op and is dropped)
    d = jnp.abs(jnp.dot(dmat_ref[...], h, preferred_element_type=jnp.float32))  # (pairs, H)
    fc_w = wv_ref[FC_W_ROW:FC_W_ROW + 1, 0:H]                          # (1, H)
    fc_b = wv_ref[FC_B_ROW:FC_B_ROW + 1, 0:1]                          # (1, 1)
    logit = jnp.sum(d * fc_w, axis=-1, keepdims=True) + fc_b           # (pairs, 1)
    sig = 1.0 / (1.0 + jnp.exp(-logit))
    o_ref[0] = jnp.broadcast_to(sig, (pairs, 128)).astype(o_ref.dtype)


# ------------------------------- pallas_call wrapper -------------------------------

def tfeita_fused_pallas(xs, w_mat, w_vec):
    """xs: (B, 2*S, FEAT_PAD) — pair b's x1 rows [0:S] and x2 rows [S:2S]."""
    B, S2, FP = xs.shape
    S = S2 // 2

    # Pack multiple pairs into one grid step (keep the joint row count <= 128
    # so attention score matrices stay one-tile wide).
    PB = max(1, min(B, 128 // S2)) if S2 > 0 else 1
    G = -(-B // PB)                       # ceil
    Bp = G * PB
    if Bp != B:                           # pad batch with zero pairs (discarded later)
        xs = jnp.pad(xs, ((0, Bp - B), (0, 0), (0, 0)))
    R = PB * S2
    xs_r = xs.reshape(G, R, FP)

    # Shape-only constants (trace-time numpy -> baked constants, DMA'd once).
    idx = np.arange(R)
    seq_id = idx // S                     # 0..2*PB-1: which sequence each row belongs to
    bias_np = np.where(seq_id[:, None] == seq_id[None, :], 0.0, -1e30).astype(np.float32)
    pair_id = idx // S2
    sign = np.where((seq_id % 2) == 0, 1.0 / S, -1.0 / S).astype(np.float32)
    dmat_np = np.zeros((PB, R), np.float32)
    dmat_np[pair_id, idx] = sign          # row p: +1/S over seq1_p, -1/S over seq2_p
    attn_bias = jnp.asarray(bias_np)
    dmat = jnp.asarray(dmat_np)

    kernel = functools.partial(tfeita_fused_kernel, pairs=PB, seq_len=S)
    out = pl.pallas_call(
        kernel,
        out_shape=jax.ShapeDtypeStruct((G, PB, 128), jnp.float32),
        grid=(G,),
        in_specs=[
            pl.BlockSpec((1, R, FP), lambda g: (g, 0, 0)),
            pl.BlockSpec(attn_bias.shape, lambda g: (0, 0)),  # DMA'd once (constant index)
            pl.BlockSpec(dmat.shape, lambda g: (0, 0)),
            pl.BlockSpec(w_mat.shape, lambda g: (0, 0)),
            pl.BlockSpec(w_vec.shape, lambda g: (0, 0)),
        ],
        out_specs=pl.BlockSpec((1, PB, 128), lambda g: (g, 0, 0)),
        compiler_params=pltpu.CompilerParams(dimension_semantics=("parallel",)),
    )(xs_r, attn_bias, dmat, w_mat, w_vec)
    return out.reshape(Bp, 128)[:B, 0:1]                               # (B, 1)


# ------------------------------- plain-JAX glue -------------------------------

def preprocess(x1, x2):
    # Replicates the reference torch code exactly, including its lat/lon swap:
    # mercator_project returns (R*lon_rad, R*log(tan(pi/4 + lat_rad/2))) which the
    # reference assigns back to (lat, lon). Kept in plain JAX (jnp.tan has no
    # guaranteed Mosaic lowering); builds the pair-stacked, zero-padded kernel input.
    R = 6378137.0

    def merc(lat_deg, lon_deg):
        lat_r = jnp.deg2rad(lat_deg)
        lon_r = jnp.deg2rad(lon_deg)
        return R * lon_r, R * jnp.log(jnp.tan(jnp.pi / 4 + lat_r / 2))

    lat1, lon1 = merc(x1[:, :, 0], x1[:, :, 1])
    lat2, lon2 = merc(x2[:, :, 0], x2[:, :, 1])
    max_lat = jnp.maximum(lat1.max(axis=1), lat2.max(axis=1))[:, None]
    min_lat = jnp.minimum(lat1.min(axis=1), lat2.min(axis=1))[:, None]
    max_lon = jnp.maximum(lon1.max(axis=1), lon2.max(axis=1))[:, None]
    min_lon = jnp.minimum(lon1.min(axis=1), lon2.min(axis=1))[:, None]
    eps = 1e-8
    inv_dlat = 1.0 / (max_lat - min_lat + eps)
    inv_dlon = 1.0 / (max_lon - min_lon + eps)

    def rebuild(x, lat, lon):
        B, S, F = x.shape
        return jnp.concatenate(
            [((lat - min_lat) * inv_dlat)[..., None],
             ((lon - min_lon) * inv_dlon)[..., None],
             x[:, :, 2:],
             jnp.zeros((B, S, FEAT_PAD - F), x.dtype)], axis=-1)

    x1n = rebuild(x1, lat1, lon1)
    x2n = rebuild(x2, lat2, lon2)
    return jnp.concatenate([x1n, x2n], axis=1).astype(jnp.float32)     # (B, 2S, 8)


def init_params(key):
    ks = iter(jax.random.split(key, 64))

    def w(shape, scale=0.05):
        return (scale * jax.random.normal(next(ks), shape)).astype(jnp.float32)

    def zeros(shape):
        return jnp.zeros(shape, jnp.float32)

    def ones(shape):
        return jnp.ones(shape, jnp.float32)

    params = {
        "embed_w": w((INPUT_DIM, HIDDEN_DIM)),
        "embed_b": zeros((1, HIDDEN_DIM)),
        "embed_ln_w": ones((1, HIDDEN_DIM)),
        "embed_ln_b": zeros((1, HIDDEN_DIM)),
        "fc_w": w((HIDDEN_DIM, 1)),
        "fc_b": zeros((1, 1)),
        "layers": [],
    }
    for _ in range(NUM_LAYERS):
        params["layers"].append({
            "wqkv": w((HIDDEN_DIM, 3 * HIDDEN_DIM)),   # in_proj (transposed layout)
            "bqkv": zeros((1, 3 * HIDDEN_DIM)),
            "wo": w((HIDDEN_DIM, HIDDEN_DIM)),
            "bo": zeros((1, HIDDEN_DIM)),
            "ln1_w": ones((1, HIDDEN_DIM)),
            "ln1_b": zeros((1, HIDDEN_DIM)),
            "w1": w((HIDDEN_DIM, FF_DIM)),
            "b1": zeros((1, FF_DIM)),
            "w2": w((FF_DIM, HIDDEN_DIM)),
            "b2": zeros((1, HIDDEN_DIM)),
            "ln2_w": ones((1, HIDDEN_DIM)),
            "ln2_b": zeros((1, HIDDEN_DIM)),
        })
    return params


def pack_params(params):
    """Pack all weights into two f32 slabs (done once, outside the jitted forward)."""
    def pad_cols(a):
        return jnp.pad(a, ((0, 0), (0, MAT_COLS - a.shape[1])))

    mats = [jnp.pad(params["embed_w"], ((0, EMBED_MAT_ROWS - INPUT_DIM), (0, 0)))]
    for lp in params["layers"]:
        mats += [lp["wqkv"], lp["wo"], lp["w1"], lp["w2"]]
    w_mat = jnp.concatenate([pad_cols(m) for m in mats], axis=0)
    assert w_mat.shape == (MAT_TOTAL_ROWS, MAT_COLS), w_mat.shape

    vecs = [params["embed_b"], params["embed_ln_w"], params["embed_ln_b"]]
    for lp in params["layers"]:
        vecs += [lp["bqkv"], lp["bo"], lp["ln1_w"], lp["ln1_b"],
                 lp["b1"], lp["b2"], lp["ln2_w"], lp["ln2_b"]]
    vecs += [params["fc_w"].T, params["fc_b"]]
    w_vec = jnp.concatenate([pad_cols(v) for v in vecs], axis=0)
    w_vec = jnp.pad(w_vec, ((0, VEC_TOTAL_ROWS - w_vec.shape[0]), (0, 0)))
    return w_mat.astype(jnp.float32), w_vec.astype(jnp.float32)


@jax.jit
def tfeita_forward(w_mat, w_vec, x1, x2, dtime):
    del dtime  # unused by the reference forward
    xs = preprocess(x1, x2)                        # (B, 2S, 8), pair-stacked
    return tfeita_fused_pallas(xs, w_mat, w_vec)   # (B, 1)


if __name__ == "__main__":
    key = jax.random.PRNGKey(0)
    B, S = 2, 8
    kp, k1a, k1b, k1c, k2a, k2b, k2c, kd = jax.random.split(key, 8)

    def make_traj(ka, kb, kc):
        lat = jax.random.uniform(ka, (B, S, 1), minval=-60.0, maxval=60.0)
        lon = jax.random.uniform(kb, (B, S, 1), minval=-170.0, maxval=170.0)
        rest = jax.random.normal(kc, (B, S, INPUT_DIM - 2))
        return jnp.concatenate([lat, lon, rest], axis=-1).astype(jnp.float32)

    x1 = make_traj(k1a, k1b, k1c)
    x2 = make_traj(k2a, k2b, k2c)
    dtime = jax.random.normal(kd, (B,), dtype=jnp.float32)

    params = init_params(kp)
    w_mat, w_vec = pack_params(params)

    out = tfeita_forward(w_mat, w_vec, x1, x2, dtime)
    out = jax.block_until_ready(out)

    assert out.shape == (B, 1), out.shape
    assert bool(jnp.all(jnp.isfinite(out)))
    print("KERNEL_OK")
</pallas_src>

<mosaic_0001>
module attributes {stable_mosaic.version = 11 : i64} {
  func.func @tfeita_fused_kernel(%arg0: i32, %arg1: memref<1x32x8xf32, #tpu.memory_space<vmem>>, %arg2: memref<32x32xf32, #tpu.memory_space<vmem>>, %arg3: memref<2x32xf32, #tpu.memory_space<vmem>>, %arg4: memref<328x96xf32, #tpu.memory_space<vmem>>, %arg5: memref<24x96xf32, #tpu.memory_space<vmem>>, %arg6: memref<1x2x128xf32, #tpu.memory_space<vmem>>) attributes {dimension_semantics = [#tpu.dimension_semantics<parallel>], iteration_bounds = array<i64: 1>, scalar_prefetch = 0 : i64, scratch_operands = 0 : i64, tpu.core_type = #tpu.core_type<tc>, window_params = [{transform_indices = @transform_0, window_bounds = array<i64: 1, 32, 8>}, {pipeline_mode = #tpu.pipeline_mode<synchronous>, transform_indices = @transform_1, window_bounds = array<i64: 32, 32>}, {pipeline_mode = #tpu.pipeline_mode<synchronous>, transform_indices = @transform_2, window_bounds = array<i64: 2, 32>}, {pipeline_mode = #tpu.pipeline_mode<synchronous>, transform_indices = @transform_3, window_bounds = array<i64: 328, 96>}, {pipeline_mode = #tpu.pipeline_mode<synchronous>, transform_indices = @transform_4, window_bounds = array<i64: 24, 96>}, {transform_indices = @transform_5, window_bounds = array<i64: 1, 2, 128>}]} {
    %c0 = arith.constant 0 : index
    %c0_0 = arith.constant 0 : index
    %c0_1 = arith.constant 0 : index
    %0 = vector.load %arg1[%c0, %c0_0, %c0_1] : memref<1x32x8xf32, #tpu.memory_space<vmem>>, vector<1x32x8xf32>
    %1 = vector.shape_cast %0 : vector<1x32x8xf32> to vector<32x8xf32>
    %c0_2 = arith.constant 0 : index
    %c0_3 = arith.constant 0 : index
    %2 = vector.load %arg4[%c0_2, %c0_3] : memref<328x96xf32, #tpu.memory_space<vmem>>, vector<8x32xf32>
    %cst = arith.constant dense<0.000000e+00> : vector<32x32xf32>
    %3 = tpu.matmul %1, %2, %cst {dimension_numbers = #tpu.dot_dimension_numbers<[1], [0], [0], [1], [0, 0, 1, 1], [], []>} : vector<32x8xf32>, vector<8x32xf32>, vector<32x32xf32> -> vector<32x32xf32>
    %c0_4 = arith.constant 0 : index
    %c0_5 = arith.constant 0 : index
    %4 = vector.load %arg5[%c0_4, %c0_5] : memref<24x96xf32, #tpu.memory_space<vmem>>, vector<1x32xf32>
    %5 = vector.broadcast %4 : vector<1x32xf32> to vector<32x32xf32>
    %6 = arith.addf %3, %5 : vector<32x32xf32>
    %c1 = arith.constant 1 : index
    %c0_6 = arith.constant 0 : index
    %7 = vector.load %arg5[%c1, %c0_6] : memref<24x96xf32, #tpu.memory_space<vmem>>, vector<1x32xf32>
    %c2 = arith.constant 2 : index
    %c0_7 = arith.constant 0 : index
    %8 = vector.load %arg5[%c2, %c0_7] : memref<24x96xf32, #tpu.memory_space<vmem>>, vector<1x32xf32>
    %cst_8 = arith.constant dense<0.000000e+00> : vector<32xf32>
    %9 = vector.multi_reduction <add>, %6, %cst_8 [1] : vector<32x32xf32> to vector<32xf32>
    %10 = vector.shape_cast %9 : vector<32xf32> to vector<32x1xf32>
    %cst_9 = arith.constant 3.200000e+01 : f32
    %11 = vector.broadcast %cst_9 : f32 to vector<32x1xf32>
    %12 = arith.divf %10, %11 : vector<32x1xf32>
    %13 = vector.broadcast %12 : vector<32x1xf32> to vector<32x32xf32>
    %14 = arith.subf %6, %13 : vector<32x32xf32>
    %15 = arith.mulf %14, %14 : vector<32x32xf32>
    %cst_10 = arith.constant dense<0.000000e+00> : vector<32xf32>
    %16 = vector.multi_reduction <add>, %15, %cst_10 [1] : vector<32x32xf32> to vector<32xf32>
    %17 = vector.shape_cast %16 : vector<32xf32> to vector<32x1xf32>
    %cst_11 = arith.constant 3.200000e+01 : f32
    %18 = vector.broadcast %cst_11 : f32 to vector<32x1xf32>
    %19 = arith.divf %17, %18 : vector<32x1xf32>
    %20 = vector.broadcast %12 : vector<32x1xf32> to vector<32x32xf32>
    %21 = arith.subf %6, %20 : vector<32x32xf32>
    %cst_12 = arith.constant 9.99999974E-6 : f32
    %22 = vector.broadcast %cst_12 : f32 to vector<32x1xf32>
    %23 = arith.addf %19, %22 : vector<32x1xf32>
    %24 = math.rsqrt %23 : vector<32x1xf32>
    %25 = vector.broadcast %24 : vector<32x1xf32> to vector<32x32xf32>
    %26 = arith.mulf %21, %25 : vector<32x32xf32>
    %27 = vector.broadcast %7 : vector<1x32xf32> to vector<32x32xf32>
    %28 = arith.mulf %26, %27 : vector<32x32xf32>
    %29 = vector.broadcast %8 : vector<1x32xf32> to vector<32x32xf32>
    %30 = arith.addf %28, %29 : vector<32x32xf32>
    %cst_13 = arith.constant 5.000000e-01 : f32
    %31 = vector.broadcast %cst_13 : f32 to vector<32x32xf32>
    %32 = arith.mulf %31, %30 : vector<32x32xf32>
    %cst_14 = arith.constant 0.707106769 : f32
    %33 = vector.broadcast %cst_14 : f32 to vector<32x32xf32>
    %34 = arith.mulf %30, %33 : vector<32x32xf32>
    %35 = math.erf %34 : vector<32x32xf32>
    %cst_15 = arith.constant 1.000000e+00 : f32
    %36 = vector.broadcast %cst_15 : f32 to vector<32x32xf32>
    %37 = arith.addf %36, %35 : vector<32x32xf32>
    %38 = arith.mulf %32, %37 : vector<32x32xf32>
    %c0_16 = arith.constant 0 : index
    %c0_17 = arith.constant 0 : index
    %39 = vector.load %arg2[%c0_16, %c0_17] : memref<32x32xf32, #tpu.memory_space<vmem>>, vector<32x32xf32>
    %c8 = arith.constant 8 : index
    %c0_18 = arith.constant 0 : index
    %40 = vector.load %arg4[%c8, %c0_18] : memref<328x96xf32, #tpu.memory_space<vmem>>, vector<32x96xf32>
    %c72 = arith.constant 72 : index
    %c0_19 = arith.constant 0 : index
    %41 = vector.load %arg4[%c72, %c0_19] : memref<328x96xf32, #tpu.memory_space<vmem>>, vector<32x64xf32>
    %c104 = arith.constant 104 : index
    %c0_20 = arith.constant 0 : index
    %42 = vector.load %arg4[%c104, %c0_20] : memref<328x96xf32, #tpu.memory_space<vmem>>, vector<64x32xf32>
    %c3 = arith.constant 3 : index
    %c0_21 = arith.constant 0 : index
    %43 = vector.load %arg5[%c3, %c0_21] : memref<24x96xf32, #tpu.memory_space<vmem>>, vector<1x96xf32>
    %c4 = arith.constant 4 : index
    %c0_22 = arith.constant 0 : index
    %44 = vector.load %arg5[%c4, %c0_22] : memref<24x96xf32, #tpu.memory_space<vmem>>, vector<1x32xf32>
    %c5 = arith.constant 5 : index
    %c0_23 = arith.constant 0 : index
    %45 = vector.load %arg5[%c5, %c0_23] : memref<24x96xf32, #tpu.memory_space<vmem>>, vector<1x32xf32>
    %c6 = arith.constant 6 : index
    %c0_24 = arith.constant 0 : index
    %46 = vector.load %arg5[%c6, %c0_24] : memref<24x96xf32, #tpu.memory_space<vmem>>, vector<1x32xf32>
    %c7 = arith.constant 7 : index
    %c0_25 = arith.constant 0 : index
    %47 = vector.load %arg5[%c7, %c0_25] : memref<24x96xf32, #tpu.memory_space<vmem>>, vector<1x64xf32>
    %c8_26 = arith.constant 8 : index
    %c0_27 = arith.constant 0 : index
    %48 = vector.load %arg5[%c8_26, %c0_27] : memref<24x96xf32, #tpu.memory_space<vmem>>, vector<1x32xf32>
    %c9 = arith.constant 9 : index
    %c0_28 = arith.constant 0 : index
    %49 = vector.load %arg5[%c9, %c0_28] : memref<24x96xf32, #tpu.memory_space<vmem>>, vector<1x32xf32>
    %c10 = arith.constant 10 : index
    %c0_29 = arith.constant 0 : index
    %50 = vector.load %arg5[%c10, %c0_29] : memref<24x96xf32, #tpu.memory_space<vmem>>, vector<1x32xf32>
    %cst_30 = arith.constant dense<0.000000e+00> : vector<32x96xf32>
    %51 = tpu.matmul %38, %40, %cst_30 {dimension_numbers = #tpu.dot_dimension_numbers<[1], [0], [0], [1], [0, 0, 1, 1], [], []>} : vector<32x32xf32>, vector<32x96xf32>, vector<32x96xf32> -> vector<32x96xf32>
    %52 = vector.broadcast %43 : vector<1x96xf32> to vector<32x96xf32>
    %53 = arith.addf %51, %52 : vector<32x96xf32>
    %cst_31 = arith.constant 0.000000e+00 : f32
    %54 = vector.broadcast %cst_31 : f32 to vector<32x32xf32>
    %55 = vector.extract_strided_slice %53 {offsets = [0, 0], sizes = [32, 8], strides = [1, 1]} : vector<32x96xf32> to vector<32x8xf32>
    %56 = vector.extract_strided_slice %53 {offsets = [0, 32], sizes = [32, 8], strides = [1, 1]} : vector<32x96xf32> to vector<32x8xf32>
    %57 = vector.extract_strided_slice %53 {offsets = [0, 64], sizes = [32, 8], strides = [1, 1]} : vector<32x96xf32> to vector<32x8xf32>
    %cst_32 = arith.constant dense<0.000000e+00> : vector<32x32xf32>
    %58 = tpu.matmul %55, %56, %cst_32 {dimension_numbers = #tpu.dot_dimension_numbers<[1], [1], [0], [0], [0, 0, 1, 0], [], []>} : vector<32x8xf32>, vector<32x8xf32>, vector<32x32xf32> -> vector<32x32xf32>
    %cst_33 = arith.constant 0.353553385 : f32
    %59 = vector.broadcast %cst_33 : f32 to vector<32x32xf32>
    %60 = arith.mulf %58, %59 : vector<32x32xf32>
    %61 = arith.addf %60, %39 : vector<32x32xf32>
    %cst_34 = arith.constant dense<0xFF800000> : vector<32xf32>
    %62 = vector.multi_reduction <maximumf>, %61, %cst_34 [1] : vector<32x32xf32> to vector<32xf32>
    %63 = vector.shape_cast %62 : vector<32xf32> to vector<32x1xf32>
    %64 = vector.broadcast %63 : vector<32x1xf32> to vector<32x32xf32>
    %65 = arith.subf %61, %64 : vector<32x32xf32>
    %66 = math.exp %65 : vector<32x32xf32>
    %cst_35 = arith.constant dense<0.000000e+00> : vector<32xf32>
    %67 = vector.multi_reduction <add>, %66, %cst_35 [1] : vector<32x32xf32> to vector<32xf32>
    %68 = vector.shape_cast %67 : vector<32xf32> to vector<32x1xf32>
    %69 = tpu.reciprocal %68 {approx = true} : vector<32x1xf32> -> vector<32x1xf32>
    %70 = vector.broadcast %69 : vector<32x1xf32> to vector<32x32xf32>
    %71 = arith.mulf %66, %70 : vector<32x32xf32>
    %cst_36 = arith.constant dense<0.000000e+00> : vector<32x8xf32>
    %72 = tpu.matmul %71, %57, %cst_36 {dimension_numbers = #tpu.dot_dimension_numbers<[1], [0], [0], [1], [0, 0, 1, 1], [], []>} : vector<32x32xf32>, vector<32x8xf32>, vector<32x8xf32> -> vector<32x8xf32>
    %c40 = arith.constant 40 : index
    %c0_37 = arith.constant 0 : index
    %73 = vector.load %arg4[%c40, %c0_37] : memref<328x96xf32, #tpu.memory_space<vmem>>, vector<8x32xf32>
    %cst_38 = arith.constant dense<0.000000e+00> : vector<32x32xf32>
    %74 = tpu.matmul %72, %73, %cst_38 {dimension_numbers = #tpu.dot_dimension_numbers<[1], [0], [0], [1], [0, 0, 1, 1], [], []>} : vector<32x8xf32>, vector<8x32xf32>, vector<32x32xf32> -> vector<32x32xf32>
    %75 = arith.addf %54, %74 : vector<32x32xf32>
    %76 = vector.extract_strided_slice %53 {offsets = [0, 8], sizes = [32, 8], strides = [1, 1]} : vector<32x96xf32> to vector<32x8xf32>
    %77 = vector.extract_strided_slice %53 {offsets = [0, 40], sizes = [32, 8], strides = [1, 1]} : vector<32x96xf32> to vector<32x8xf32>
    %78 = vector.extract_strided_slice %53 {offsets = [0, 72], sizes = [32, 8], strides = [1, 1]} : vector<32x96xf32> to vector<32x8xf32>
    %cst_39 = arith.constant dense<0.000000e+00> : vector<32x32xf32>
    %79 = tpu.matmul %76, %77, %cst_39 {dimension_numbers = #tpu.dot_dimension_numbers<[1], [1], [0], [0], [0, 0, 1, 0], [], []>} : vector<32x8xf32>, vector<32x8xf32>, vector<32x32xf32> -> vector<32x32xf32>
    %cst_40 = arith.constant 0.353553385 : f32
    %80 = vector.broadcast %cst_40 : f32 to vector<32x32xf32>
    %81 = arith.mulf %79, %80 : vector<32x32xf32>
    %82 = arith.addf %81, %39 : vector<32x32xf32>
    %cst_41 = arith.constant dense<0xFF800000> : vector<32xf32>
    %83 = vector.multi_reduction <maximumf>, %82, %cst_41 [1] : vector<32x32xf32> to vector<32xf32>
    %84 = vector.shape_cast %83 : vector<32xf32> to vector<32x1xf32>
    %85 = vector.broadcast %84 : vector<32x1xf32> to vector<32x32xf32>
    %86 = arith.subf %82, %85 : vector<32x32xf32>
    %87 = math.exp %86 : vector<32x32xf32>
    %cst_42 = arith.constant dense<0.000000e+00> : vector<32xf32>
    %88 = vector.multi_reduction <add>, %87, %cst_42 [1] : vector<32x32xf32> to vector<32xf32>
    %89 = vector.shape_cast %88 : vector<32xf32> to vector<32x1xf32>
    %90 = tpu.reciprocal %89 {approx = true} : vector<32x1xf32> -> vector<32x1xf32>
    %91 = vector.broadcast %90 : vector<32x1xf32> to vector<32x32xf32>
    %92 = arith.mulf %87, %91 : vector<32x32xf32>
    %cst_43 = arith.constant dense<0.000000e+00> : vector<32x8xf32>
    %93 = tpu.matmul %92, %78, %cst_43 {dimension_numbers = #tpu.dot_dimension_numbers<[1], [0], [0], [1], [0, 0, 1, 1], [], []>} : vector<32x32xf32>, vector<32x8xf32>, vector<32x8xf32> -> vector<32x8xf32>
    %c48 = arith.constant 48 : index
    %c0_44 = arith.constant 0 : index
    %94 = vector.load %arg4[%c48, %c0_44] : memref<328x96xf32, #tpu.memory_space<vmem>>, vector<8x32xf32>
    %cst_45 = arith.constant dense<0.000000e+00> : vector<32x32xf32>
    %95 = tpu.matmul %93, %94, %cst_45 {dimension_numbers = #tpu.dot_dimension_numbers<[1], [0], [0], [1], [0, 0, 1, 1], [], []>} : vector<32x8xf32>, vector<8x32xf32>, vector<32x32xf32> -> vector<32x32xf32>
    %96 = arith.addf %75, %95 : vector<32x32xf32>
    %97 = vector.extract_strided_slice %53 {offsets = [0, 16], sizes = [32, 8], strides = [1, 1]} : vector<32x96xf32> to vector<32x8xf32>
    %98 = vector.extract_strided_slice %53 {offsets = [0, 48], sizes = [32, 8], strides = [1, 1]} : vector<32x96xf32> to vector<32x8xf32>
    %99 = vector.extract_strided_slice %53 {offsets = [0, 80], sizes = [32, 8], strides = [1, 1]} : vector<32x96xf32> to vector<32x8xf32>
    %cst_46 = arith.constant dense<0.000000e+00> : vector<32x32xf32>
    %100 = tpu.matmul %97, %98, %cst_46 {dimension_numbers = #tpu.dot_dimension_numbers<[1], [1], [0], [0], [0, 0, 1, 0], [], []>} : vector<32x8xf32>, vector<32x8xf32>, vector<32x32xf32> -> vector<32x32xf32>
    %cst_47 = arith.constant 0.353553385 : f32
    %101 = vector.broadcast %cst_47 : f32 to vector<32x32xf32>
    %102 = arith.mulf %100, %101 : vector<32x32xf32>
    %103 = arith.addf %102, %39 : vector<32x32xf32>
    %cst_48 = arith.constant dense<0xFF800000> : vector<32xf32>
    %104 = vector.multi_reduction <maximumf>, %103, %cst_48 [1] : vector<32x32xf32> to vector<32xf32>
    %105 = vector.shape_cast %104 : vector<32xf32> to vector<32x1xf32>
    %106 = vector.broadcast %105 : vector<32x1xf32> to vector<32x32xf32>
    %107 = arith.subf %103, %106 : vector<32x32xf32>
    %108 = math.exp %107 : vector<32x32xf32>
    %cst_49 = arith.constant dense<0.000000e+00> : vector<32xf32>
    %109 = vector.multi_reduction <add>, %108, %cst_49 [1] : vector<32x32xf32> to vector<32xf32>
    %110 = vector.shape_cast %109 : vector<32xf32> to vector<32x1xf32>
    %111 = tpu.reciprocal %110 {approx = true} : vector<32x1xf32> -> vector<32x1xf32>
    %112 = vector.broadcast %111 : vector<32x1xf32> to vector<32x32xf32>
    %113 = arith.mulf %108, %112 : vector<32x32xf32>
    %cst_50 = arith.constant dense<0.000000e+00> : vector<32x8xf32>
    %114 = tpu.matmul %113, %99, %cst_50 {dimension_numbers = #tpu.dot_dimension_numbers<[1], [0], [0], [1], [0, 0, 1, 1], [], []>} : vector<32x32xf32>, vector<32x8xf32>, vector<32x8xf32> -> vector<32x8xf32>
    %c56 = arith.constant 56 : index
    %c0_51 = arith.constant 0 : index
    %115 = vector.load %arg4[%c56, %c0_51] : memref<328x96xf32, #tpu.memory_space<vmem>>, vector<8x32xf32>
    %cst_52 = arith.constant dense<0.000000e+00> : vector<32x32xf32>
    %116 = tpu.matmul %114, %115, %cst_52 {dimension_numbers = #tpu.dot_dimension_numbers<[1], [0], [0], [1], [0, 0, 1, 1], [], []>} : vector<32x8xf32>, vector<8x32xf32>, vector<32x32xf32> -> vector<32x32xf32>
    %117 = arith.addf %96, %116 : vector<32x32xf32>
    %118 = vector.extract_strided_slice %53 {offsets = [0, 24], sizes = [32, 8], strides = [1, 1]} : vector<32x96xf32> to vector<32x8xf32>
    %119 = vector.extract_strided_slice %53 {offsets = [0, 56], sizes = [32, 8], strides = [1, 1]} : vector<32x96xf32> to vector<32x8xf32>
    %120 = vector.extract_strided_slice %53 {offsets = [0, 88], sizes = [32, 8], strides = [1, 1]} : vector<32x96xf32> to vector<32x8xf32>
    %cst_53 = arith.constant dense<0.000000e+00> : vector<32x32xf32>
    %121 = tpu.matmul %118, %119, %cst_53 {dimension_numbers = #tpu.dot_dimension_numbers<[1], [1], [0], [0], [0, 0, 1, 0], [], []>} : vector<32x8xf32>, vector<32x8xf32>, vector<32x32xf32> -> vector<32x32xf32>
    %cst_54 = arith.constant 0.353553385 : f32
    %122 = vector.broadcast %cst_54 : f32 to vector<32x32xf32>
    %123 = arith.mulf %121, %122 : vector<32x32xf32>
    %124 = arith.addf %123, %39 : vector<32x32xf32>
    %cst_55 = arith.constant dense<0xFF800000> : vector<32xf32>
    %125 = vector.multi_reduction <maximumf>, %124, %cst_55 [1] : vector<32x32xf32> to vector<32xf32>
    %126 = vector.shape_cast %125 : vector<32xf32> to vector<32x1xf32>
    %127 = vector.broadcast %126 : vector<32x1xf32> to vector<32x32xf32>
    %128 = arith.subf %124, %127 : vector<32x32xf32>
    %129 = math.exp %128 : vector<32x32xf32>
    %cst_56 = arith.constant dense<0.000000e+00> : vector<32xf32>
    %130 = vector.multi_reduction <add>, %129, %cst_56 [1] : vector<32x32xf32> to vector<32xf32>
    %131 = vector.shape_cast %130 : vector<32xf32> to vector<32x1xf32>
    %132 = tpu.reciprocal %131 {approx = true} : vector<32x1xf32> -> vector<32x1xf32>
    %133 = vector.broadcast %132 : vector<32x1xf32> to vector<32x32xf32>
    %134 = arith.mulf %129, %133 : vector<32x32xf32>
    %cst_57 = arith.constant dense<0.000000e+00> : vector<32x8xf32>
    %135 = tpu.matmul %134, %120, %cst_57 {dimension_numbers = #tpu.dot_dimension_numbers<[1], [0], [0], [1], [0, 0, 1, 1], [], []>} : vector<32x32xf32>, vector<32x8xf32>, vector<32x8xf32> -> vector<32x8xf32>
    %c64 = arith.constant 64 : index
    %c0_58 = arith.constant 0 : index
    %136 = vector.load %arg4[%c64, %c0_58] : memref<328x96xf32, #tpu.memory_space<vmem>>, vector<8x32xf32>
    %cst_59 = arith.constant dense<0.000000e+00> : vector<32x32xf32>
    %137 = tpu.matmul %135, %136, %cst_59 {dimension_numbers = #tpu.dot_dimension_numbers<[1], [0], [0], [1], [0, 0, 1, 1], [], []>} : vector<32x8xf32>, vector<8x32xf32>, vector<32x32xf32> -> vector<32x32xf32>
    %138 = arith.addf %117, %137 : vector<32x32xf32>
    %139 = vector.broadcast %44 : vector<1x32xf32> to vector<32x32xf32>
    %140 = arith.addf %138, %139 : vector<32x32xf32>
    %141 = arith.addf %38, %140 : vector<32x32xf32>
    %cst_60 = arith.constant dense<0.000000e+00> : vector<32xf32>
    %142 = vector.multi_reduction <add>, %141, %cst_60 [1] : vector<32x32xf32> to vector<32xf32>
    %143 = vector.shape_cast %142 : vector<32xf32> to vector<32x1xf32>
    %cst_61 = arith.constant 3.200000e+01 : f32
    %144 = vector.broadcast %cst_61 : f32 to vector<32x1xf32>
    %145 = arith.divf %143, %144 : vector<32x1xf32>
    %146 = vector.broadcast %145 : vector<32x1xf32> to vector<32x32xf32>
    %147 = arith.subf %141, %146 : vector<32x32xf32>
    %148 = arith.mulf %147, %147 : vector<32x32xf32>
    %cst_62 = arith.constant dense<0.000000e+00> : vector<32xf32>
    %149 = vector.multi_reduction <add>, %148, %cst_62 [1] : vector<32x32xf32> to vector<32xf32>
    %150 = vector.shape_cast %149 : vector<32xf32> to vector<32x1xf32>
    %cst_63 = arith.constant 3.200000e+01 : f32
    %151 = vector.broadcast %cst_63 : f32 to vector<32x1xf32>
    %152 = arith.divf %150, %151 : vector<32x1xf32>
    %153 = vector.broadcast %145 : vector<32x1xf32> to vector<32x32xf32>
    %154 = arith.subf %141, %153 : vector<32x32xf32>
    %cst_64 = arith.constant 9.99999974E-6 : f32
    %155 = vector.broadcast %cst_64 : f32 to vector<32x1xf32>
    %156 = arith.addf %152, %155 : vector<32x1xf32>
    %157 = math.rsqrt %156 : vector<32x1xf32>
    %158 = vector.broadcast %157 : vector<32x1xf32> to vector<32x32xf32>
    %159 = arith.mulf %154, %158 : vector<32x32xf32>
    %160 = vector.broadcast %45 : vector<1x32xf32> to vector<32x32xf32>
    %161 = arith.mulf %159, %160 : vector<32x32xf32>
    %162 = vector.broadcast %46 : vector<1x32xf32> to vector<32x32xf32>
    %163 = arith.addf %161, %162 : vector<32x32xf32>
    %cst_65 = arith.constant dense<0.000000e+00> : vector<32x64xf32>
    %164 = tpu.matmul %163, %41, %cst_65 {dimension_numbers = #tpu.dot_dimension_numbers<[1], [0], [0], [1], [0, 0, 1, 1], [], []>} : vector<32x32xf32>, vector<32x64xf32>, vector<32x64xf32> -> vector<32x64xf32>
    %165 = vector.broadcast %47 : vector<1x64xf32> to vector<32x64xf32>
    %166 = arith.addf %164, %165 : vector<32x64xf32>
    %cst_66 = arith.constant 0.000000e+00 : f32
    %167 = vector.broadcast %cst_66 : f32 to vector<32x64xf32>
    %168 = arith.maximumf %166, %167 : vector<32x64xf32>
    %cst_67 = arith.constant dense<0.000000e+00> : vector<32x32xf32>
    %169 = tpu.matmul %168, %42, %cst_67 {dimension_numbers = #tpu.dot_dimension_numbers<[1], [0], [0], [1], [0, 0, 1, 1], [], []>} : vector<32x64xf32>, vector<64x32xf32>, vector<32x32xf32> -> vector<32x32xf32>
    %170 = vector.broadcast %48 : vector<1x32xf32> to vector<32x32xf32>
    %171 = arith.addf %169, %170 : vector<32x32xf32>
    %172 = arith.addf %163, %171 : vector<32x32xf32>
    %cst_68 = arith.constant dense<0.000000e+00> : vector<32xf32>
    %173 = vector.multi_reduction <add>, %172, %cst_68 [1] : vector<32x32xf32> to vector<32xf32>
    %174 = vector.shape_cast %173 : vector<32xf32> to vector<32x1xf32>
    %cst_69 = arith.constant 3.200000e+01 : f32
    %175 = vector.broadcast %cst_69 : f32 to vector<32x1xf32>
    %176 = arith.divf %174, %175 : vector<32x1xf32>
    %177 = vector.broadcast %176 : vector<32x1xf32> to vector<32x32xf32>
    %178 = arith.subf %172, %177 : vector<32x32xf32>
    %179 = arith.mulf %178, %178 : vector<32x32xf32>
    %cst_70 = arith.constant dense<0.000000e+00> : vector<32xf32>
    %180 = vector.multi_reduction <add>, %179, %cst_70 [1] : vector<32x32xf32> to vector<32xf32>
    %181 = vector.shape_cast %180 : vector<32xf32> to vector<32x1xf32>
    %cst_71 = arith.constant 3.200000e+01 : f32
    %182 = vector.broadcast %cst_71 : f32 to vector<32x1xf32>
    %183 = arith.divf %181, %182 : vector<32x1xf32>
    %184 = vector.broadcast %176 : vector<32x1xf32> to vector<32x32xf32>
    %185 = arith.subf %172, %184 : vector<32x32xf32>
    %cst_72 = arith.constant 9.99999974E-6 : f32
    %186 = vector.broadcast %cst_72 : f32 to vector<32x1xf32>
    %187 = arith.addf %183, %186 : vector<32x1xf32>
    %188 = math.rsqrt %187 : vector<32x1xf32>
    %189 = vector.broadcast %188 : vector<32x1xf32> to vector<32x32xf32>
    %190 = arith.mulf %185, %189 : vector<32x32xf32>
    %191 = vector.broadcast %49 : vector<1x32xf32> to vector<32x32xf32>
    %192 = arith.mulf %190, %191 : vector<32x32xf32>
    %193 = vector.broadcast %50 : vector<1x32xf32> to vector<32x32xf32>
    %194 = arith.addf %192, %193 : vector<32x32xf32>
    %c168 = arith.constant 168 : index
    %c0_73 = arith.constant 0 : index
    %195 = vector.load %arg4[%c168, %c0_73] : memref<328x96xf32, #tpu.memory_space<vmem>>, vector<32x96xf32>
    %c232 = arith.constant 232 : index
    %c0_74 = arith.constant 0 : index
    %196 = vector.load %arg4[%c232, %c0_74] : memref<328x96xf32, #tpu.memory_space<vmem>>, vector<32x64xf32>
    %c264 = arith.constant 264 : index
    %c0_75 = arith.constant 0 : index
    %197 = vector.load %arg4[%c264, %c0_75] : memref<328x96xf32, #tpu.memory_space<vmem>>, vector<64x32xf32>
    %c11 = arith.constant 11 : index
    %c0_76 = arith.constant 0 : index
    %198 = vector.load %arg5[%c11, %c0_76] : memref<24x96xf32, #tpu.memory_space<vmem>>, vector<1x96xf32>
    %c12 = arith.constant 12 : index
    %c0_77 = arith.constant 0 : index
    %199 = vector.load %arg5[%c12, %c0_77] : memref<24x96xf32, #tpu.memory_space<vmem>>, vector<1x32xf32>
    %c13 = arith.constant 13 : index
    %c0_78 = arith.constant 0 : index
    %200 = vector.load %arg5[%c13, %c0_78] : memref<24x96xf32, #tpu.memory_space<vmem>>, vector<1x32xf32>
    %c14 = arith.constant 14 : index
    %c0_79 = arith.constant 0 : index
    %201 = vector.load %arg5[%c14, %c0_79] : memref<24x96xf32, #tpu.memory_space<vmem>>, vector<1x32xf32>
    %c15 = arith.constant 15 : index
    %c0_80 = arith.constant 0 : index
    %202 = vector.load %arg5[%c15, %c0_80] : memref<24x96xf32, #tpu.memory_space<vmem>>, vector<1x64xf32>
    %c16 = arith.constant 16 : index
    %c0_81 = arith.constant 0 : index
    %203 = vector.load %arg5[%c16, %c0_81] : memref<24x96xf32, #tpu.memory_space<vmem>>, vector<1x32xf32>
    %c17 = arith.constant 17 : index
    %c0_82 = arith.constant 0 : index
    %204 = vector.load %arg5[%c17, %c0_82] : memref<24x96xf32, #tpu.memory_space<vmem>>, vector<1x32xf32>
    %c18 = arith.constant 18 : index
    %c0_83 = arith.constant 0 : index
    %205 = vector.load %arg5[%c18, %c0_83] : memref<24x96xf32, #tpu.memory_space<vmem>>, vector<1x32xf32>
    %cst_84 = arith.constant dense<0.000000e+00> : vector<32x96xf32>
    %206 = tpu.matmul %194, %195, %cst_84 {dimension_numbers = #tpu.dot_dimension_numbers<[1], [0], [0], [1], [0, 0, 1, 1], [], []>} : vector<32x32xf32>, vector<32x96xf32>, vector<32x96xf32> -> vector<32x96xf32>
    %207 = vector.broadcast %198 : vector<1x96xf32> to vector<32x96xf32>
    %208 = arith.addf %206, %207 : vector<32x96xf32>
    %cst_85 = arith.constant 0.000000e+00 : f32
    %209 = vector.broadcast %cst_85 : f32 to vector<32x32xf32>
    %210 = vector.extract_strided_slice %208 {offsets = [0, 0], sizes = [32, 8], strides = [1, 1]} : vector<32x96xf32> to vector<32x8xf32>
    %211 = vector.extract_strided_slice %208 {offsets = [0, 32], sizes = [32, 8], strides = [1, 1]} : vector<32x96xf32> to vector<32x8xf32>
    %212 = vector.extract_strided_slice %208 {offsets = [0, 64], sizes = [32, 8], strides = [1, 1]} : vector<32x96xf32> to vector<32x8xf32>
    %cst_86 = arith.constant dense<0.000000e+00> : vector<32x32xf32>
    %213 = tpu.matmul %210, %211, %cst_86 {dimension_numbers = #tpu.dot_dimension_numbers<[1], [1], [0], [0], [0, 0, 1, 0], [], []>} : vector<32x8xf32>, vector<32x8xf32>, vector<32x32xf32> -> vector<32x32xf32>
    %cst_87 = arith.constant 0.353553385 : f32
    %214 = vector.broadcast %cst_87 : f32 to vector<32x32xf32>
    %215 = arith.mulf %213, %214 : vector<32x32xf32>
    %216 = arith.addf %215, %39 : vector<32x32xf32>
    %cst_88 = arith.constant dense<0xFF800000> : vector<32xf32>
    %217 = vector.multi_reduction <maximumf>, %216, %cst_88 [1] : vector<32x32xf32> to vector<32xf32>
    %218 = vector.shape_cast %217 : vector<32xf32> to vector<32x1xf32>
    %219 = vector.broadcast %218 : vector<32x1xf32> to vector<32x32xf32>
    %220 = arith.subf %216, %219 : vector<32x32xf32>
    %221 = math.exp %220 : vector<32x32xf32>
    %cst_89 = arith.constant dense<0.000000e+00> : vector<32xf32>
    %222 = vector.multi_reduction <add>, %221, %cst_89 [1] : vector<32x32xf32> to vector<32xf32>
    %223 = vector.shape_cast %222 : vector<32xf32> to vector<32x1xf32>
    %224 = tpu.reciprocal %223 {approx = true} : vector<32x1xf32> -> vector<32x1xf32>
    %225 = vector.broadcast %224 : vector<32x1xf32> to vector<32x32xf32>
    %226 = arith.mulf %221, %225 : vector<32x32xf32>
    %cst_90 = arith.constant dense<0.000000e+00> : vector<32x8xf32>
    %227 = tpu.matmul %226, %212, %cst_90 {dimension_numbers = #tpu.dot_dimension_numbers<[1], [0], [0], [1], [0, 0, 1, 1], [], []>} : vector<32x32xf32>, vector<32x8xf32>, vector<32x8xf32> -> vector<32x8xf32>
    %c200 = arith.constant 200 : index
    %c0_91 = arith.constant 0 : index
    %228 = vector.load %arg4[%c200, %c0_91] : memref<328x96xf32, #tpu.memory_space<vmem>>, vector<8x32xf32>
    %cst_92 = arith.constant dense<0.000000e+00> : vector<32x32xf32>
    %229 = tpu.matmul %227, %228, %cst_92 {dimension_numbers = #tpu.dot_dimension_numbers<[1], [0], [0], [1], [0, 0, 1, 1], [], []>} : vector<32x8xf32>, vector<8x32xf32>, vector<32x32xf32> -> vector<32x32xf32>
    %230 = arith.addf %209, %229 : vector<32x32xf32>
    %231 = vector.extract_strided_slice %208 {offsets = [0, 8], sizes = [32, 8], strides = [1, 1]} : vector<32x96xf32> to vector<32x8xf32>
    %232 = vector.extract_strided_slice %208 {offsets = [0, 40], sizes = [32, 8], strides = [1, 1]} : vector<32x96xf32> to vector<32x8xf32>
    %233 = vector.extract_strided_slice %208 {offsets = [0, 72], sizes = [32, 8], strides = [1, 1]} : vector<32x96xf32> to vector<32x8xf32>
    %cst_93 = arith.constant dense<0.000000e+00> : vector<32x32xf32>
    %234 = tpu.matmul %231, %232, %cst_93 {dimension_numbers = #tpu.dot_dimension_numbers<[1], [1], [0], [0], [0, 0, 1, 0], [], []>} : vector<32x8xf32>, vector<32x8xf32>, vector<32x32xf32> -> vector<32x32xf32>
    %cst_94 = arith.constant 0.353553385 : f32
    %235 = vector.broadcast %cst_94 : f32 to vector<32x32xf32>
    %236 = arith.mulf %234, %235 : vector<32x32xf32>
    %237 = arith.addf %236, %39 : vector<32x32xf32>
    %cst_95 = arith.constant dense<0xFF800000> : vector<32xf32>
    %238 = vector.multi_reduction <maximumf>, %237, %cst_95 [1] : vector<32x32xf32> to vector<32xf32>
    %239 = vector.shape_cast %238 : vector<32xf32> to vector<32x1xf32>
    %240 = vector.broadcast %239 : vector<32x1xf32> to vector<32x32xf32>
    %241 = arith.subf %237, %240 : vector<32x32xf32>
    %242 = math.exp %241 : vector<32x32xf32>
    %cst_96 = arith.constant dense<0.000000e+00> : vector<32xf32>
    %243 = vector.multi_reduction <add>, %242, %cst_96 [1] : vector<32x32xf32> to vector<32xf32>
    %244 = vector.shape_cast %243 : vector<32xf32> to vector<32x1xf32>
    %245 = tpu.reciprocal %244 {approx = true} : vector<32x1xf32> -> vector<32x1xf32>
    %246 = vector.broadcast %245 : vector<32x1xf32> to vector<32x32xf32>
    %247 = arith.mulf %242, %246 : vector<32x32xf32>
    %cst_97 = arith.constant dense<0.000000e+00> : vector<32x8xf32>
    %248 = tpu.matmul %247, %233, %cst_97 {dimension_numbers = #tpu.dot_dimension_numbers<[1], [0], [0], [1], [0, 0, 1, 1], [], []>} : vector<32x32xf32>, vector<32x8xf32>, vector<32x8xf32> -> vector<32x8xf32>
    %c208 = arith.constant 208 : index
    %c0_98 = arith.constant 0 : index
    %249 = vector.load %arg4[%c208, %c0_98] : memref<328x96xf32, #tpu.memory_space<vmem>>, vector<8x32xf32>
    %cst_99 = arith.constant dense<0.000000e+00> : vector<32x32xf32>
    %250 = tpu.matmul %248, %249, %cst_99 {dimension_numbers = #tpu.dot_dimension_numbers<[1], [0], [0], [1], [0, 0, 1, 1], [], []>} : vector<32x8xf32>, vector<8x32xf32>, vector<32x32xf32> -> vector<32x32xf32>
    %251 = arith.addf %230, %250 : vector<32x32xf32>
    %252 = vector.extract_strided_slice %208 {offsets = [0, 16], sizes = [32, 8], strides = [1, 1]} : vector<32x96xf32> to vector<32x8xf32>
    %253 = vector.extract_strided_slice %208 {offsets = [0, 48], sizes = [32, 8], strides = [1, 1]} : vector<32x96xf32> to vector<32x8xf32>
    %254 = vector.extract_strided_slice %208 {offsets = [0, 80], sizes = [32, 8], strides = [1, 1]} : vector<32x96xf32> to vector<32x8xf32>
    %cst_100 = arith.constant dense<0.000000e+00> : vector<32x32xf32>
    %255 = tpu.matmul %252, %253, %cst_100 {dimension_numbers = #tpu.dot_dimension_numbers<[1], [1], [0], [0], [0, 0, 1, 0], [], []>} : vector<32x8xf32>, vector<32x8xf32>, vector<32x32xf32> -> vector<32x32xf32>
    %cst_101 = arith.constant 0.353553385 : f32
    %256 = vector.broadcast %cst_101 : f32 to vector<32x32xf32>
    %257 = arith.mulf %255, %256 : vector<32x32xf32>
    %258 = arith.addf %257, %39 : vector<32x32xf32>
    %cst_102 = arith.constant dense<0xFF800000> : vector<32xf32>
    %259 = vector.multi_reduction <maximumf>, %258, %cst_102 [1] : vector<32x32xf32> to vector<32xf32>
    %260 = vector.shape_cast %259 : vector<32xf32> to vector<32x1xf32>
    %261 = vector.broadcast %260 : vector<32x1xf32> to vector<32x32xf32>
    %262 = arith.subf %258, %261 : vector<32x32xf32>
    %263 = math.exp %262 : vector<32x32xf32>
    %cst_103 = arith.constant dense<0.000000e+00> : vector<32xf32>
    %264 = vector.multi_reduction <add>, %263, %cst_103 [1] : vector<32x32xf32> to vector<32xf32>
    %265 = vector.shape_cast %264 : vector<32xf32> to vector<32x1xf32>
    %266 = tpu.reciprocal %265 {approx = true} : vector<32x1xf32> -> vector<32x1xf32>
    %267 = vector.broadcast %266 : vector<32x1xf32> to vector<32x32xf32>
    %268 = arith.mulf %263, %267 : vector<32x32xf32>
    %cst_104 = arith.constant dense<0.000000e+00> : vector<32x8xf32>
    %269 = tpu.matmul %268, %254, %cst_104 {dimension_numbers = #tpu.dot_dimension_numbers<[1], [0], [0], [1], [0, 0, 1, 1], [], []>} : vector<32x32xf32>, vector<32x8xf32>, vector<32x8xf32> -> vector<32x8xf32>
    %c216 = arith.constant 216 : index
    %c0_105 = arith.constant 0 : index
    %270 = vector.load %arg4[%c216, %c0_105] : memref<328x96xf32, #tpu.memory_space<vmem>>, vector<8x32xf32>
    %cst_106 = arith.constant dense<0.000000e+00> : vector<32x32xf32>
    %271 = tpu.matmul %269, %270, %cst_106 {dimension_numbers = #tpu.dot_dimension_numbers<[1], [0], [0], [1], [0, 0, 1, 1], [], []>} : vector<32x8xf32>, vector<8x32xf32>, vector<32x32xf32> -> vector<32x32xf32>
    %272 = arith.addf %251, %271 : vector<32x32xf32>
    %273 = vector.extract_strided_slice %208 {offsets = [0, 24], sizes = [32, 8], strides = [1, 1]} : vector<32x96xf32> to vector<32x8xf32>
    %274 = vector.extract_strided_slice %208 {offsets = [0, 56], sizes = [32, 8], strides = [1, 1]} : vector<32x96xf32> to vector<32x8xf32>
    %275 = vector.extract_strided_slice %208 {offsets = [0, 88], sizes = [32, 8], strides = [1, 1]} : vector<32x96xf32> to vector<32x8xf32>
    %cst_107 = arith.constant dense<0.000000e+00> : vector<32x32xf32>
    %276 = tpu.matmul %273, %274, %cst_107 {dimension_numbers = #tpu.dot_dimension_numbers<[1], [1], [0], [0], [0, 0, 1, 0], [], []>} : vector<32x8xf32>, vector<32x8xf32>, vector<32x32xf32> -> vector<32x32xf32>
    %cst_108 = arith.constant 0.353553385 : f32
    %277 = vector.broadcast %cst_108 : f32 to vector<32x32xf32>
    %278 = arith.mulf %276, %277 : vector<32x32xf32>
    %279 = arith.addf %278, %39 : vector<32x32xf32>
    %cst_109 = arith.constant dense<0xFF800000> : vector<32xf32>
    %280 = vector.multi_reduction <maximumf>, %279, %cst_109 [1] : vector<32x32xf32> to vector<32xf32>
    %281 = vector.shape_cast %280 : vector<32xf32> to vector<32x1xf32>
    %282 = vector.broadcast %281 : vector<32x1xf32> to vector<32x32xf32>
    %283 = arith.subf %279, %282 : vector<32x32xf32>
    %284 = math.exp %283 : vector<32x32xf32>
    %cst_110 = arith.constant dense<0.000000e+00> : vector<32xf32>
    %285 = vector.multi_reduction <add>, %284, %cst_110 [1] : vector<32x32xf32> to vector<32xf32>
    %286 = vector.shape_cast %285 : vector<32xf32> to vector<32x1xf32>
    %287 = tpu.reciprocal %286 {approx = true} : vector<32x1xf32> -> vector<32x1xf32>
    %288 = vector.broadcast %287 : vector<32x1xf32> to vector<32x32xf32>
    %289 = arith.mulf %284, %288 : vector<32x32xf32>
    %cst_111 = arith.constant dense<0.000000e+00> : vector<32x8xf32>
    %290 = tpu.matmul %289, %275, %cst_111 {dimension_numbers = #tpu.dot_dimension_numbers<[1], [0], [0], [1], [0, 0, 1, 1], [], []>} : vector<32x32xf32>, vector<32x8xf32>, vector<32x8xf32> -> vector<32x8xf32>
    %c224 = arith.constant 224 : index
    %c0_112 = arith.constant 0 : index
    %291 = vector.load %arg4[%c224, %c0_112] : memref<328x96xf32, #tpu.memory_space<vmem>>, vector<8x32xf32>
    %cst_113 = arith.constant dense<0.000000e+00> : vector<32x32xf32>
    %292 = tpu.matmul %290, %291, %cst_113 {dimension_numbers = #tpu.dot_dimension_numbers<[1], [0], [0], [1], [0, 0, 1, 1], [], []>} : vector<32x8xf32>, vector<8x32xf32>, vector<32x32xf32> -> vector<32x32xf32>
    %293 = arith.addf %272, %292 : vector<32x32xf32>
    %294 = vector.broadcast %199 : vector<1x32xf32> to vector<32x32xf32>
    %295 = arith.addf %293, %294 : vector<32x32xf32>
    %296 = arith.addf %194, %295 : vector<32x32xf32>
    %cst_114 = arith.constant dense<0.000000e+00> : vector<32xf32>
    %297 = vector.multi_reduction <add>, %296, %cst_114 [1] : vector<32x32xf32> to vector<32xf32>
    %298 = vector.shape_cast %297 : vector<32xf32> to vector<32x1xf32>
    %cst_115 = arith.constant 3.200000e+01 : f32
    %299 = vector.broadcast %cst_115 : f32 to vector<32x1xf32>
    %300 = arith.divf %298, %299 : vector<32x1xf32>
    %301 = vector.broadcast %300 : vector<32x1xf32> to vector<32x32xf32>
    %302 = arith.subf %296, %301 : vector<32x32xf32>
    %303 = arith.mulf %302, %302 : vector<32x32xf32>
    %cst_116 = arith.constant dense<0.000000e+00> : vector<32xf32>
    %304 = vector.multi_reduction <add>, %303, %cst_116 [1] : vector<32x32xf32> to vector<32xf32>
    %305 = vector.shape_cast %304 : vector<32xf32> to vector<32x1xf32>
    %cst_117 = arith.constant 3.200000e+01 : f32
    %306 = vector.broadcast %cst_117 : f32 to vector<32x1xf32>
    %307 = arith.divf %305, %306 : vector<32x1xf32>
    %308 = vector.broadcast %300 : vector<32x1xf32> to vector<32x32xf32>
    %309 = arith.subf %296, %308 : vector<32x32xf32>
    %cst_118 = arith.constant 9.99999974E-6 : f32
    %310 = vector.broadcast %cst_118 : f32 to vector<32x1xf32>
    %311 = arith.addf %307, %310 : vector<32x1xf32>
    %312 = math.rsqrt %311 : vector<32x1xf32>
    %313 = vector.broadcast %312 : vector<32x1xf32> to vector<32x32xf32>
    %314 = arith.mulf %309, %313 : vector<32x32xf32>
    %315 = vector.broadcast %200 : vector<1x32xf32> to vector<32x32xf32>
    %316 = arith.mulf %314, %315 : vector<32x32xf32>
    %317 = vector.broadcast %201 : vector<1x32xf32> to vector<32x32xf32>
    %318 = arith.addf %316, %317 : vector<32x32xf32>
    %cst_119 = arith.constant dense<0.000000e+00> : vector<32x64xf32>
    %319 = tpu.matmul %318, %196, %cst_119 {dimension_numbers = #tpu.dot_dimension_numbers<[1], [0], [0], [1], [0, 0, 1, 1], [], []>} : vector<32x32xf32>, vector<32x64xf32>, vector<32x64xf32> -> vector<32x64xf32>
    %320 = vector.broadcast %202 : vector<1x64xf32> to vector<32x64xf32>
    %321 = arith.addf %319, %320 : vector<32x64xf32>
    %cst_120 = arith.constant 0.000000e+00 : f32
    %322 = vector.broadcast %cst_120 : f32 to vector<32x64xf32>
    %323 = arith.maximumf %321, %322 : vector<32x64xf32>
    %cst_121 = arith.constant dense<0.000000e+00> : vector<32x32xf32>
    %324 = tpu.matmul %323, %197, %cst_121 {dimension_numbers = #tpu.dot_dimension_numbers<[1], [0], [0], [1], [0, 0, 1, 1], [], []>} : vector<32x64xf32>, vector<64x32xf32>, vector<32x32xf32> -> vector<32x32xf32>
    %325 = vector.broadcast %203 : vector<1x32xf32> to vector<32x32xf32>
    %326 = arith.addf %324, %325 : vector<32x32xf32>
    %327 = arith.addf %318, %326 : vector<32x32xf32>
    %cst_122 = arith.constant dense<0.000000e+00> : vector<32xf32>
    %328 = vector.multi_reduction <add>, %327, %cst_122 [1] : vector<32x32xf32> to vector<32xf32>
    %329 = vector.shape_cast %328 : vector<32xf32> to vector<32x1xf32>
    %cst_123 = arith.constant 3.200000e+01 : f32
    %330 = vector.broadcast %cst_123 : f32 to vector<32x1xf32>
    %331 = arith.divf %329, %330 : vector<32x1xf32>
    %332 = vector.broadcast %331 : vector<32x1xf32> to vector<32x32xf32>
    %333 = arith.subf %327, %332 : vector<32x32xf32>
    %334 = arith.mulf %333, %333 : vector<32x32xf32>
    %cst_124 = arith.constant dense<0.000000e+00> : vector<32xf32>
    %335 = vector.multi_reduction <add>, %334, %cst_124 [1] : vector<32x32xf32> to vector<32xf32>
    %336 = vector.shape_cast %335 : vector<32xf32> to vector<32x1xf32>
    %cst_125 = arith.constant 3.200000e+01 : f32
    %337 = vector.broadcast %cst_125 : f32 to vector<32x1xf32>
    %338 = arith.divf %336, %337 : vector<32x1xf32>
    %339 = vector.broadcast %331 : vector<32x1xf32> to vector<32x32xf32>
    %340 = arith.subf %327, %339 : vector<32x32xf32>
    %cst_126 = arith.constant 9.99999974E-6 : f32
    %341 = vector.broadcast %cst_126 : f32 to vector<32x1xf32>
    %342 = arith.addf %338, %341 : vector<32x1xf32>
    %343 = math.rsqrt %342 : vector<32x1xf32>
    %344 = vector.broadcast %343 : vector<32x1xf32> to vector<32x32xf32>
    %345 = arith.mulf %340, %344 : vector<32x32xf32>
    %346 = vector.broadcast %204 : vector<1x32xf32> to vector<32x32xf32>
    %347 = arith.mulf %345, %346 : vector<32x32xf32>
    %348 = vector.broadcast %205 : vector<1x32xf32> to vector<32x32xf32>
    %349 = arith.addf %347, %348 : vector<32x32xf32>
    %c0_127 = arith.constant 0 : index
    %c0_128 = arith.constant 0 : index
    %350 = vector.load %arg3[%c0_127, %c0_128] : memref<2x32xf32, #tpu.memory_space<vmem>>, vector<2x32xf32>
    %cst_129 = arith.constant dense<0.000000e+00> : vector<2x32xf32>
    %351 = tpu.matmul %350, %349, %cst_129 {dimension_numbers = #tpu.dot_dimension_numbers<[1], [0], [0], [1], [0, 0, 1, 1], [], []>} : vector<2x32xf32>, vector<32x32xf32>, vector<2x32xf32> -> vector<2x32xf32>
    %352 = math.absf %351 : vector<2x32xf32>
    %c19 = arith.constant 19 : index
    %c0_130 = arith.constant 0 : index
    %353 = vector.load %arg5[%c19, %c0_130] : memref<24x96xf32, #tpu.memory_space<vmem>>, vector<1x32xf32>
    %c20 = arith.constant 20 : index
    %c0_131 = arith.constant 0 : index
    %354 = vector.load %arg5[%c20, %c0_131] : memref<24x96xf32, #tpu.memory_space<vmem>>, vector<1x1xf32>
    %355 = vector.broadcast %353 : vector<1x32xf32> to vector<2x32xf32>
    %356 = arith.mulf %352, %355 : vector<2x32xf32>
    %cst_132 = arith.constant dense<0.000000e+00> : vector<2xf32>
    %357 = vector.multi_reduction <add>, %356, %cst_132 [1] : vector<2x32xf32> to vector<2xf32>
    %358 = vector.shape_cast %357 : vector<2xf32> to vector<2x1xf32>
    %359 = vector.broadcast %354 : vector<1x1xf32> to vector<2x1xf32>
    %360 = arith.addf %358, %359 : vector<2x1xf32>
    %cst_133 = arith.constant 0.000000e+00 : f32
    %361 = vector.broadcast %cst_133 : f32 to vector<2x1xf32>
    %362 = arith.subf %361, %360 : vector<2x1xf32>
    %363 = math.exp %362 : vector<2x1xf32>
    %cst_134 = arith.constant 1.000000e+00 : f32
    %364 = vector.broadcast %cst_134 : f32 to vector<2x1xf32>
    %365 = arith.addf %364, %363 : vector<2x1xf32>
    %cst_135 = arith.constant 1.000000e+00 : f32
    %366 = vector.broadcast %cst_135 : f32 to vector<2x1xf32>
    %367 = arith.divf %366, %365 : vector<2x1xf32>
    %368 = vector.shape_cast %367 : vector<2x1xf32> to vector<2x1xf32>
    %369 = vector.broadcast %368 : vector<2x1xf32> to vector<2x128xf32>
    %c0_136 = arith.constant 0 : index
    %c0_137 = arith.constant 0 : index
    %c0_138 = arith.constant 0 : index
    %370 = vector.load %arg6[%c0_136, %c0_137, %c0_138] : memref<1x2x128xf32, #tpu.memory_space<vmem>>, vector<1x2x128xf32>
    %371 = vector.shape_cast %370 : vector<1x2x128xf32> to vector<2x128xf32>
    %372 = vector.shape_cast %369 : vector<2x128xf32> to vector<1x2x128xf32>
    tpu.vector_store %arg6[%c0_136, %c0_137, %c0_138], %372 {strides = array<i32>} : memref<1x2x128xf32, #tpu.memory_space<vmem>>, vector<1x2x128xf32>,
    return
  }
  func.func @transform_0(%arg0: i32) -> (i32, i32, i32) {
    %c0_i32 = arith.constant 0 : i32
    %c0_i32_0 = arith.constant 0 : i32
    %c0_i32_1 = arith.constant 0 : i32
    return %arg0, %c0_i32, %c0_i32_0 : i32, i32, i32
  }
  func.func @transform_1(%arg0: i32) -> (i32, i32) {
    %c0_i32 = arith.constant 0 : i32
    %c0_i32_0 = arith.constant 0 : i32
    %c0_i32_1 = arith.constant 0 : i32
    return %c0_i32, %c0_i32_0 : i32, i32
  }
  func.func @transform_2(%arg0: i32) -> (i32, i32) {
    %c0_i32 = arith.constant 0 : i32
    %c0_i32_0 = arith.constant 0 : i32
    %c0_i32_1 = arith.constant 0 : i32
    return %c0_i32, %c0_i32_0 : i32, i32
  }
  func.func @transform_3(%arg0: i32) -> (i32, i32) {
    %c0_i32 = arith.constant 0 : i32
    %c0_i32_0 = arith.constant 0 : i32
    %c0_i32_1 = arith.constant 0 : i32
    return %c0_i32, %c0_i32_0 : i32, i32
  }
  func.func @transform_4(%arg0: i32) -> (i32, i32) {
    %c0_i32 = arith.constant 0 : i32
    %c0_i32_0 = arith.constant 0 : i32
    %c0_i32_1 = arith.constant 0 : i32
    return %c0_i32, %c0_i32_0 : i32, i32
  }
  func.func @transform_5(%arg0: i32) -> (i32, i32, i32) {
    %c0_i32 = arith.constant 0 : i32
    %c0_i32_0 = arith.constant 0 : i32
    %c0_i32_1 = arith.constant 0 : i32
    return %arg0, %c0_i32, %c0_i32_0 : i32, i32, i32
  }
}

</mosaic_0001>

<llo_original>
// kernel: tfeita_forward.1
$region0: #{tfeita_forward.1}
  #allocation0 [shape = 'u32[]', space=smem, size = 0x4, offset = 0x4, fixed_abs, tag = 'smem constant byte address 0x4 - core index']
  #allocation1 [shape = 'u32[72,128]{1,0:T(1,128)}', space=vmem, size = 0x9000, scoped, tag = 'internal scratch']
  %s0 = inlined_call_operand.vmem [shape: f32[1,32,8], index: 0, kind: input, shape index: {}]
  %s1 = inlined_call_operand.vmem [shape: f32[32,32], index: 1, kind: input, shape index: {}]
  %s2 = inlined_call_operand.vmem [shape: f32[2,32], index: 2, kind: input, shape index: {}]
  %s3 = inlined_call_operand.vmem [shape: f32[328,96], index: 3, kind: input, shape index: {}]
  %s4 = inlined_call_operand.vmem [shape: f32[24,96], index: 4, kind: input, shape index: {}]
  %s5 = inlined_call_operand.vmem [shape: f32[1,2,128], index: 5, kind: output, shape index: {}]
  %s6 = sld [smem:[#allocation0]]
  $region30: #{tfeita_forward.1} parent=0
    _
  %s8 = ssub.s32 1, %s6
  %s9 = scalar_select 0, %s8, %s6
  // Predicated region
  $region2: #{tfeita_forward.1} parent=0 // pred_check
    _
  $region3: #{tfeita_forward.1} parent=0 // pred_check_branch
    %11 = sbr.rel (0) target = $region5
  $region4: #{tfeita_forward.1} parent=0 // pred_region
    _
  $region5: #{tfeita_forward.1} parent=0 // pred_fallthru
    _
  // Predicated region
  $region6: #{tfeita_forward.1} parent=0 // pred_check
    _
  $region7: #{tfeita_forward.1} parent=0 // pred_check_branch
    %13 = sbr.rel (0) target = $region9
  $region8: #{tfeita_forward.1} parent=0 // pred_region
    _
  $region9: #{tfeita_forward.1} parent=0 // pred_fallthru
    _
  // Predicated region
  $region10: #{tfeita_forward.1} parent=0 // pred_check
    _
  $region11: #{tfeita_forward.1} parent=0 // pred_check_branch
    %15 = sbr.rel (0) target = $region13
  $region12: #{tfeita_forward.1} parent=0 // pred_region
    _
  $region13: #{tfeita_forward.1} parent=0 // pred_fallthru
    _
  // Predicated region
  $region14: #{tfeita_forward.1} parent=0 // pred_check
    _
  $region15: #{tfeita_forward.1} parent=0 // pred_check_branch
    %17 = sbr.rel (0) target = $region17
  $region16: #{tfeita_forward.1} parent=0 // pred_region
    _
  $region17: #{tfeita_forward.1} parent=0 // pred_fallthru
    _
  // Predicated region
  $region18: #{tfeita_forward.1} parent=0 // pred_check
    _
  $region19: #{tfeita_forward.1} parent=0 // pred_check_branch
    %19 = sbr.rel (0) target = $region21
  $region20: #{tfeita_forward.1} parent=0 // pred_region
    _
  $region21: #{tfeita_forward.1} parent=0 // pred_fallthru
    _
  %v20 = vld [vmem:[%s0] sm:$0xff]
  %v21 = vld [vmem:[%s0 + $0x8] sm:$0xff]
  %v22 = vld [vmem:[%s0 + $0x10] sm:$0xff]
  %v23 = vld [vmem:[%s0 + $0x18] sm:$0xff]
  %v24 = vld [vmem:[%s3] sm:$0xff]
  %v25 = vld [vmem:[%s4] sm:$0x1]
  %v26 = vperm.slane %v25, 0
  %vm27 = vcmask 64512
  %v29 = vsel %vm27, %v20, 0
  %v32 = vsel %vm27, %v21, 0
  %v35 = vsel %vm27, %v22, 0
  %v38 = vsel %vm27, %v23, 0
  %40 = vmatpush.msra.mxu0 0.0
  %41 = vmatpush.msra.mxu0 0.0
  %42 = vmatpush.msra.mxu0 0.0
  %43 = vmatpush.msra.mxu0 0.0
  %44 = vmatpush.msra.mxu0 0.0
  %45 = vmatpush.msra.mxu0 0.0
  %46 = vmatpush.msra.mxu0 0.0
  %47 = vmatpush.msra.mxu0 0.0
  %48 = vmatpush.msra.mxu0 0.0
  %49 = vmatpush.msra.mxu0 0.0
  %50 = vmatpush.msra.mxu0 0.0
  %51 = vmatpush.msra.mxu0 0.0
  %52 = vmatpush.msra.mxu0 0.0
  %53 = vmatpush.msra.mxu0 0.0
  %54 = vmatpush.msra.mxu0 0.0
  %55 = vmatpush.msra.mxu0 %v24
  %56 = vmatmul.f32.gmra.mxu0 %v29
  %v57 = vpop.f32.mrf.mxu0
  %v58 = vadd.f32 %v26, %v57
  %59 = vmatmul.f32.gmra.mxu0 %v32
  %v60 = vpop.f32.mrf.mxu0
  %v61 = vadd.f32 %v26, %v60
  %62 = vmatmul.f32.gmra.mxu0 %v35
  %v63 = vpop.f32.mrf.mxu0
  %v64 = vadd.f32 %v26, %v63
  %65 = vmatmul.f32.gmra.mxu0 %v38
  %v66 = vpop.f32.mrf.mxu0
  %v67 = vadd.f32 %v26, %v66
  %68 = vdwg.mxu0
  %v69 = vld [vmem:[%s4 + $0x1] sm:$0x1]
  %v70 = vld [vmem:[%s4 + $0x2] sm:$0x1]
  %vm71 = vcmask 261120
  %v72 = vsel %vm71, %v58, 0.0
  %73 = vadd.xlane.f32.xlu0 %v72
  %v74 = vpop.xlane.xlu0 %73
  %v75 = vsel %vm71, %v61, 0.0
  %76 = vadd.xlane.f32.xlu0 %v75
  %v77 = vpop.xlane.xlu0 %76
  %v78 = vsel %vm71, %v64, 0.0
  %79 = vadd.xlane.f32.xlu0 %v78
  %v80 = vpop.xlane.xlu0 %79
  %v81 = vsel %vm71, %v67, 0.0
  %82 = vadd.xlane.f32.xlu0 %v81
  %v83 = vpop.xlane.xlu0 %82
  %v84 = vrcp.pop 32.0
  %v85 = vmul.f32 32.0, %v84
  %v86 = vsub.f32 1.0, %v85
  %v87 = vmul.f32 %v84, %v86
  %v88 = vadd.f32 %v84, %v87
  %vm89 = vweird.f32 %v84
  %v90 = vsel %vm89, %v84, %v88
  %v91 = vmul.f32 %v74, %v90
  %v92 = vmul.f32 %v77, %v90
  %v93 = vmul.f32 %v80, %v90
  %v94 = vmul.f32 %v83, %v90
  %v95 = vsub.f32 %v58, %v91
  %v96 = vsub.f32 %v61, %v92
  %v97 = vsub.f32 %v64, %v93
  %v98 = vsub.f32 %v67, %v94
  %v99 = vmul.f32 %v95, %v95
  %v100 = vmul.f32 %v96, %v96
  %v101 = vmul.f32 %v97, %v97
  %v102 = vmul.f32 %v98, %v98
  %v103 = vsel %vm71, %v99, 0.0
  %104 = vadd.xlane.f32.xlu0 %v103
  %v105 = vpop.xlane.xlu0 %104
  %v106 = vsel %vm71, %v100, 0.0
  %107 = vadd.xlane.f32.xlu0 %v106
  %v108 = vpop.xlane.xlu0 %107
  %v109 = vsel %vm71, %v101, 0.0
  %110 = vadd.xlane.f32.xlu0 %v109
  %v111 = vpop.xlane.xlu0 %110
  %v112 = vsel %vm71, %v102, 0.0
  %113 = vadd.xlane.f32.xlu0 %v112
  %v114 = vpop.xlane.xlu0 %113
  %v115 = vmul.f32 %v105, %v90
  %v116 = vmul.f32 %v108, %v90
  %v117 = vmul.f32 %v111, %v90
  %v118 = vmul.f32 %v114, %v90
  %v119 = vadd.f32 %v115, 1e-05
  %v120 = vadd.f32 %v116, 1e-05
  %v121 = vadd.f32 %v117, 1e-05
  %v122 = vadd.f32 %v118, 1e-05
  %v123 = vrsqrt.pop %v119
  %v124 = vmul.f32 %v123, %v119
  %v125 = vmul.f32 %v124, %v123
  %v126 = vmul.f32 0.5, %v125
  %v127 = vsub.f32 1.5, %v126
  %v128 = vmul.f32 %v123, %v127
  %vm129 = vweird.f32 %v119
  %vm130 = vweird.f32 %v123
  %vm131 = vmor %vm129, %vm130
  %v132 = vsel %vm131, %v123, %v128
  %v133 = vrsqrt.pop %v120
  %v134 = vmul.f32 %v133, %v120
  %v135 = vmul.f32 %v134, %v133
  %v136 = vmul.f32 0.5, %v135
  %v137 = vsub.f32 1.5, %v136
  %v138 = vmul.f32 %v133, %v137
  %vm139 = vweird.f32 %v120
  %vm140 = vweird.f32 %v133
  %vm141 = vmor %vm139, %vm140
  %v142 = vsel %vm141, %v133, %v138
  %v143 = vrsqrt.pop %v121
  %v144 = vmul.f32 %v143, %v121
  %v145 = vmul.f32 %v144, %v143
  %v146 = vmul.f32 0.5, %v145
  %v147 = vsub.f32 1.5, %v146
  %v148 = vmul.f32 %v143, %v147
  %vm149 = vweird.f32 %v121
  %vm150 = vweird.f32 %v143
  %vm151 = vmor %vm149, %vm150
  %v152 = vsel %vm151, %v143, %v148
  %v153 = vrsqrt.pop %v122
  %v154 = vmul.f32 %v153, %v122
  %v155 = vmul.f32 %v154, %v153
  %v156 = vmul.f32 0.5, %v155
  %v157 = vsub.f32 1.5, %v156
  %v158 = vmul.f32 %v153, %v157
  %vm159 = vweird.f32 %v122
  %vm160 = vweird.f32 %v153
  %vm161 = vmor %vm159, %vm160
  %v162 = vsel %vm161, %v153, %v158
  %v163 = vmul.f32 %v95, %v132
  %v164 = vmul.f32 %v96, %v142
  %v165 = vmul.f32 %v97, %v152
  %v166 = vmul.f32 %v98, %v162
  %v167 = vperm.slane %v69, 0
  %v168 = vmul.f32 %v163, %v167
  %v169 = vmul.f32 %v164, %v167
  %v170 = vmul.f32 %v165, %v167
  %v171 = vmul.f32 %v166, %v167
  %v172 = vperm.slane %v70, 0
  %v173 = vadd.f32 %v168, %v172
  %v174 = vadd.f32 %v169, %v172
  %v175 = vadd.f32 %v170, %v172
  %v176 = vadd.f32 %v171, %v172
  %v177 = vmul.f32 %v173, 0.5
  %v178 = vmul.f32 %v174, 0.5
  %v179 = vmul.f32 %v175, 0.5
  %v180 = vmul.f32 %v176, 0.5
  %v181 = vmul.f32 %v173, 0.70710677
  %v182 = vmul.f32 %v174, 0.70710677
  %v183 = vmul.f32 %v175, 0.70710677
  %v184 = vmul.f32 %v176, 0.70710677
  %v185 = vmul.f32 %v181, %v181
  %v186 = vmin.f32 16.0, %v185
  %v187 = vmul.f32 %v186, 2.1237322e-06
  %v188 = vadd.f32 %v187, 0.00028619796
  %v189 = vmul.f32 %v186, %v188
  %v190 = vadd.f32 %v189, 0.0036580483
  %v191 = vmul.f32 %v186, %v190
  %v192 = vadd.f32 %v191, 0.05243302
  %v193 = vmul.f32 %v186, %v192
  %v194 = vadd.f32 %v193, 0.18741608
  %v195 = vmul.f32 %v186, %v194
  %v196 = vadd.f32 %v195, 1.1283791
  %v197 = vmul.f32 %v181, %v196
  %v198 = vmul.f32 %v186, 3.8918573e-05
  %v199 = vadd.f32 %v198, 0.001143296
  %v200 = vmul.f32 %v186, %v199
  %v201 = vadd.f32 %v200, 0.014752088
  %v202 = vmul.f32 %v186, %v201
  %v203 = vadd.f32 %v202, 0.112945676
  %v204 = vmul.f32 %v186, %v203
  %v205 = vadd.f32 %v204, 0.4994258
  %v206 = vmul.f32 %v186, %v205
  %v207 = vadd.f32 %v206, 1.0
  %v208 = vrcp.pop %v207
  %v209 = vmul.f32 %v207, %v208
  %v210 = vsub.f32 1.0, %v209
  %v211 = vmul.f32 %v208, %v210
  %v212 = vadd.f32 %v208, %v211
  %vm213 = vweird.f32 %v207
  %vm214 = vweird.f32 %v208
  %vm215 = vmor %vm213, %vm214
  %v216 = vsel %vm215, %v208, %v212
  %v217 = vand.u32 2147483647, %v207
  %vm218 = vcmp.eq.f32.partialorder %v217, 8.507059e+37
  %v219 = vand.u32 %v207, 2147483648
  %v220 = vor.u32 1.1754944e-38, %v219
  %v221 = vsel %vm218, %v220, %v216
  %v222 = vmul.f32 %v197, %v221
  %v223 = vmin.f32 %v222, 1.0
  %v224 = vmax.f32 %v223, -1.0
  %v225 = vmul.f32 %v182, %v182
  %v226 = vmin.f32 16.0, %v225
  %v227 = vmul.f32 %v226, 2.1237322e-06
  %v228 = vadd.f32 %v227, 0.00028619796
  %v229 = vmul.f32 %v226, %v228
  %v230 = vadd.f32 %v229, 0.0036580483
  %v231 = vmul.f32 %v226, %v230
  %v232 = vadd.f32 %v231, 0.05243302
  %v233 = vmul.f32 %v226, %v232
  %v234 = vadd.f32 %v233, 0.18741608
  %v235 = vmul.f32 %v226, %v234
  %v236 = vadd.f32 %v235, 1.1283791
  %v237 = vmul.f32 %v182, %v236
  %v238 = vmul.f32 %v226, 3.8918573e-05
  %v239 = vadd.f32 %v238, 0.001143296
  %v240 = vmul.f32 %v226, %v239
  %v241 = vadd.f32 %v240, 0.014752088
  %v242 = vmul.f32 %v226, %v241
  %v243 = vadd.f32 %v242, 0.112945676
  %v244 = vmul.f32 %v226, %v243
  %v245 = vadd.f32 %v244, 0.4994258
  %v246 = vmul.f32 %v226, %v245
  %v247 = vadd.f32 %v246, 1.0
  %v248 = vrcp.pop %v247
  %v249 = vmul.f32 %v247, %v248
  %v250 = vsub.f32 1.0, %v249
  %v251 = vmul.f32 %v248, %v250
  %v252 = vadd.f32 %v248, %v251
  %vm253 = vweird.f32 %v247
  %vm254 = vweird.f32 %v248
  %vm255 = vmor %vm253, %vm254
  %v256 = vsel %vm255, %v248, %v252
  %v257 = vand.u32 2147483647, %v247
  %vm258 = vcmp.eq.f32.partialorder %v257, 8.507059e+37
  %v259 = vand.u32 %v247, 2147483648
  %v260 = vor.u32 1.1754944e-38, %v259
  %v261 = vsel %vm258, %v260, %v256
  %v262 = vmul.f32 %v237, %v261
  %v263 = vmin.f32 %v262, 1.0
  %v264 = vmax.f32 %v263, -1.0
  %v265 = vmul.f32 %v183, %v183
  %v266 = vmin.f32 16.0, %v265
  %v267 = vmul.f32 %v266, 2.1237322e-06
  %v268 = vadd.f32 %v267, 0.00028619796
  %v269 = vmul.f32 %v266, %v268
  %v270 = vadd.f32 %v269, 0.0036580483
  %v271 = vmul.f32 %v266, %v270
  %v272 = vadd.f32 %v271, 0.05243302
  %v273 = vmul.f32 %v266, %v272
  %v274 = vadd.f32 %v273, 0.18741608
  %v275 = vmul.f32 %v266, %v274
  %v276 = vadd.f32 %v275, 1.1283791
  %v277 = vmul.f32 %v183, %v276
  %v278 = vmul.f32 %v266, 3.8918573e-05
  %v279 = vadd.f32 %v278, 0.001143296
  %v280 = vmul.f32 %v266, %v279
  %v281 = vadd.f32 %v280, 0.014752088
  %v282 = vmul.f32 %v266, %v281
  %v283 = vadd.f32 %v282, 0.112945676
  %v284 = vmul.f32 %v266, %v283
  %v285 = vadd.f32 %v284, 0.4994258
  %v286 = vmul.f32 %v266, %v285
  %v287 = vadd.f32 %v286, 1.0
  %v288 = vrcp.pop %v287
  %v289 = vmul.f32 %v287, %v288
  %v290 = vsub.f32 1.0, %v289
  %v291 = vmul.f32 %v288, %v290
  %v292 = vadd.f32 %v288, %v291
  %vm293 = vweird.f32 %v287
  %vm294 = vweird.f32 %v288
  %vm295 = vmor %vm293, %vm294
  %v296 = vsel %vm295, %v288, %v292
  %v297 = vand.u32 2147483647, %v287
  %vm298 = vcmp.eq.f32.partialorder %v297, 8.507059e+37
  %v299 = vand.u32 %v287, 2147483648
  %v300 = vor.u32 1.1754944e-38, %v299
  %v301 = vsel %vm298, %v300, %v296
  %v302 = vmul.f32 %v277, %v301
  %v303 = vmin.f32 %v302, 1.0
  %v304 = vmax.f32 %v303, -1.0
  %v305 = vmul.f32 %v184, %v184
  %v306 = vmin.f32 16.0, %v305
  %v307 = vmul.f32 %v306, 2.1237322e-06
  %v308 = vadd.f32 %v307, 0.00028619796
  %v309 = vmul.f32 %v306, %v308
  %v310 = vadd.f32 %v309, 0.0036580483
  %v311 = vmul.f32 %v306, %v310
  %v312 = vadd.f32 %v311, 0.05243302
  %v313 = vmul.f32 %v306, %v312
  %v314 = vadd.f32 %v313, 0.18741608
  %v315 = vmul.f32 %v306, %v314
  %v316 = vadd.f32 %v315, 1.1283791
  %v317 = vmul.f32 %v184, %v316
  %v318 = vmul.f32 %v306, 3.8918573e-05
  %v319 = vadd.f32 %v318, 0.001143296
  %v320 = vmul.f32 %v306, %v319
  %v321 = vadd.f32 %v320, 0.014752088
  %v322 = vmul.f32 %v306, %v321
  %v323 = vadd.f32 %v322, 0.112945676
  %v324 = vmul.f32 %v306, %v323
  %v325 = vadd.f32 %v324, 0.4994258
  %v326 = vmul.f32 %v306, %v325
  %v327 = vadd.f32 %v326, 1.0
  %v328 = vrcp.pop %v327
  %v329 = vmul.f32 %v327, %v328
  %v330 = vsub.f32 1.0, %v329
  %v331 = vmul.f32 %v328, %v330
  %v332 = vadd.f32 %v328, %v331
  %vm333 = vweird.f32 %v327
  %vm334 = vweird.f32 %v328
  %vm335 = vmor %vm333, %vm334
  %v336 = vsel %vm335, %v328, %v332
  %v337 = vand.u32 2147483647, %v327
  %vm338 = vcmp.eq.f32.partialorder %v337, 8.507059e+37
  %v339 = vand.u32 %v327, 2147483648
  %v340 = vor.u32 1.1754944e-38, %v339
  %v341 = vsel %vm338, %v340, %v336
  %v342 = vmul.f32 %v317, %v341
  %v343 = vmin.f32 %v342, 1.0
  %v344 = vmax.f32 %v343, -1.0
  %v345 = vadd.f32 %v224, 1.0
  %v346 = vadd.f32 %v264, 1.0
  %v347 = vadd.f32 %v304, 1.0
  %v348 = vadd.f32 %v344, 1.0
  %v349 = vmul.f32 %v177, %v345
  %v350 = vmul.f32 %v178, %v346
  %v351 = vmul.f32 %v179, %v347
  %v352 = vmul.f32 %v180, %v348
  %v353 = vld [vmem:[%s1] sm:$0xff]
  %v354 = vld [vmem:[%s1 + $0x8] sm:$0xff]
  %v355 = vld [vmem:[%s1 + $0x10] sm:$0xff]
  %v356 = vld [vmem:[%s1 + $0x18] sm:$0xff]
  %v357 = vld [vmem:[%s3 + $0x8] sm:$0xff]
  %v358 = vld [vmem:[%s3 + $0x10] sm:$0xff]
  %v359 = vld [vmem:[%s3 + $0x18] sm:$0xff]
  %v360 = vld [vmem:[%s3 + $0x20] sm:$0xff]
  %v361 = vld [vmem:[%s3 + $0x48] sm:$0xff]
  %v362 = vld [vmem:[%s3 + $0x50] sm:$0xff]
  %v363 = vld [vmem:[%s3 + $0x58] sm:$0xff]
  %v364 = vld [vmem:[%s3 + $0x60] sm:$0xff]
  %v365 = vld [vmem:[%s3 + $0x68] sm:$0xff]
  %v366 = vld [vmem:[%s3 + $0x70] sm:$0xff]
  %v367 = vld [vmem:[%s3 + $0x78] sm:$0xff]
  %v368 = vld [vmem:[%s3 + $0x80] sm:$0xff]
  %v369 = vld [vmem:[%s3 + $0x88] sm:$0xff]
  %v370 = vld [vmem:[%s3 + $0x90] sm:$0xff]
  %v371 = vld [vmem:[%s3 + $0x98] sm:$0xff]
  %v372 = vld [vmem:[%s3 + $0xa0] sm:$0xff]
  %v373 = vld [vmem:[%s4 + $0x3] sm:$0x1]
  %v374 = vld [vmem:[%s4 + $0x4] sm:$0x1]
  %v375 = vld [vmem:[%s4 + $0x5] sm:$0x1]
  %v376 = vld [vmem:[%s4 + $0x6] sm:$0x1]
  %v377 = vld [vmem:[%s4 + $0x7] sm:$0x1]
  %v378 = vld [vmem:[%s4 + $0x8] sm:$0x1]
  %v379 = vld [vmem:[%s4 + $0x9] sm:$0x1]
  %v380 = vld [vmem:[%s4 + $0xa] sm:$0x1]
  %v381 = vperm.slane %v373, 0
  %v383 = vsel %vm71, %v349, 0
  %v386 = vsel %vm71, %v350, 0
  %v389 = vsel %vm71, %v351, 0
  %v392 = vsel %vm71, %v352, 0
  %394 = vmatpush.msra.mxu0 0.0
  %395 = vmatpush.msra.mxu0 0.0
  %396 = vmatpush.msra.mxu0 0.0
  %397 = vmatpush.msra.mxu0 0.0
  %398 = vmatpush.msra.mxu0 0.0
  %399 = vmatpush.msra.mxu0 0.0
  %400 = vmatpush.msra.mxu0 0.0
  %401 = vmatpush.msra.mxu0 0.0
  %402 = vmatpush.msra.mxu0 0.0
  %403 = vmatpush.msra.mxu0 0.0
  %404 = vmatpush.msra.mxu0 0.0
  %405 = vmatpush.msra.mxu0 0.0
  %406 = vmatpush.msra.mxu0 %v360
  %407 = vmatpush.msra.mxu0 %v359
  %408 = vmatpush.msra.mxu0 %v358
  %409 = vmatpush.msra.mxu0 %v357
  %410 = vmatmul.f32.gmra.mxu0 %v383
  %v411 = vpop.f32.mrf.mxu0
  %v412 = vadd.f32 %v381, %v411
  %413 = vmatmul.f32.gmra.mxu0 %v386
  %v414 = vpop.f32.mrf.mxu0
  %v415 = vadd.f32 %v381, %v414
  %416 = vmatmul.f32.gmra.mxu0 %v389
  %v417 = vpop.f32.mrf.mxu0
  %v418 = vadd.f32 %v381, %v417
  %419 = vmatmul.f32.gmra.mxu0 %v392
  %v420 = vpop.f32.mrf.mxu0
  %v421 = vadd.f32 %v381, %v420
  %422 = vdwg.mxu0
  %427 = vrot.lane.b32.xlu0 %v412, 96
  %v428 = vpop.permute.xlu0 %427
  %429 = vrot.lane.b32.xlu0 %v415, 96
  %v430 = vpop.permute.xlu0 %429
  %431 = vrot.lane.b32.xlu0 %v418, 96
  %v432 = vpop.permute.xlu0 %431
  %433 = vrot.lane.b32.xlu0 %v421, 96
  %v434 = vpop.permute.xlu0 %433
  %v435 = vsel %vm27, %v412, 0
  %v437 = vsel %vm27, %v415, 0
  %v439 = vsel %vm27, %v418, 0
  %v441 = vsel %vm27, %v421, 0
  %v443 = vsel %vm27, %v428, 0
  %v445 = vsel %vm27, %v430, 0
  %v447 = vsel %vm27, %v432, 0
  %v449 = vsel %vm27, %v434, 0
  %451 = vmatpush.xpose.msra.mxu0 0.0
  %452 = vmatpush.xpose.msra.mxu0 0.0
  %453 = vmatpush.xpose.msra.mxu0 0.0
  %454 = vmatpush.xpose.msra.mxu0 0.0
  %455 = vmatpush.xpose.msra.mxu0 0.0
  %456 = vmatpush.xpose.msra.mxu0 0.0
  %457 = vmatpush.xpose.msra.mxu0 0.0
  %458 = vmatpush.xpose.msra.mxu0 0.0
  %459 = vmatpush.xpose.msra.mxu0 0.0
  %460 = vmatpush.xpose.msra.mxu0 0.0
  %461 = vmatpush.xpose.msra.mxu0 0.0
  %462 = vmatpush.xpose.msra.mxu0 0.0
  %463 = vmatpush.xpose.msra.mxu0 %v449
  %464 = vmatpush.xpose.msra.mxu0 %v447
  %465 = vmatpush.xpose.msra.mxu0 %v445
  %466 = vmatpush.xpose.msra.mxu0 %v443
  %467 = vmatmul.f32.gmra.mxu0 %v435
  %v468 = vpop.f32.mrf.mxu0
  %v469 = vadd.f32 0.0, %v468
  %470 = vmatmul.f32.gmra.mxu0 %v437
  %v471 = vpop.f32.mrf.mxu0
  %v472 = vadd.f32 0.0, %v471
  %473 = vmatmul.f32.gmra.mxu0 %v439
  %v474 = vpop.f32.mrf.mxu0
  %v475 = vadd.f32 0.0, %v474
  %476 = vmatmul.f32.gmra.mxu0 %v441
  %v477 = vpop.f32.mrf.mxu0
  %v478 = vadd.f32 0.0, %v477
  %479 = vdwg.mxu0
  %v480 = vmul.f32 %v469, 0.35355338
  %v481 = vmul.f32 %v472, 0.35355338
  %v482 = vmul.f32 %v475, 0.35355338
  %v483 = vmul.f32 %v478, 0.35355338
  %v484 = vadd.f32 %v480, %v353
  %v485 = vadd.f32 %v481, %v354
  %v486 = vadd.f32 %v482, %v355
  %v487 = vadd.f32 %v483, %v356
  %v488 = vsel %vm71, %v484, -inf
  %489 = vmax.xlane.f32.xlu0 %v488
  %v490 = vpop.xlane.xlu0 %489
  %v491 = vsel %vm71, %v485, -inf
  %492 = vmax.xlane.f32.xlu0 %v491
  %v493 = vpop.xlane.xlu0 %492
  %v494 = vsel %vm71, %v486, -inf
  %495 = vmax.xlane.f32.xlu0 %v494
  %v496 = vpop.xlane.xlu0 %495
  %v497 = vsel %vm71, %v487, -inf
  %498 = vmax.xlane.f32.xlu0 %v497
  %v499 = vpop.xlane.xlu0 %498
  %v500 = vsub.f32 %v484, %v490
  %v501 = vsub.f32 %v485, %v493
  %v502 = vsub.f32 %v486, %v496
  %v503 = vsub.f32 %v487, %v499
  %v504 = vmul.f32 %v500, 1.442695
  %v505 = vpow.pop %v504
  %v506 = vmul.f32 %v501, 1.442695
  %v507 = vpow.pop %v506
  %v508 = vmul.f32 %v502, 1.442695
  %v509 = vpow.pop %v508
  %v510 = vmul.f32 %v503, 1.442695
  %v511 = vpow.pop %v510
  %v512 = vsel %vm71, %v505, 0.0
  %513 = vadd.xlane.f32.xlu0 %v512
  %v514 = vpop.xlane.xlu0 %513
  %v515 = vsel %vm71, %v507, 0.0
  %516 = vadd.xlane.f32.xlu0 %v515
  %v517 = vpop.xlane.xlu0 %516
  %v518 = vsel %vm71, %v509, 0.0
  %519 = vadd.xlane.f32.xlu0 %v518
  %v520 = vpop.xlane.xlu0 %519
  %v521 = vsel %vm71, %v511, 0.0
  %522 = vadd.xlane.f32.xlu0 %v521
  %v523 = vpop.xlane.xlu0 %522
  %v524 = vrcp.pop %v514
  %v525 = vrcp.pop %v517
  %v526 = vrcp.pop %v520
  %v527 = vrcp.pop %v523
  %v528 = vmul.f32 %v505, %v524
  %v529 = vmul.f32 %v507, %v525
  %v530 = vmul.f32 %v509, %v526
  %v531 = vmul.f32 %v511, %v527
  %532 = vrot.lane.b32.xlu0 %v412, 64
  %v533 = vpop.permute.xlu0 %532
  %534 = vrot.lane.b32.xlu0 %v415, 64
  %v535 = vpop.permute.xlu0 %534
  %536 = vrot.lane.b32.xlu0 %v418, 64
  %v537 = vpop.permute.xlu0 %536
  %538 = vrot.lane.b32.xlu0 %v421, 64
  %v539 = vpop.permute.xlu0 %538
  %v545 = vsel %vm71, %v528, 0
  %v548 = vsel %vm71, %v529, 0
  %v551 = vsel %vm71, %v530, 0
  %v554 = vsel %vm71, %v531, 0
  %556 = vmatpush.msra.mxu0 0.0
  %557 = vmatpush.msra.mxu0 0.0
  %558 = vmatpush.msra.mxu0 0.0
  %559 = vmatpush.msra.mxu0 0.0
  %560 = vmatpush.msra.mxu0 0.0
  %561 = vmatpush.msra.mxu0 0.0
  %562 = vmatpush.msra.mxu0 0.0
  %563 = vmatpush.msra.mxu0 0.0
  %564 = vmatpush.msra.mxu0 0.0
  %565 = vmatpush.msra.mxu0 0.0
  %566 = vmatpush.msra.mxu0 0.0
  %567 = vmatpush.msra.mxu0 0.0
  %568 = vmatpush.msra.mxu0 %v539
  %569 = vmatpush.msra.mxu0 %v537
  %570 = vmatpush.msra.mxu0 %v535
  %571 = vmatpush.msra.mxu0 %v533
  %572 = vmatmul.f32.gmra.mxu0 %v545
  %v573 = vpop.f32.mrf.mxu0
  %v574 = vadd.f32 0.0, %v573
  %575 = vmatmul.f32.gmra.mxu0 %v548
  %v576 = vpop.f32.mrf.mxu0
  %v577 = vadd.f32 0.0, %v576
  %578 = vmatmul.f32.gmra.mxu0 %v551
  %v579 = vpop.f32.mrf.mxu0
  %v580 = vadd.f32 0.0, %v579
  %581 = vmatmul.f32.gmra.mxu0 %v554
  %v582 = vpop.f32.mrf.mxu0
  %v583 = vadd.f32 0.0, %v582
  %584 = vdwg.mxu0
  %v585 = vld [vmem:[%s3 + $0x28] sm:$0xff]
  %586 = vrot.lane.b32.xlu0 %v412, 120
  %v587 = vpop.permute.xlu0 %586
  %588 = vrot.lane.b32.xlu0 %v415, 120
  %v589 = vpop.permute.xlu0 %588
  %590 = vrot.lane.b32.xlu0 %v418, 120
  %v591 = vpop.permute.xlu0 %590
  %592 = vrot.lane.b32.xlu0 %v421, 120
  %v593 = vpop.permute.xlu0 %592
  %594 = vrot.lane.b32.xlu0 %v412, 88
  %v595 = vpop.permute.xlu0 %594
  %596 = vrot.lane.b32.xlu0 %v415, 88
  %v597 = vpop.permute.xlu0 %596
  %598 = vrot.lane.b32.xlu0 %v418, 88
  %v599 = vpop.permute.xlu0 %598
  %600 = vrot.lane.b32.xlu0 %v421, 88
  %v601 = vpop.permute.xlu0 %600
  %v602 = vsel %vm27, %v587, 0
  %v604 = vsel %vm27, %v589, 0
  %v606 = vsel %vm27, %v591, 0
  %v608 = vsel %vm27, %v593, 0
  %v610 = vsel %vm27, %v595, 0
  %v612 = vsel %vm27, %v597, 0
  %v614 = vsel %vm27, %v599, 0
  %v616 = vsel %vm27, %v601, 0
  %618 = vmatpush.xpose.msra.mxu0 0.0
  %619 = vmatpush.xpose.msra.mxu0 0.0
  %620 = vmatpush.xpose.msra.mxu0 0.0
  %621 = vmatpush.xpose.msra.mxu0 0.0
  %622 = vmatpush.xpose.msra.mxu0 0.0
  %623 = vmatpush.xpose.msra.mxu0 0.0
  %624 = vmatpush.xpose.msra.mxu0 0.0
  %625 = vmatpush.xpose.msra.mxu0 0.0
  %626 = vmatpush.xpose.msra.mxu0 0.0
  %627 = vmatpush.xpose.msra.mxu0 0.0
  %628 = vmatpush.xpose.msra.mxu0 0.0
  %629 = vmatpush.xpose.msra.mxu0 0.0
  %630 = vmatpush.xpose.msra.mxu0 %v616
  %631 = vmatpush.xpose.msra.mxu0 %v614
  %632 = vmatpush.xpose.msra.mxu0 %v612
  %633 = vmatpush.xpose.msra.mxu0 %v610
  %634 = vmatmul.f32.gmra.mxu0 %v602
  %v635 = vpop.f32.mrf.mxu0
  %v636 = vadd.f32 0.0, %v635
  %637 = vmatmul.f32.gmra.mxu0 %v604
  %v638 = vpop.f32.mrf.mxu0
  %v639 = vadd.f32 0.0, %v638
  %640 = vmatmul.f32.gmra.mxu0 %v606
  %v641 = vpop.f32.mrf.mxu0
  %v642 = vadd.f32 0.0, %v641
  %643 = vmatmul.f32.gmra.mxu0 %v608
  %v644 = vpop.f32.mrf.mxu0
  %v645 = vadd.f32 0.0, %v644
  %646 = vdwg.mxu0
  %v647 = vmul.f32 %v636, 0.35355338
  %v648 = vmul.f32 %v639, 0.35355338
  %v649 = vmul.f32 %v642, 0.35355338
  %v650 = vmul.f32 %v645, 0.35355338
  %v651 = vadd.f32 %v647, %v353
  %v652 = vadd.f32 %v648, %v354
  %v653 = vadd.f32 %v649, %v355
  %v654 = vadd.f32 %v650, %v356
  %v655 = vsel %vm71, %v651, -inf
  %656 = vmax.xlane.f32.xlu0 %v655
  %v657 = vpop.xlane.xlu0 %656
  %v658 = vsel %vm71, %v652, -inf
  %659 = vmax.xlane.f32.xlu0 %v658
  %v660 = vpop.xlane.xlu0 %659
  %v661 = vsel %vm71, %v653, -inf
  %662 = vmax.xlane.f32.xlu0 %v661
  %v663 = vpop.xlane.xlu0 %662
  %v664 = vsel %vm71, %v654, -inf
  %665 = vmax.xlane.f32.xlu0 %v664
  %v666 = vpop.xlane.xlu0 %665
  %v667 = vsub.f32 %v651, %v657
  %v668 = vsub.f32 %v652, %v660
  %v669 = vsub.f32 %v653, %v663
  %v670 = vsub.f32 %v654, %v666
  %v671 = vmul.f32 %v667, 1.442695
  %v672 = vpow.pop %v671
  %v673 = vmul.f32 %v668, 1.442695
  %v674 = vpow.pop %v673
  %v675 = vmul.f32 %v669, 1.442695
  %v676 = vpow.pop %v675
  %v677 = vmul.f32 %v670, 1.442695
  %v678 = vpow.pop %v677
  %v679 = vsel %vm71, %v672, 0.0
  %680 = vadd.xlane.f32.xlu0 %v679
  %v681 = vpop.xlane.xlu0 %680
  %v682 = vsel %vm71, %v674, 0.0
  %683 = vadd.xlane.f32.xlu0 %v682
  %v684 = vpop.xlane.xlu0 %683
  %v685 = vsel %vm71, %v676, 0.0
  %686 = vadd.xlane.f32.xlu0 %v685
  %v687 = vpop.xlane.xlu0 %686
  %v688 = vsel %vm71, %v678, 0.0
  %689 = vadd.xlane.f32.xlu0 %v688
  %v690 = vpop.xlane.xlu0 %689
  %v691 = vrcp.pop %v681
  %v692 = vrcp.pop %v684
  %v693 = vrcp.pop %v687
  %v694 = vrcp.pop %v690
  %v695 = vmul.f32 %v672, %v691
  %v696 = vmul.f32 %v674, %v692
  %v697 = vmul.f32 %v676, %v693
  %v698 = vmul.f32 %v678, %v694
  %699 = vrot.lane.b32.xlu0 %v412, 56
  %v700 = vpop.permute.xlu0 %699
  %701 = vrot.lane.b32.xlu0 %v415, 56
  %v702 = vpop.permute.xlu0 %701
  %703 = vrot.lane.b32.xlu0 %v418, 56
  %v704 = vpop.permute.xlu0 %703
  %705 = vrot.lane.b32.xlu0 %v421, 56
  %v706 = vpop.permute.xlu0 %705
  %v712 = vsel %vm71, %v695, 0
  %v715 = vsel %vm71, %v696, 0
  %v718 = vsel %vm71, %v697, 0
  %v721 = vsel %vm71, %v698, 0
  %723 = vmatpush.msra.mxu0 0.0
  %724 = vmatpush.msra.mxu0 0.0
  %725 = vmatpush.msra.mxu0 0.0
  %726 = vmatpush.msra.mxu0 0.0
  %727 = vmatpush.msra.mxu0 0.0
  %728 = vmatpush.msra.mxu0 0.0
  %729 = vmatpush.msra.mxu0 0.0
  %730 = vmatpush.msra.mxu0 0.0
  %731 = vmatpush.msra.mxu0 0.0
  %732 = vmatpush.msra.mxu0 0.0
  %733 = vmatpush.msra.mxu0 0.0
  %734 = vmatpush.msra.mxu0 0.0
  %735 = vmatpush.msra.mxu0 %v706
  %736 = vmatpush.msra.mxu0 %v704
  %737 = vmatpush.msra.mxu0 %v702
  %738 = vmatpush.msra.mxu0 %v700
  %739 = vmatmul.f32.gmra.mxu0 %v712
  %v740 = vpop.f32.mrf.mxu0
  %v741 = vadd.f32 0.0, %v740
  %742 = vmatmul.f32.gmra.mxu0 %v715
  %v743 = vpop.f32.mrf.mxu0
  %v744 = vadd.f32 0.0, %v743
  %745 = vmatmul.f32.gmra.mxu0 %v718
  %v746 = vpop.f32.mrf.mxu0
  %v747 = vadd.f32 0.0, %v746
  %748 = vmatmul.f32.gmra.mxu0 %v721
  %v749 = vpop.f32.mrf.mxu0
  %v750 = vadd.f32 0.0, %v749
  %751 = vdwg.mxu0
  %v752 = vld [vmem:[%s3 + $0x30] sm:$0xff]
  %v754 = vsel %vm27, %v741, 0
  %v757 = vsel %vm27, %v744, 0
  %v760 = vsel %vm27, %v747, 0
  %v763 = vsel %vm27, %v750, 0
  %765 = vmatpush.msra.mxu0 0.0
  %766 = vmatpush.msra.mxu0 0.0
  %767 = vmatpush.msra.mxu0 0.0
  %768 = vmatpush.msra.mxu0 0.0
  %769 = vmatpush.msra.mxu0 0.0
  %770 = vmatpush.msra.mxu0 0.0
  %771 = vmatpush.msra.mxu0 0.0
  %772 = vmatpush.msra.mxu0 0.0
  %773 = vmatpush.msra.mxu0 0.0
  %774 = vmatpush.msra.mxu0 0.0
  %775 = vmatpush.msra.mxu0 0.0
  %776 = vmatpush.msra.mxu0 0.0
  %777 = vmatpush.msra.mxu0 0.0
  %778 = vmatpush.msra.mxu0 0.0
  %779 = vmatpush.msra.mxu0 0.0
  %780 = vmatpush.msra.mxu0 %v752
  %781 = vmatmul.f32.gmra.mxu0 %v754
  %v782 = vpop.f32.mrf.mxu0
  %v783 = vadd.f32 0.0, %v782
  %784 = vmatmul.f32.gmra.mxu0 %v757
  %v785 = vpop.f32.mrf.mxu0
  %v786 = vadd.f32 0.0, %v785
  %787 = vmatmul.f32.gmra.mxu0 %v760
  %v788 = vpop.f32.mrf.mxu0
  %v789 = vadd.f32 0.0, %v788
  %790 = vmatmul.f32.gmra.mxu0 %v763
  %v791 = vpop.f32.mrf.mxu0
  %v792 = vadd.f32 0.0, %v791
  %793 = vdwg.mxu0
  %v795 = vsel %vm27, %v574, 0
  %v798 = vsel %vm27, %v577, 0
  %v801 = vsel %vm27, %v580, 0
  %v804 = vsel %vm27, %v583, 0
  %806 = vmatpush.msra.mxu0 0.0
  %807 = vmatpush.msra.mxu0 0.0
  %808 = vmatpush.msra.mxu0 0.0
  %809 = vmatpush.msra.mxu0 0.0
  %810 = vmatpush.msra.mxu0 0.0
  %811 = vmatpush.msra.mxu0 0.0
  %812 = vmatpush.msra.mxu0 0.0
  %813 = vmatpush.msra.mxu0 0.0
  %814 = vmatpush.msra.mxu0 0.0
  %815 = vmatpush.msra.mxu0 0.0
  %816 = vmatpush.msra.mxu0 0.0
  %817 = vmatpush.msra.mxu0 0.0
  %818 = vmatpush.msra.mxu0 0.0
  %819 = vmatpush.msra.mxu0 0.0
  %820 = vmatpush.msra.mxu0 0.0
  %821 = vmatpush.msra.mxu0 %v585
  %822 = vmatmul.f32.gmra.mxu0 %v795
  %v823 = vpop.f32.mrf.mxu0
  %v824 = vadd.f32 %v783, %v823
  %825 = vmatmul.f32.gmra.mxu0 %v798
  %v826 = vpop.f32.mrf.mxu0
  %v827 = vadd.f32 %v786, %v826
  %828 = vmatmul.f32.gmra.mxu0 %v801
  %v829 = vpop.f32.mrf.mxu0
  %v830 = vadd.f32 %v789, %v829
  %831 = vmatmul.f32.gmra.mxu0 %v804
  %v832 = vpop.f32.mrf.mxu0
  %v833 = vadd.f32 %v792, %v832
  %834 = vdwg.mxu0
  %835 = vrot.lane.b32.xlu0 %v412, 112
  %v836 = vpop.permute.xlu0 %835
  %837 = vrot.lane.b32.xlu0 %v415, 112
  %v838 = vpop.permute.xlu0 %837
  %839 = vrot.lane.b32.xlu0 %v418, 112
  %v840 = vpop.permute.xlu0 %839
  %841 = vrot.lane.b32.xlu0 %v421, 112
  %v842 = vpop.permute.xlu0 %841
  %843 = vrot.lane.b32.xlu0 %v412, 80
  %v844 = vpop.permute.xlu0 %843
  %845 = vrot.lane.b32.xlu0 %v415, 80
  %v846 = vpop.permute.xlu0 %845
  %847 = vrot.lane.b32.xlu0 %v418, 80
  %v848 = vpop.permute.xlu0 %847
  %849 = vrot.lane.b32.xlu0 %v421, 80
  %v850 = vpop.permute.xlu0 %849
  %v851 = vsel %vm27, %v836, 0
  %v853 = vsel %vm27, %v838, 0
  %v855 = vsel %vm27, %v840, 0
  %v857 = vsel %vm27, %v842, 0
  %v859 = vsel %vm27, %v844, 0
  %v861 = vsel %vm27, %v846, 0
  %v863 = vsel %vm27, %v848, 0
  %v865 = vsel %vm27, %v850, 0
  %867 = vmatpush.xpose.msra.mxu0 0.0
  %868 = vmatpush.xpose.msra.mxu0 0.0
  %869 = vmatpush.xpose.msra.mxu0 0.0
  %870 = vmatpush.xpose.msra.mxu0 0.0
  %871 = vmatpush.xpose.msra.mxu0 0.0
  %872 = vmatpush.xpose.msra.mxu0 0.0
  %873 = vmatpush.xpose.msra.mxu0 0.0
  %874 = vmatpush.xpose.msra.mxu0 0.0
  %875 = vmatpush.xpose.msra.mxu0 0.0
  %876 = vmatpush.xpose.msra.mxu0 0.0
  %877 = vmatpush.xpose.msra.mxu0 0.0
  %878 = vmatpush.xpose.msra.mxu0 0.0
  %879 = vmatpush.xpose.msra.mxu0 %v865
  %880 = vmatpush.xpose.msra.mxu0 %v863
  %881 = vmatpush.xpose.msra.mxu0 %v861
  %882 = vmatpush.xpose.msra.mxu0 %v859
  %883 = vmatmul.f32.gmra.mxu0 %v851
  %v884 = vpop.f32.mrf.mxu0
  %v885 = vadd.f32 0.0, %v884
  %886 = vmatmul.f32.gmra.mxu0 %v853
  %v887 = vpop.f32.mrf.mxu0
  %v888 = vadd.f32 0.0, %v887
  %889 = vmatmul.f32.gmra.mxu0 %v855
  %v890 = vpop.f32.mrf.mxu0
  %v891 = vadd.f32 0.0, %v890
  %892 = vmatmul.f32.gmra.mxu0 %v857
  %v893 = vpop.f32.mrf.mxu0
  %v894 = vadd.f32 0.0, %v893
  %895 = vdwg.mxu0
  %v896 = vmul.f32 %v885, 0.35355338
  %v897 = vmul.f32 %v888, 0.35355338
  %v898 = vmul.f32 %v891, 0.35355338
  %v899 = vmul.f32 %v894, 0.35355338
  %v900 = vadd.f32 %v896, %v353
  %v901 = vadd.f32 %v897, %v354
  %v902 = vadd.f32 %v898, %v355
  %v903 = vadd.f32 %v899, %v356
  %v904 = vsel %vm71, %v900, -inf
  %905 = vmax.xlane.f32.xlu0 %v904
  %v906 = vpop.xlane.xlu0 %905
  %v907 = vsel %vm71, %v901, -inf
  %908 = vmax.xlane.f32.xlu0 %v907
  %v909 = vpop.xlane.xlu0 %908
  %v910 = vsel %vm71, %v902, -inf
  %911 = vmax.xlane.f32.xlu0 %v910
  %v912 = vpop.xlane.xlu0 %911
  %v913 = vsel %vm71, %v903, -inf
  %914 = vmax.xlane.f32.xlu0 %v913
  %v915 = vpop.xlane.xlu0 %914
  %v916 = vsub.f32 %v900, %v906
  %v917 = vsub.f32 %v901, %v909
  %v918 = vsub.f32 %v902, %v912
  %v919 = vsub.f32 %v903, %v915
  %v920 = vmul.f32 %v916, 1.442695
  %v921 = vpow.pop %v920
  %v922 = vmul.f32 %v917, 1.442695
  %v923 = vpow.pop %v922
  %v924 = vmul.f32 %v918, 1.442695
  %v925 = vpow.pop %v924
  %v926 = vmul.f32 %v919, 1.442695
  %v927 = vpow.pop %v926
  %v928 = vsel %vm71, %v921, 0.0
  %929 = vadd.xlane.f32.xlu0 %v928
  %v930 = vpop.xlane.xlu0 %929
  %v931 = vsel %vm71, %v923, 0.0
  %932 = vadd.xlane.f32.xlu0 %v931
  %v933 = vpop.xlane.xlu0 %932
  %v934 = vsel %vm71, %v925, 0.0
  %935 = vadd.xlane.f32.xlu0 %v934
  %v936 = vpop.xlane.xlu0 %935
  %v937 = vsel %vm71, %v927, 0.0
  %938 = vadd.xlane.f32.xlu0 %v937
  %v939 = vpop.xlane.xlu0 %938
  %v940 = vrcp.pop %v930
  %v941 = vrcp.pop %v933
  %v942 = vrcp.pop %v936
  %v943 = vrcp.pop %v939
  %v944 = vmul.f32 %v921, %v940
  %v945 = vmul.f32 %v923, %v941
  %v946 = vmul.f32 %v925, %v942
  %v947 = vmul.f32 %v927, %v943
  %948 = vrot.lane.b32.xlu0 %v412, 48
  %v949 = vpop.permute.xlu0 %948
  %950 = vrot.lane.b32.xlu0 %v415, 48
  %v951 = vpop.permute.xlu0 %950
  %952 = vrot.lane.b32.xlu0 %v418, 48
  %v953 = vpop.permute.xlu0 %952
  %954 = vrot.lane.b32.xlu0 %v421, 48
  %v955 = vpop.permute.xlu0 %954
  %v961 = vsel %vm71, %v944, 0
  %v964 = vsel %vm71, %v945, 0
  %v967 = vsel %vm71, %v946, 0
  %v970 = vsel %vm71, %v947, 0
  %972 = vmatpush.msra.mxu0 0.0
  %973 = vmatpush.msra.mxu0 0.0
  %974 = vmatpush.msra.mxu0 0.0
  %975 = vmatpush.msra.mxu0 0.0
  %976 = vmatpush.msra.mxu0 0.0
  %977 = vmatpush.msra.mxu0 0.0
  %978 = vmatpush.msra.mxu0 0.0
  %979 = vmatpush.msra.mxu0 0.0
  %980 = vmatpush.msra.mxu0 0.0
  %981 = vmatpush.msra.mxu0 0.0
  %982 = vmatpush.msra.mxu0 0.0
  %983 = vmatpush.msra.mxu0 0.0
  %984 = vmatpush.msra.mxu0 %v955
  %985 = vmatpush.msra.mxu0 %v953
  %986 = vmatpush.msra.mxu0 %v951
  %987 = vmatpush.msra.mxu0 %v949
  %988 = vmatmul.f32.gmra.mxu0 %v961
  %v989 = vpop.f32.mrf.mxu0
  %v990 = vadd.f32 0.0, %v989
  %991 = vmatmul.f32.gmra.mxu0 %v964
  %v992 = vpop.f32.mrf.mxu0
  %v993 = vadd.f32 0.0, %v992
  %994 = vmatmul.f32.gmra.mxu0 %v967
  %v995 = vpop.f32.mrf.mxu0
  %v996 = vadd.f32 0.0, %v995
  %997 = vmatmul.f32.gmra.mxu0 %v970
  %v998 = vpop.f32.mrf.mxu0
  %v999 = vadd.f32 0.0, %v998
  %1000 = vdwg.mxu0
  %v1001 = vld [vmem:[%s3 + $0x38] sm:$0xff]
  %v1003 = vsel %vm27, %v990, 0
  %v1006 = vsel %vm27, %v993, 0
  %v1009 = vsel %vm27, %v996, 0
  %v1012 = vsel %vm27, %v999, 0
  %1014 = vmatpush.msra.mxu0 0.0
  %1015 = vmatpush.msra.mxu0 0.0
  %1016 = vmatpush.msra.mxu0 0.0
  %1017 = vmatpush.msra.mxu0 0.0
  %1018 = vmatpush.msra.mxu0 0.0
  %1019 = vmatpush.msra.mxu0 0.0
  %1020 = vmatpush.msra.mxu0 0.0
  %1021 = vmatpush.msra.mxu0 0.0
  %1022 = vmatpush.msra.mxu0 0.0
  %1023 = vmatpush.msra.mxu0 0.0
  %1024 = vmatpush.msra.mxu0 0.0
  %1025 = vmatpush.msra.mxu0 0.0
  %1026 = vmatpush.msra.mxu0 0.0
  %1027 = vmatpush.msra.mxu0 0.0
  %1028 = vmatpush.msra.mxu0 0.0
  %1029 = vmatpush.msra.mxu0 %v1001
  %1030 = vmatmul.f32.gmra.mxu0 %v1003
  %v1031 = vpop.f32.mrf.mxu0
  %v1032 = vadd.f32 0.0, %v1031
  %1033 = vmatmul.f32.gmra.mxu0 %v1006
  %v1034 = vpop.f32.mrf.mxu0
  %v1035 = vadd.f32 0.0, %v1034
  %1036 = vmatmul.f32.gmra.mxu0 %v1009
  %v1037 = vpop.f32.mrf.mxu0
  %v1038 = vadd.f32 0.0, %v1037
  %1039 = vmatmul.f32.gmra.mxu0 %v1012
  %v1040 = vpop.f32.mrf.mxu0
  %v1041 = vadd.f32 0.0, %v1040
  %1042 = vdwg.mxu0
  %v1043 = vadd.f32 %v824, %v1032
  %v1044 = vadd.f32 %v827, %v1035
  %v1045 = vadd.f32 %v830, %v1038
  %v1046 = vadd.f32 %v833, %v1041
  %1047 = vrot.lane.b32.xlu0 %v412, 104
  %v1048 = vpop.permute.xlu0 %1047
  %1049 = vrot.lane.b32.xlu0 %v415, 104
  %v1050 = vpop.permute.xlu0 %1049
  %1051 = vrot.lane.b32.xlu0 %v418, 104
  %v1052 = vpop.permute.xlu0 %1051
  %1053 = vrot.lane.b32.xlu0 %v421, 104
  %v1054 = vpop.permute.xlu0 %1053
  %1055 = vrot.lane.b32.xlu0 %v412, 72
  %v1056 = vpop.permute.xlu0 %1055
  %1057 = vrot.lane.b32.xlu0 %v415, 72
  %v1058 = vpop.permute.xlu0 %1057
  %1059 = vrot.lane.b32.xlu0 %v418, 72
  %v1060 = vpop.permute.xlu0 %1059
  %1061 = vrot.lane.b32.xlu0 %v421, 72
  %v1062 = vpop.permute.xlu0 %1061
  %v1063 = vsel %vm27, %v1048, 0
  %v1065 = vsel %vm27, %v1050, 0
  %v1067 = vsel %vm27, %v1052, 0
  %v1069 = vsel %vm27, %v1054, 0
  %v1071 = vsel %vm27, %v1056, 0
  %v1073 = vsel %vm27, %v1058, 0
  %v1075 = vsel %vm27, %v1060, 0
  %v1077 = vsel %vm27, %v1062, 0
  %1079 = vmatpush.xpose.msra.mxu0 0.0
  %1080 = vmatpush.xpose.msra.mxu0 0.0
  %1081 = vmatpush.xpose.msra.mxu0 0.0
  %1082 = vmatpush.xpose.msra.mxu0 0.0
  %1083 = vmatpush.xpose.msra.mxu0 0.0
  %1084 = vmatpush.xpose.msra.mxu0 0.0
  %1085 = vmatpush.xpose.msra.mxu0 0.0
  %1086 = vmatpush.xpose.msra.mxu0 0.0
  %1087 = vmatpush.xpose.msra.mxu0 0.0
  %1088 = vmatpush.xpose.msra.mxu0 0.0
  %1089 = vmatpush.xpose.msra.mxu0 0.0
  %1090 = vmatpush.xpose.msra.mxu0 0.0
  %1091 = vmatpush.xpose.msra.mxu0 %v1077
  %1092 = vmatpush.xpose.msra.mxu0 %v1075
  %1093 = vmatpush.xpose.msra.mxu0 %v1073
  %1094 = vmatpush.xpose.msra.mxu0 %v1071
  %1095 = vmatmul.f32.gmra.mxu0 %v1063
  %v1096 = vpop.f32.mrf.mxu0
  %v1097 = vadd.f32 0.0, %v1096
  %1098 = vmatmul.f32.gmra.mxu0 %v1065
  %v1099 = vpop.f32.mrf.mxu0
  %v1100 = vadd.f32 0.0, %v1099
  %1101 = vmatmul.f32.gmra.mxu0 %v1067
  %v1102 = vpop.f32.mrf.mxu0
  %v1103 = vadd.f32 0.0, %v1102
  %1104 = vmatmul.f32.gmra.mxu0 %v1069
  %v1105 = vpop.f32.mrf.mxu0
  %v1106 = vadd.f32 0.0, %v1105
  %1107 = vdwg.mxu0
  %v1108 = vmul.f32 %v1097, 0.35355338
  %v1109 = vmul.f32 %v1100, 0.35355338
  %v1110 = vmul.f32 %v1103, 0.35355338
  %v1111 = vmul.f32 %v1106, 0.35355338
  %v1112 = vadd.f32 %v1108, %v353
  %v1113 = vadd.f32 %v1109, %v354
  %v1114 = vadd.f32 %v1110, %v355
  %v1115 = vadd.f32 %v1111, %v356
  %v1116 = vsel %vm71, %v1112, -inf
  %1117 = vmax.xlane.f32.xlu0 %v1116
  %v1118 = vpop.xlane.xlu0 %1117
  %v1119 = vsel %vm71, %v1113, -inf
  %1120 = vmax.xlane.f32.xlu0 %v1119
  %v1121 = vpop.xlane.xlu0 %1120
  %v1122 = vsel %vm71, %v1114, -inf
  %1123 = vmax.xlane.f32.xlu0 %v1122
  %v1124 = vpop.xlane.xlu0 %1123
  %v1125 = vsel %vm71, %v1115, -inf
  %1126 = vmax.xlane.f32.xlu0 %v1125
  %v1127 = vpop.xlane.xlu0 %1126
  %v1128 = vsub.f32 %v1112, %v1118
  %v1129 = vsub.f32 %v1113, %v1121
  %v1130 = vsub.f32 %v1114, %v1124
  %v1131 = vsub.f32 %v1115, %v1127
  %v1132 = vmul.f32 %v1128, 1.442695
  %v1133 = vpow.pop %v1132
  %v1134 = vmul.f32 %v1129, 1.442695
  %v1135 = vpow.pop %v1134
  %v1136 = vmul.f32 %v1130, 1.442695
  %v1137 = vpow.pop %v1136
  %v1138 = vmul.f32 %v1131, 1.442695
  %v1139 = vpow.pop %v1138
  %v1140 = vsel %vm71, %v1133, 0.0
  %1141 = vadd.xlane.f32.xlu0 %v1140
  %v1142 = vpop.xlane.xlu0 %1141
  %v1143 = vsel %vm71, %v1135, 0.0
  %1144 = vadd.xlane.f32.xlu0 %v1143
  %v1145 = vpop.xlane.xlu0 %1144
  %v1146 = vsel %vm71, %v1137, 0.0
  %1147 = vadd.xlane.f32.xlu0 %v1146
  %v1148 = vpop.xlane.xlu0 %1147
  %v1149 = vsel %vm71, %v1139, 0.0
  %1150 = vadd.xlane.f32.xlu0 %v1149
  %v1151 = vpop.xlane.xlu0 %1150
  %v1152 = vrcp.pop %v1142
  %v1153 = vrcp.pop %v1145
  %v1154 = vrcp.pop %v1148
  %v1155 = vrcp.pop %v1151
  %v1156 = vmul.f32 %v1133, %v1152
  %v1157 = vmul.f32 %v1135, %v1153
  %v1158 = vmul.f32 %v1137, %v1154
  %v1159 = vmul.f32 %v1139, %v1155
  %1160 = vrot.lane.b32.xlu0 %v412, 40
  %v1161 = vpop.permute.xlu0 %1160
  %1162 = vrot.lane.b32.xlu0 %v415, 40
  %v1163 = vpop.permute.xlu0 %1162
  %1164 = vrot.lane.b32.xlu0 %v418, 40
  %v1165 = vpop.permute.xlu0 %1164
  %1166 = vrot.lane.b32.xlu0 %v421, 40
  %v1167 = vpop.permute.xlu0 %1166
  %v1173 = vsel %vm71, %v1156, 0
  %v1176 = vsel %vm71, %v1157, 0
  %v1179 = vsel %vm71, %v1158, 0
  %v1182 = vsel %vm71, %v1159, 0
  %1184 = vmatpush.msra.mxu0 0.0
  %1185 = vmatpush.msra.mxu0 0.0
  %1186 = vmatpush.msra.mxu0 0.0
  %1187 = vmatpush.msra.mxu0 0.0
  %1188 = vmatpush.msra.mxu0 0.0
  %1189 = vmatpush.msra.mxu0 0.0
  %1190 = vmatpush.msra.mxu0 0.0
  %1191 = vmatpush.msra.mxu0 0.0
  %1192 = vmatpush.msra.mxu0 0.0
  %1193 = vmatpush.msra.mxu0 0.0
  %1194 = vmatpush.msra.mxu0 0.0
  %1195 = vmatpush.msra.mxu0 0.0
  %1196 = vmatpush.msra.mxu0 %v1167
  %1197 = vmatpush.msra.mxu0 %v1165
  %1198 = vmatpush.msra.mxu0 %v1163
  %1199 = vmatpush.msra.mxu0 %v1161
  %1200 = vmatmul.f32.gmra.mxu0 %v1173
  %v1201 = vpop.f32.mrf.mxu0
  %v1202 = vadd.f32 0.0, %v1201
  %1203 = vmatmul.f32.gmra.mxu0 %v1176
  %v1204 = vpop.f32.mrf.mxu0
  %v1205 = vadd.f32 0.0, %v1204
  %1206 = vmatmul.f32.gmra.mxu0 %v1179
  %v1207 = vpop.f32.mrf.mxu0
  %v1208 = vadd.f32 0.0, %v1207
  %1209 = vmatmul.f32.gmra.mxu0 %v1182
  %v1210 = vpop.f32.mrf.mxu0
  %v1211 = vadd.f32 0.0, %v1210
  %1212 = vdwg.mxu0
  %v1213 = vld [vmem:[%s3 + $0x40] sm:$0xff]
  %v1215 = vsel %vm27, %v1202, 0
  %v1218 = vsel %vm27, %v1205, 0
  %v1221 = vsel %vm27, %v1208, 0
  %v1224 = vsel %vm27, %v1211, 0
  %1226 = vmatpush.msra.mxu0 0.0
  %1227 = vmatpush.msra.mxu0 0.0
  %1228 = vmatpush.msra.mxu0 0.0
  %1229 = vmatpush.msra.mxu0 0.0
  %1230 = vmatpush.msra.mxu0 0.0
  %1231 = vmatpush.msra.mxu0 0.0
  %1232 = vmatpush.msra.mxu0 0.0
  %1233 = vmatpush.msra.mxu0 0.0
  %1234 = vmatpush.msra.mxu0 0.0
  %1235 = vmatpush.msra.mxu0 0.0
  %1236 = vmatpush.msra.mxu0 0.0
  %1237 = vmatpush.msra.mxu0 0.0
  %1238 = vmatpush.msra.mxu0 0.0
  %1239 = vmatpush.msra.mxu0 0.0
  %1240 = vmatpush.msra.mxu0 0.0
  %1241 = vmatpush.msra.mxu0 %v1213
  %1242 = vmatmul.f32.gmra.mxu0 %v1215
  %v1243 = vpop.f32.mrf.mxu0
  %v1244 = vadd.f32 0.0, %v1243
  %1245 = vmatmul.f32.gmra.mxu0 %v1218
  %v1246 = vpop.f32.mrf.mxu0
  %v1247 = vadd.f32 0.0, %v1246
  %1248 = vmatmul.f32.gmra.mxu0 %v1221
  %v1249 = vpop.f32.mrf.mxu0
  %v1250 = vadd.f32 0.0, %v1249
  %1251 = vmatmul.f32.gmra.mxu0 %v1224
  %v1252 = vpop.f32.mrf.mxu0
  %v1253 = vadd.f32 0.0, %v1252
  %1254 = vdwg.mxu0
  %v1255 = vadd.f32 %v1043, %v1244
  %v1256 = vadd.f32 %v1044, %v1247
  %v1257 = vadd.f32 %v1045, %v1250
  %v1258 = vadd.f32 %v1046, %v1253
  %v1259 = vperm.slane %v374, 0
  %v1260 = vadd.f32 %v1255, %v1259
  %v1261 = vadd.f32 %v1256, %v1259
  %v1262 = vadd.f32 %v1257, %v1259
  %v1263 = vadd.f32 %v1258, %v1259
  %v1264 = vadd.f32 %v349, %v1260
  %v1265 = vadd.f32 %v350, %v1261
  %v1266 = vadd.f32 %v351, %v1262
  %v1267 = vadd.f32 %v352, %v1263
  %v1268 = vsel %vm71, %v1264, 0.0
  %1269 = vadd.xlane.f32.xlu0 %v1268
  %v1270 = vpop.xlane.xlu0 %1269
  %v1271 = vsel %vm71, %v1265, 0.0
  %1272 = vadd.xlane.f32.xlu0 %v1271
  %v1273 = vpop.xlane.xlu0 %1272
  %v1274 = vsel %vm71, %v1266, 0.0
  %1275 = vadd.xlane.f32.xlu0 %v1274
  %v1276 = vpop.xlane.xlu0 %1275
  %v1277 = vsel %vm71, %v1267, 0.0
  %1278 = vadd.xlane.f32.xlu0 %v1277
  %v1279 = vpop.xlane.xlu0 %1278
  %v1280 = vmul.f32 %v1270, %v90
  %v1281 = vmul.f32 %v1273, %v90
  %v1282 = vmul.f32 %v1276, %v90
  %v1283 = vmul.f32 %v1279, %v90
  %v1284 = vsub.f32 %v1264, %v1280
  %v1285 = vsub.f32 %v1265, %v1281
  %v1286 = vsub.f32 %v1266, %v1282
  %v1287 = vsub.f32 %v1267, %v1283
  %v1288 = vmul.f32 %v1284, %v1284
  %v1289 = vmul.f32 %v1285, %v1285
  %v1290 = vmul.f32 %v1286, %v1286
  %v1291 = vmul.f32 %v1287, %v1287
  %v1292 = vsel %vm71, %v1288, 0.0
  %1293 = vadd.xlane.f32.xlu0 %v1292
  %v1294 = vpop.xlane.xlu0 %1293
  %v1295 = vsel %vm71, %v1289, 0.0
  %1296 = vadd.xlane.f32.xlu0 %v1295
  %v1297 = vpop.xlane.xlu0 %1296
  %v1298 = vsel %vm71, %v1290, 0.0
  %1299 = vadd.xlane.f32.xlu0 %v1298
  %v1300 = vpop.xlane.xlu0 %1299
  %v1301 = vsel %vm71, %v1291, 0.0
  %1302 = vadd.xlane.f32.xlu0 %v1301
  %v1303 = vpop.xlane.xlu0 %1302
  %v1304 = vmul.f32 %v1294, %v90
  %v1305 = vmul.f32 %v1297, %v90
  %v1306 = vmul.f32 %v1300, %v90
  %v1307 = vmul.f32 %v1303, %v90
  %v1308 = vadd.f32 %v1304, 1e-05
  %v1309 = vadd.f32 %v1305, 1e-05
  %v1310 = vadd.f32 %v1306, 1e-05
  %v1311 = vadd.f32 %v1307, 1e-05
  %v1312 = vrsqrt.pop %v1308
  %v1313 = vmul.f32 %v1312, %v1308
  %v1314 = vmul.f32 %v1313, %v1312
  %v1315 = vmul.f32 0.5, %v1314
  %v1316 = vsub.f32 1.5, %v1315
  %v1317 = vmul.f32 %v1312, %v1316
  %vm1318 = vweird.f32 %v1308
  %vm1319 = vweird.f32 %v1312
  %vm1320 = vmor %vm1318, %vm1319
  %v1321 = vsel %vm1320, %v1312, %v1317
  %v1322 = vrsqrt.pop %v1309
  %v1323 = vmul.f32 %v1322, %v1309
  %v1324 = vmul.f32 %v1323, %v1322
  %v1325 = vmul.f32 0.5, %v1324
  %v1326 = vsub.f32 1.5, %v1325
  %v1327 = vmul.f32 %v1322, %v1326
  %vm1328 = vweird.f32 %v1309
  %vm1329 = vweird.f32 %v1322
  %vm1330 = vmor %vm1328, %vm1329
  %v1331 = vsel %vm1330, %v1322, %v1327
  %v1332 = vrsqrt.pop %v1310
  %v1333 = vmul.f32 %v1332, %v1310
  %v1334 = vmul.f32 %v1333, %v1332
  %v1335 = vmul.f32 0.5, %v1334
  %v1336 = vsub.f32 1.5, %v1335
  %v1337 = vmul.f32 %v1332, %v1336
  %vm1338 = vweird.f32 %v1310
  %vm1339 = vweird.f32 %v1332
  %vm1340 = vmor %vm1338, %vm1339
  %v1341 = vsel %vm1340, %v1332, %v1337
  %v1342 = vrsqrt.pop %v1311
  %v1343 = vmul.f32 %v1342, %v1311
  %v1344 = vmul.f32 %v1343, %v1342
  %v1345 = vmul.f32 0.5, %v1344
  %v1346 = vsub.f32 1.5, %v1345
  %v1347 = vmul.f32 %v1342, %v1346
  %vm1348 = vweird.f32 %v1311
  %vm1349 = vweird.f32 %v1342
  %vm1350 = vmor %vm1348, %vm1349
  %v1351 = vsel %vm1350, %v1342, %v1347
  %v1352 = vmul.f32 %v1284, %v1321
  %v1353 = vmul.f32 %v1285, %v1331
  %v1354 = vmul.f32 %v1286, %v1341
  %v1355 = vmul.f32 %v1287, %v1351
  %v1356 = vperm.slane %v375, 0
  %v1357 = vmul.f32 %v1352, %v1356
  %v1358 = vmul.f32 %v1353, %v1356
  %v1359 = vmul.f32 %v1354, %v1356
  %v1360 = vmul.f32 %v1355, %v1356
  %v1361 = vperm.slane %v376, 0
  %v1362 = vadd.f32 %v1357, %v1361
  %v1363 = vadd.f32 %v1358, %v1361
  %v1364 = vadd.f32 %v1359, %v1361
  %v1365 = vadd.f32 %v1360, %v1361
  %v1366 = vperm.slane %v377, 0
  %v1368 = vsel %vm71, %v1362, 0
  %v1371 = vsel %vm71, %v1363, 0
  %v1374 = vsel %vm71, %v1364, 0
  %v1377 = vsel %vm71, %v1365, 0
  %1379 = vmatpush.msra.mxu0 0.0
  %1380 = vmatpush.msra.mxu0 0.0
  %1381 = vmatpush.msra.mxu0 0.0
  %1382 = vmatpush.msra.mxu0 0.0
  %1383 = vmatpush.msra.mxu0 0.0
  %1384 = vmatpush.msra.mxu0 0.0
  %1385 = vmatpush.msra.mxu0 0.0
  %1386 = vmatpush.msra.mxu0 0.0
  %1387 = vmatpush.msra.mxu0 0.0
  %1388 = vmatpush.msra.mxu0 0.0
  %1389 = vmatpush.msra.mxu0 0.0
  %1390 = vmatpush.msra.mxu0 0.0
  %1391 = vmatpush.msra.mxu0 %v364
  %1392 = vmatpush.msra.mxu0 %v363
  %1393 = vmatpush.msra.mxu0 %v362
  %1394 = vmatpush.msra.mxu0 %v361
  %1395 = vmatmul.f32.gmra.mxu0 %v1368
  %v1396 = vpop.f32.mrf.mxu0
  %v1397 = vadd.f32 %v1366, %v1396
  %1398 = vmatmul.f32.gmra.mxu0 %v1371
  %v1399 = vpop.f32.mrf.mxu0
  %v1400 = vadd.f32 %v1366, %v1399
  %1401 = vmatmul.f32.gmra.mxu0 %v1374
  %v1402 = vpop.f32.mrf.mxu0
  %v1403 = vadd.f32 %v1366, %v1402
  %1404 = vmatmul.f32.gmra.mxu0 %v1377
  %v1405 = vpop.f32.mrf.mxu0
  %v1406 = vadd.f32 %v1366, %v1405
  %1407 = vdwg.mxu0
  %v1408 = vmax.f32 %v1397, 0.0
  %v1409 = vmax.f32 %v1400, 0.0
  %v1410 = vmax.f32 %v1403, 0.0
  %v1411 = vmax.f32 %v1406, 0.0
  %v1412 = vperm.slane %v378, 0
  %vm1413 = vcmask 523264
  %v1415 = vsel %vm1413, %v1408, 0
  %v1418 = vsel %vm1413, %v1409, 0
  %v1421 = vsel %vm1413, %v1410, 0
  %v1424 = vsel %vm1413, %v1411, 0
  %1426 = vmatpush.msra.mxu0 0.0
  %1427 = vmatpush.msra.mxu0 0.0
  %1428 = vmatpush.msra.mxu0 0.0
  %1429 = vmatpush.msra.mxu0 0.0
  %1430 = vmatpush.msra.mxu0 0.0
  %1431 = vmatpush.msra.mxu0 0.0
  %1432 = vmatpush.msra.mxu0 0.0
  %1433 = vmatpush.msra.mxu0 0.0
  %1434 = vmatpush.msra.mxu0 %v372
  %1435 = vmatpush.msra.mxu0 %v371
  %1436 = vmatpush.msra.mxu0 %v370
  %1437 = vmatpush.msra.mxu0 %v369
  %1438 = vmatpush.msra.mxu0 %v368
  %1439 = vmatpush.msra.mxu0 %v367
  %1440 = vmatpush.msra.mxu0 %v366
  %1441 = vmatpush.msra.mxu0 %v365
  %1442 = vmatmul.f32.gmra.mxu0 %v1415
  %v1443 = vpop.f32.mrf.mxu0
  %v1444 = vadd.f32 %v1412, %v1443
  %1445 = vmatmul.f32.gmra.mxu0 %v1418
  %v1446 = vpop.f32.mrf.mxu0
  %v1447 = vadd.f32 %v1412, %v1446
  %1448 = vmatmul.f32.gmra.mxu0 %v1421
  %v1449 = vpop.f32.mrf.mxu0
  %v1450 = vadd.f32 %v1412, %v1449
  %1451 = vmatmul.f32.gmra.mxu0 %v1424
  %v1452 = vpop.f32.mrf.mxu0
  %v1453 = vadd.f32 %v1412, %v1452
  %1454 = vdwg.mxu0
  %v1455 = vadd.f32 %v1362, %v1444
  %v1456 = vadd.f32 %v1363, %v1447
  %v1457 = vadd.f32 %v1364, %v1450
  %v1458 = vadd.f32 %v1365, %v1453
  %v1459 = vsel %vm71, %v1455, 0.0
  %1460 = vadd.xlane.f32.xlu0 %v1459
  %v1461 = vpop.xlane.xlu0 %1460
  %v1462 = vsel %vm71, %v1456, 0.0
  %1463 = vadd.xlane.f32.xlu0 %v1462
  %v1464 = vpop.xlane.xlu0 %1463
  %v1465 = vsel %vm71, %v1457, 0.0
  %1466 = vadd.xlane.f32.xlu0 %v1465
  %v1467 = vpop.xlane.xlu0 %1466
  %v1468 = vsel %vm71, %v1458, 0.0
  %1469 = vadd.xlane.f32.xlu0 %v1468
  %v1470 = vpop.xlane.xlu0 %1469
  %v1471 = vmul.f32 %v1461, %v90
  %v1472 = vmul.f32 %v1464, %v90
  %v1473 = vmul.f32 %v1467, %v90
  %v1474 = vmul.f32 %v1470, %v90
  %v1475 = vsub.f32 %v1455, %v1471
  %v1476 = vsub.f32 %v1456, %v1472
  %v1477 = vsub.f32 %v1457, %v1473
  %v1478 = vsub.f32 %v1458, %v1474
  %v1479 = vmul.f32 %v1475, %v1475
  %v1480 = vmul.f32 %v1476, %v1476
  %v1481 = vmul.f32 %v1477, %v1477
  %v1482 = vmul.f32 %v1478, %v1478
  %v1483 = vsel %vm71, %v1479, 0.0
  %1484 = vadd.xlane.f32.xlu0 %v1483
  %v1485 = vpop.xlane.xlu0 %1484
  %v1486 = vsel %vm71, %v1480, 0.0
  %1487 = vadd.xlane.f32.xlu0 %v1486
  %v1488 = vpop.xlane.xlu0 %1487
  %v1489 = vsel %vm71, %v1481, 0.0
  %1490 = vadd.xlane.f32.xlu0 %v1489
  %v1491 = vpop.xlane.xlu0 %1490
  %v1492 = vsel %vm71, %v1482, 0.0
  %1493 = vadd.xlane.f32.xlu0 %v1492
  %v1494 = vpop.xlane.xlu0 %1493
  %v1495 = vmul.f32 %v1485, %v90
  %v1496 = vmul.f32 %v1488, %v90
  %v1497 = vmul.f32 %v1491, %v90
  %v1498 = vmul.f32 %v1494, %v90
  %v1499 = vadd.f32 %v1495, 1e-05
  %v1500 = vadd.f32 %v1496, 1e-05
  %v1501 = vadd.f32 %v1497, 1e-05
  %v1502 = vadd.f32 %v1498, 1e-05
  %v1503 = vrsqrt.pop %v1499
  %v1504 = vmul.f32 %v1503, %v1499
  %v1505 = vmul.f32 %v1504, %v1503
  %v1506 = vmul.f32 0.5, %v1505
  %v1507 = vsub.f32 1.5, %v1506
  %v1508 = vmul.f32 %v1503, %v1507
  %vm1509 = vweird.f32 %v1499
  %vm1510 = vweird.f32 %v1503
  %vm1511 = vmor %vm1509, %vm1510
  %v1512 = vsel %vm1511, %v1503, %v1508
  %v1513 = vrsqrt.pop %v1500
  %v1514 = vmul.f32 %v1513, %v1500
  %v1515 = vmul.f32 %v1514, %v1513
  %v1516 = vmul.f32 0.5, %v1515
  %v1517 = vsub.f32 1.5, %v1516
  %v1518 = vmul.f32 %v1513, %v1517
  %vm1519 = vweird.f32 %v1500
  %vm1520 = vweird.f32 %v1513
  %vm1521 = vmor %vm1519, %vm1520
  %v1522 = vsel %vm1521, %v1513, %v1518
  %v1523 = vrsqrt.pop %v1501
  %v1524 = vmul.f32 %v1523, %v1501
  %v1525 = vmul.f32 %v1524, %v1523
  %v1526 = vmul.f32 0.5, %v1525
  %v1527 = vsub.f32 1.5, %v1526
  %v1528 = vmul.f32 %v1523, %v1527
  %vm1529 = vweird.f32 %v1501
  %vm1530 = vweird.f32 %v1523
  %vm1531 = vmor %vm1529, %vm1530
  %v1532 = vsel %vm1531, %v1523, %v1528
  %v1533 = vrsqrt.pop %v1502
  %v1534 = vmul.f32 %v1533, %v1502
  %v1535 = vmul.f32 %v1534, %v1533
  %v1536 = vmul.f32 0.5, %v1535
  %v1537 = vsub.f32 1.5, %v1536
  %v1538 = vmul.f32 %v1533, %v1537
  %vm1539 = vweird.f32 %v1502
  %vm1540 = vweird.f32 %v1533
  %vm1541 = vmor %vm1539, %vm1540
  %v1542 = vsel %vm1541, %v1533, %v1538
  %v1543 = vmul.f32 %v1475, %v1512
  %v1544 = vmul.f32 %v1476, %v1522
  %v1545 = vmul.f32 %v1477, %v1532
  %v1546 = vmul.f32 %v1478, %v1542
  %v1547 = vperm.slane %v379, 0
  %v1548 = vmul.f32 %v1543, %v1547
  %v1549 = vmul.f32 %v1544, %v1547
  %v1550 = vmul.f32 %v1545, %v1547
  %v1551 = vmul.f32 %v1546, %v1547
  %v1552 = vperm.slane %v380, 0
  %v1553 = vadd.f32 %v1548, %v1552
  %v1554 = vadd.f32 %v1549, %v1552
  %v1555 = vadd.f32 %v1550, %v1552
  %v1556 = vadd.f32 %v1551, %v1552
  %v1557 = vld [vmem:[%s3 + $0xa8] sm:$0xff]
  %v1558 = vld [vmem:[%s3 + $0xb0] sm:$0xff]
  %v1559 = vld [vmem:[%s3 + $0xb8] sm:$0xff]
  %v1560 = vld [vmem:[%s3 + $0xc0] sm:$0xff]
  %v1561 = vld [vmem:[%s3 + $0xe8] sm:$0xff]
  %v1562 = vld [vmem:[%s3 + $0xf0] sm:$0xff]
  %v1563 = vld [vmem:[%s3 + $0xf8] sm:$0xff]
  %v1564 = vld [vmem:[%s3 + $0x100] sm:$0xff]
  %v1565 = vld [vmem:[%s3 + $0x108] sm:$0xff]
  %v1566 = vld [vmem:[%s3 + $0x110] sm:$0xff]
  %v1567 = vld [vmem:[%s3 + $0x118] sm:$0xff]
  %v1568 = vld [vmem:[%s3 + $0x120] sm:$0xff]
  %v1569 = vld [vmem:[%s3 + $0x128] sm:$0xff]
  %v1570 = vld [vmem:[%s3 + $0x130] sm:$0xff]
  %v1571 = vld [vmem:[%s3 + $0x138] sm:$0xff]
  %v1572 = vld [vmem:[%s3 + $0x140] sm:$0xff]
  %v1573 = vld [vmem:[%s4 + $0xb] sm:$0x1]
  %v1574 = vld [vmem:[%s4 + $0xc] sm:$0x1]
  %v1575 = vld [vmem:[%s4 + $0xd] sm:$0x1]
  %v1576 = vld [vmem:[%s4 + $0xe] sm:$0x1]
  %v1577 = vld [vmem:[%s4 + $0xf] sm:$0x1]
  %v1578 = vld [vmem:[%s4 + $0x10] sm:$0x1]
  %v1579 = vld [vmem:[%s4 + $0x11] sm:$0x1]
  %v1580 = vld [vmem:[%s4 + $0x12] sm:$0x1]
  %v1581 = vperm.slane %v1573, 0
  %v1583 = vsel %vm71, %v1553, 0
  %v1586 = vsel %vm71, %v1554, 0
  %v1589 = vsel %vm71, %v1555, 0
  %v1592 = vsel %vm71, %v1556, 0
  %1594 = vmatpush.msra.mxu0 0.0
  %1595 = vmatpush.msra.mxu0 0.0
  %1596 = vmatpush.msra.mxu0 0.0
  %1597 = vmatpush.msra.mxu0 0.0
  %1598 = vmatpush.msra.mxu0 0.0
  %1599 = vmatpush.msra.mxu0 0.0
  %1600 = vmatpush.msra.mxu0 0.0
  %1601 = vmatpush.msra.mxu0 0.0
  %1602 = vmatpush.msra.mxu0 0.0
  %1603 = vmatpush.msra.mxu0 0.0
  %1604 = vmatpush.msra.mxu0 0.0
  %1605 = vmatpush.msra.mxu0 0.0
  %1606 = vmatpush.msra.mxu0 %v1560
  %1607 = vmatpush.msra.mxu0 %v1559
  %1608 = vmatpush.msra.mxu0 %v1558
  %1609 = vmatpush.msra.mxu0 %v1557
  %1610 = vmatmul.f32.gmra.mxu0 %v1583
  %v1611 = vpop.f32.mrf.mxu0
  %v1612 = vadd.f32 %v1581, %v1611
  %1613 = vmatmul.f32.gmra.mxu0 %v1586
  %v1614 = vpop.f32.mrf.mxu0
  %v1615 = vadd.f32 %v1581, %v1614
  %1616 = vmatmul.f32.gmra.mxu0 %v1589
  %v1617 = vpop.f32.mrf.mxu0
  %v1618 = vadd.f32 %v1581, %v1617
  %1619 = vmatmul.f32.gmra.mxu0 %v1592
  %v1620 = vpop.f32.mrf.mxu0
  %v1621 = vadd.f32 %v1581, %v1620
  %1622 = vdwg.mxu0
  %1627 = vrot.lane.b32.xlu0 %v1612, 96
  %v1628 = vpop.permute.xlu0 %1627
  %1629 = vrot.lane.b32.xlu0 %v1615, 96
  %v1630 = vpop.permute.xlu0 %1629
  %1631 = vrot.lane.b32.xlu0 %v1618, 96
  %v1632 = vpop.permute.xlu0 %1631
  %1633 = vrot.lane.b32.xlu0 %v1621, 96
  %v1634 = vpop.permute.xlu0 %1633
  %v1635 = vsel %vm27, %v1612, 0
  %v1637 = vsel %vm27, %v1615, 0
  %v1639 = vsel %vm27, %v1618, 0
  %v1641 = vsel %vm27, %v1621, 0
  %v1643 = vsel %vm27, %v1628, 0
  %v1645 = vsel %vm27, %v1630, 0
  %v1647 = vsel %vm27, %v1632, 0
  %v1649 = vsel %vm27, %v1634, 0
  %1651 = vmatpush.xpose.msra.mxu0 0.0
  %1652 = vmatpush.xpose.msra.mxu0 0.0
  %1653 = vmatpush.xpose.msra.mxu0 0.0
  %1654 = vmatpush.xpose.msra.mxu0 0.0
  %1655 = vmatpush.xpose.msra.mxu0 0.0
  %1656 = vmatpush.xpose.msra.mxu0 0.0
  %1657 = vmatpush.xpose.msra.mxu0 0.0
  %1658 = vmatpush.xpose.msra.mxu0 0.0
  %1659 = vmatpush.xpose.msra.mxu0 0.0
  %1660 = vmatpush.xpose.msra.mxu0 0.0
  %1661 = vmatpush.xpose.msra.mxu0 0.0
  %1662 = vmatpush.xpose.msra.mxu0 0.0
  %1663 = vmatpush.xpose.msra.mxu0 %v1649
  %1664 = vmatpush.xpose.msra.mxu0 %v1647
  %1665 = vmatpush.xpose.msra.mxu0 %v1645
  %1666 = vmatpush.xpose.msra.mxu0 %v1643
  %1667 = vmatmul.f32.gmra.mxu0 %v1635
  %v1668 = vpop.f32.mrf.mxu0
  %v1669 = vadd.f32 0.0, %v1668
  %1670 = vmatmul.f32.gmra.mxu0 %v1637
  %v1671 = vpop.f32.mrf.mxu0
  %v1672 = vadd.f32 0.0, %v1671
  %1673 = vmatmul.f32.gmra.mxu0 %v1639
  %v1674 = vpop.f32.mrf.mxu0
  %v1675 = vadd.f32 0.0, %v1674
  %1676 = vmatmul.f32.gmra.mxu0 %v1641
  %v1677 = vpop.f32.mrf.mxu0
  %v1678 = vadd.f32 0.0, %v1677
  %1679 = vdwg.mxu0
  %v1680 = vmul.f32 %v1669, 0.35355338
  %v1681 = vmul.f32 %v1672, 0.35355338
  %v1682 = vmul.f32 %v1675, 0.35355338
  %v1683 = vmul.f32 %v1678, 0.35355338
  %v1684 = vadd.f32 %v1680, %v353
  %v1685 = vadd.f32 %v1681, %v354
  %v1686 = vadd.f32 %v1682, %v355
  %v1687 = vadd.f32 %v1683, %v356
  %v1688 = vsel %vm71, %v1684, -inf
  %1689 = vmax.xlane.f32.xlu0 %v1688
  %v1690 = vpop.xlane.xlu0 %1689
  %v1691 = vsel %vm71, %v1685, -inf
  %1692 = vmax.xlane.f32.xlu0 %v1691
  %v1693 = vpop.xlane.xlu0 %1692
  %v1694 = vsel %vm71, %v1686, -inf
  %1695 = vmax.xlane.f32.xlu0 %v1694
  %v1696 = vpop.xlane.xlu0 %1695
  %v1697 = vsel %vm71, %v1687, -inf
  %1698 = vmax.xlane.f32.xlu0 %v1697
  %v1699 = vpop.xlane.xlu0 %1698
  %v1700 = vsub.f32 %v1684, %v1690
  %v1701 = vsub.f32 %v1685, %v1693
  %v1702 = vsub.f32 %v1686, %v1696
  %v1703 = vsub.f32 %v1687, %v1699
  %v1704 = vmul.f32 %v1700, 1.442695
  %v1705 = vpow.pop %v1704
  %v1706 = vmul.f32 %v1701, 1.442695
  %v1707 = vpow.pop %v1706
  %v1708 = vmul.f32 %v1702, 1.442695
  %v1709 = vpow.pop %v1708
  %v1710 = vmul.f32 %v1703, 1.442695
  %v1711 = vpow.pop %v1710
  %v1712 = vsel %vm71, %v1705, 0.0
  %1713 = vadd.xlane.f32.xlu0 %v1712
  %v1714 = vpop.xlane.xlu0 %1713
  %v1715 = vsel %vm71, %v1707, 0.0
  %1716 = vadd.xlane.f32.xlu0 %v1715
  %v1717 = vpop.xlane.xlu0 %1716
  %v1718 = vsel %vm71, %v1709, 0.0
  %1719 = vadd.xlane.f32.xlu0 %v1718
  %v1720 = vpop.xlane.xlu0 %1719
  %v1721 = vsel %vm71, %v1711, 0.0
  %1722 = vadd.xlane.f32.xlu0 %v1721
  %v1723 = vpop.xlane.xlu0 %1722
  %v1724 = vrcp.pop %v1714
  %v1725 = vrcp.pop %v1717
  %v1726 = vrcp.pop %v1720
  %v1727 = vrcp.pop %v1723
  %v1728 = vmul.f32 %v1705, %v1724
  %v1729 = vmul.f32 %v1707, %v1725
  %v1730 = vmul.f32 %v1709, %v1726
  %v1731 = vmul.f32 %v1711, %v1727
  %1732 = vrot.lane.b32.xlu0 %v1612, 64
  %v1733 = vpop.permute.xlu0 %1732
  %1734 = vrot.lane.b32.xlu0 %v1615, 64
  %v1735 = vpop.permute.xlu0 %1734
  %1736 = vrot.lane.b32.xlu0 %v1618, 64
  %v1737 = vpop.permute.xlu0 %1736
  %1738 = vrot.lane.b32.xlu0 %v1621, 64
  %v1739 = vpop.permute.xlu0 %1738
  %v1745 = vsel %vm71, %v1728, 0
  %v1748 = vsel %vm71, %v1729, 0
  %v1751 = vsel %vm71, %v1730, 0
  %v1754 = vsel %vm71, %v1731, 0
  %1756 = vmatpush.msra.mxu0 0.0
  %1757 = vmatpush.msra.mxu0 0.0
  %1758 = vmatpush.msra.mxu0 0.0
  %1759 = vmatpush.msra.mxu0 0.0
  %1760 = vmatpush.msra.mxu0 0.0
  %1761 = vmatpush.msra.mxu0 0.0
  %1762 = vmatpush.msra.mxu0 0.0
  %1763 = vmatpush.msra.mxu0 0.0
  %1764 = vmatpush.msra.mxu0 0.0
  %1765 = vmatpush.msra.mxu0 0.0
  %1766 = vmatpush.msra.mxu0 0.0
  %1767 = vmatpush.msra.mxu0 0.0
  %1768 = vmatpush.msra.mxu0 %v1739
  %1769 = vmatpush.msra.mxu0 %v1737
  %1770 = vmatpush.msra.mxu0 %v1735
  %1771 = vmatpush.msra.mxu0 %v1733
  %1772 = vmatmul.f32.gmra.mxu0 %v1745
  %v1773 = vpop.f32.mrf.mxu0
  %v1774 = vadd.f32 0.0, %v1773
  %1775 = vmatmul.f32.gmra.mxu0 %v1748
  %v1776 = vpop.f32.mrf.mxu0
  %v1777 = vadd.f32 0.0, %v1776
  %1778 = vmatmul.f32.gmra.mxu0 %v1751
  %v1779 = vpop.f32.mrf.mxu0
  %v1780 = vadd.f32 0.0, %v1779
  %1781 = vmatmul.f32.gmra.mxu0 %v1754
  %v1782 = vpop.f32.mrf.mxu0
  %v1783 = vadd.f32 0.0, %v1782
  %1784 = vdwg.mxu0
  %v1785 = vld [vmem:[%s3 + $0xc8] sm:$0xff]
  %1786 = vrot.lane.b32.xlu0 %v1612, 120
  %v1787 = vpop.permute.xlu0 %1786
  %1788 = vrot.lane.b32.xlu0 %v1615, 120
  %v1789 = vpop.permute.xlu0 %1788
  %1790 = vrot.lane.b32.xlu0 %v1618, 120
  %v1791 = vpop.permute.xlu0 %1790
  %1792 = vrot.lane.b32.xlu0 %v1621, 120
  %v1793 = vpop.permute.xlu0 %1792
  %1794 = vrot.lane.b32.xlu0 %v1612, 88
  %v1795 = vpop.permute.xlu0 %1794
  %1796 = vrot.lane.b32.xlu0 %v1615, 88
  %v1797 = vpop.permute.xlu0 %1796
  %1798 = vrot.lane.b32.xlu0 %v1618, 88
  %v1799 = vpop.permute.xlu0 %1798
  %1800 = vrot.lane.b32.xlu0 %v1621, 88
  %v1801 = vpop.permute.xlu0 %1800
  %v1802 = vsel %vm27, %v1787, 0
  %v1804 = vsel %vm27, %v1789, 0
  %v1806 = vsel %vm27, %v1791, 0
  %v1808 = vsel %vm27, %v1793, 0
  %v1810 = vsel %vm27, %v1795, 0
  %v1812 = vsel %vm27, %v1797, 0
  %v1814 = vsel %vm27, %v1799, 0
  %v1816 = vsel %vm27, %v1801, 0
  %1818 = vmatpush.xpose.msra.mxu0 0.0
  %1819 = vmatpush.xpose.msra.mxu0 0.0
  %1820 = vmatpush.xpose.msra.mxu0 0.0
  %1821 = vmatpush.xpose.msra.mxu0 0.0
  %1822 = vmatpush.xpose.msra.mxu0 0.0
  %1823 = vmatpush.xpose.msra.mxu0 0.0
  %1824 = vmatpush.xpose.msra.mxu0 0.0
  %1825 = vmatpush.xpose.msra.mxu0 0.0
  %1826 = vmatpush.xpose.msra.mxu0 0.0
  %1827 = vmatpush.xpose.msra.mxu0 0.0
  %1828 = vmatpush.xpose.msra.mxu0 0.0
  %1829 = vmatpush.xpose.msra.mxu0 0.0
  %1830 = vmatpush.xpose.msra.mxu0 %v1816
  %1831 = vmatpush.xpose.msra.mxu0 %v1814
  %1832 = vmatpush.xpose.msra.mxu0 %v1812
  %1833 = vmatpush.xpose.msra.mxu0 %v1810
  %1834 = vmatmul.f32.gmra.mxu0 %v1802
  %v1835 = vpop.f32.mrf.mxu0
  %v1836 = vadd.f32 0.0, %v1835
  %1837 = vmatmul.f32.gmra.mxu0 %v1804
  %v1838 = vpop.f32.mrf.mxu0
  %v1839 = vadd.f32 0.0, %v1838
  %1840 = vmatmul.f32.gmra.mxu0 %v1806
  %v1841 = vpop.f32.mrf.mxu0
  %v1842 = vadd.f32 0.0, %v1841
  %1843 = vmatmul.f32.gmra.mxu0 %v1808
  %v1844 = vpop.f32.mrf.mxu0
  %v1845 = vadd.f32 0.0, %v1844
  %1846 = vdwg.mxu0
  %v1847 = vmul.f32 %v1836, 0.35355338
  %v1848 = vmul.f32 %v1839, 0.35355338
  %v1849 = vmul.f32 %v1842, 0.35355338
  %v1850 = vmul.f32 %v1845, 0.35355338
  %v1851 = vadd.f32 %v1847, %v353
  %v1852 = vadd.f32 %v1848, %v354
  %v1853 = vadd.f32 %v1849, %v355
  %v1854 = vadd.f32 %v1850, %v356
  %v1855 = vsel %vm71, %v1851, -inf
  %1856 = vmax.xlane.f32.xlu0 %v1855
  %v1857 = vpop.xlane.xlu0 %1856
  %v1858 = vsel %vm71, %v1852, -inf
  %1859 = vmax.xlane.f32.xlu0 %v1858
  %v1860 = vpop.xlane.xlu0 %1859
  %v1861 = vsel %vm71, %v1853, -inf
  %1862 = vmax.xlane.f32.xlu0 %v1861
  %v1863 = vpop.xlane.xlu0 %1862
  %v1864 = vsel %vm71, %v1854, -inf
  %1865 = vmax.xlane.f32.xlu0 %v1864
  %v1866 = vpop.xlane.xlu0 %1865
  %v1867 = vsub.f32 %v1851, %v1857
  %v1868 = vsub.f32 %v1852, %v1860
  %v1869 = vsub.f32 %v1853, %v1863
  %v1870 = vsub.f32 %v1854, %v1866
  %v1871 = vmul.f32 %v1867, 1.442695
  %v1872 = vpow.pop %v1871
  %v1873 = vmul.f32 %v1868, 1.442695
  %v1874 = vpow.pop %v1873
  %v1875 = vmul.f32 %v1869, 1.442695
  %v1876 = vpow.pop %v1875
  %v1877 = vmul.f32 %v1870, 1.442695
  %v1878 = vpow.pop %v1877
  %v1879 = vsel %vm71, %v1872, 0.0
  %1880 = vadd.xlane.f32.xlu0 %v1879
  %v1881 = vpop.xlane.xlu0 %1880
  %v1882 = vsel %vm71, %v1874, 0.0
  %1883 = vadd.xlane.f32.xlu0 %v1882
  %v1884 = vpop.xlane.xlu0 %1883
  %v1885 = vsel %vm71, %v1876, 0.0
  %1886 = vadd.xlane.f32.xlu0 %v1885
  %v1887 = vpop.xlane.xlu0 %1886
  %v1888 = vsel %vm71, %v1878, 0.0
  %1889 = vadd.xlane.f32.xlu0 %v1888
  %v1890 = vpop.xlane.xlu0 %1889
  %v1891 = vrcp.pop %v1881
  %v1892 = vrcp.pop %v1884
  %v1893 = vrcp.pop %v1887
  %v1894 = vrcp.pop %v1890
  %v1895 = vmul.f32 %v1872, %v1891
  %v1896 = vmul.f32 %v1874, %v1892
  %v1897 = vmul.f32 %v1876, %v1893
  %v1898 = vmul.f32 %v1878, %v1894
  %1899 = vrot.lane.b32.xlu0 %v1612, 56
  %v1900 = vpop.permute.xlu0 %1899
  %1901 = vrot.lane.b32.xlu0 %v1615, 56
  %v1902 = vpop.permute.xlu0 %1901
  %1903 = vrot.lane.b32.xlu0 %v1618, 56
  %v1904 = vpop.permute.xlu0 %1903
  %1905 = vrot.lane.b32.xlu0 %v1621, 56
  %v1906 = vpop.permute.xlu0 %1905
  %v1912 = vsel %vm71, %v1895, 0
  %v1915 = vsel %vm71, %v1896, 0
  %v1918 = vsel %vm71, %v1897, 0
  %v1921 = vsel %vm71, %v1898, 0
  %1923 = vmatpush.msra.mxu0 0.0
  %1924 = vmatpush.msra.mxu0 0.0
  %1925 = vmatpush.msra.mxu0 0.0
  %1926 = vmatpush.msra.mxu0 0.0
  %1927 = vmatpush.msra.mxu0 0.0
  %1928 = vmatpush.msra.mxu0 0.0
  %1929 = vmatpush.msra.mxu0 0.0
  %1930 = vmatpush.msra.mxu0 0.0
  %1931 = vmatpush.msra.mxu0 0.0
  %1932 = vmatpush.msra.mxu0 0.0
  %1933 = vmatpush.msra.mxu0 0.0
  %1934 = vmatpush.msra.mxu0 0.0
  %1935 = vmatpush.msra.mxu0 %v1906
  %1936 = vmatpush.msra.mxu0 %v1904
  %1937 = vmatpush.msra.mxu0 %v1902
  %1938 = vmatpush.msra.mxu0 %v1900
  %1939 = vmatmul.f32.gmra.mxu0 %v1912
  %v1940 = vpop.f32.mrf.mxu0
  %v1941 = vadd.f32 0.0, %v1940
  %1942 = vmatmul.f32.gmra.mxu0 %v1915
  %v1943 = vpop.f32.mrf.mxu0
  %v1944 = vadd.f32 0.0, %v1943
  %1945 = vmatmul.f32.gmra.mxu0 %v1918
  %v1946 = vpop.f32.mrf.mxu0
  %v1947 = vadd.f32 0.0, %v1946
  %1948 = vmatmul.f32.gmra.mxu0 %v1921
  %v1949 = vpop.f32.mrf.mxu0
  %v1950 = vadd.f32 0.0, %v1949
  %1951 = vdwg.mxu0
  %v1952 = vld [vmem:[%s3 + $0xd0] sm:$0xff]
  %v1954 = vsel %vm27, %v1941, 0
  %v1957 = vsel %vm27, %v1944, 0
  %v1960 = vsel %vm27, %v1947, 0
  %v1963 = vsel %vm27, %v1950, 0
  %1965 = vmatpush.msra.mxu0 0.0
  %1966 = vmatpush.msra.mxu0 0.0
  %1967 = vmatpush.msra.mxu0 0.0
  %1968 = vmatpush.msra.mxu0 0.0
  %1969 = vmatpush.msra.mxu0 0.0
  %1970 = vmatpush.msra.mxu0 0.0
  %1971 = vmatpush.msra.mxu0 0.0
  %1972 = vmatpush.msra.mxu0 0.0
  %1973 = vmatpush.msra.mxu0 0.0
  %1974 = vmatpush.msra.mxu0 0.0
  %1975 = vmatpush.msra.mxu0 0.0
  %1976 = vmatpush.msra.mxu0 0.0
  %1977 = vmatpush.msra.mxu0 0.0
  %1978 = vmatpush.msra.mxu0 0.0
  %1979 = vmatpush.msra.mxu0 0.0
  %1980 = vmatpush.msra.mxu0 %v1952
  %1981 = vmatmul.f32.gmra.mxu0 %v1954
  %v1982 = vpop.f32.mrf.mxu0
  %v1983 = vadd.f32 0.0, %v1982
  %1984 = vmatmul.f32.gmra.mxu0 %v1957
  %v1985 = vpop.f32.mrf.mxu0
  %v1986 = vadd.f32 0.0, %v1985
  %1987 = vmatmul.f32.gmra.mxu0 %v1960
  %v1988 = vpop.f32.mrf.mxu0
  %v1989 = vadd.f32 0.0, %v1988
  %1990 = vmatmul.f32.gmra.mxu0 %v1963
  %v1991 = vpop.f32.mrf.mxu0
  %v1992 = vadd.f32 0.0, %v1991
  %1993 = vdwg.mxu0
  %v1995 = vsel %vm27, %v1774, 0
  %v1998 = vsel %vm27, %v1777, 0
  %v2001 = vsel %vm27, %v1780, 0
  %v2004 = vsel %vm27, %v1783, 0
  %2006 = vmatpush.msra.mxu0 0.0
  %2007 = vmatpush.msra.mxu0 0.0
  %2008 = vmatpush.msra.mxu0 0.0
  %2009 = vmatpush.msra.mxu0 0.0
  %2010 = vmatpush.msra.mxu0 0.0
  %2011 = vmatpush.msra.mxu0 0.0
  %2012 = vmatpush.msra.mxu0 0.0
  %2013 = vmatpush.msra.mxu0 0.0
  %2014 = vmatpush.msra.mxu0 0.0
  %2015 = vmatpush.msra.mxu0 0.0
  %2016 = vmatpush.msra.mxu0 0.0
  %2017 = vmatpush.msra.mxu0 0.0
  %2018 = vmatpush.msra.mxu0 0.0
  %2019 = vmatpush.msra.mxu0 0.0
  %2020 = vmatpush.msra.mxu0 0.0
  %2021 = vmatpush.msra.mxu0 %v1785
  %2022 = vmatmul.f32.gmra.mxu0 %v1995
  %v2023 = vpop.f32.mrf.mxu0
  %v2024 = vadd.f32 %v1983, %v2023
  %2025 = vmatmul.f32.gmra.mxu0 %v1998
  %v2026 = vpop.f32.mrf.mxu0
  %v2027 = vadd.f32 %v1986, %v2026
  %2028 = vmatmul.f32.gmra.mxu0 %v2001
  %v2029 = vpop.f32.mrf.mxu0
  %v2030 = vadd.f32 %v1989, %v2029
  %2031 = vmatmul.f32.gmra.mxu0 %v2004
  %v2032 = vpop.f32.mrf.mxu0
  %v2033 = vadd.f32 %v1992, %v2032
  %2034 = vdwg.mxu0
  %2035 = vrot.lane.b32.xlu0 %v1612, 112
  %v2036 = vpop.permute.xlu0 %2035
  %2037 = vrot.lane.b32.xlu0 %v1615, 112
  %v2038 = vpop.permute.xlu0 %2037
  %2039 = vrot.lane.b32.xlu0 %v1618, 112
  %v2040 = vpop.permute.xlu0 %2039
  %2041 = vrot.lane.b32.xlu0 %v1621, 112
  %v2042 = vpop.permute.xlu0 %2041
  %2043 = vrot.lane.b32.xlu0 %v1612, 80
  %v2044 = vpop.permute.xlu0 %2043
  %2045 = vrot.lane.b32.xlu0 %v1615, 80
  %v2046 = vpop.permute.xlu0 %2045
  %2047 = vrot.lane.b32.xlu0 %v1618, 80
  %v2048 = vpop.permute.xlu0 %2047
  %2049 = vrot.lane.b32.xlu0 %v1621, 80
  %v2050 = vpop.permute.xlu0 %2049
  %v2051 = vsel %vm27, %v2036, 0
  %v2053 = vsel %vm27, %v2038, 0
  %v2055 = vsel %vm27, %v2040, 0
  %v2057 = vsel %vm27, %v2042, 0
  %v2059 = vsel %vm27, %v2044, 0
  %v2061 = vsel %vm27, %v2046, 0
  %v2063 = vsel %vm27, %v2048, 0
  %v2065 = vsel %vm27, %v2050, 0
  %2067 = vmatpush.xpose.msra.mxu0 0.0
  %2068 = vmatpush.xpose.msra.mxu0 0.0
  %2069 = vmatpush.xpose.msra.mxu0 0.0
  %2070 = vmatpush.xpose.msra.mxu0 0.0
  %2071 = vmatpush.xpose.msra.mxu0 0.0
  %2072 = vmatpush.xpose.msra.mxu0 0.0
  %2073 = vmatpush.xpose.msra.mxu0 0.0
  %2074 = vmatpush.xpose.msra.mxu0 0.0
  %2075 = vmatpush.xpose.msra.mxu0 0.0
  %2076 = vmatpush.xpose.msra.mxu0 0.0
  %2077 = vmatpush.xpose.msra.mxu0 0.0
  %2078 = vmatpush.xpose.msra.mxu0 0.0
  %2079 = vmatpush.xpose.msra.mxu0 %v2065
  %2080 = vmatpush.xpose.msra.mxu0 %v2063
  %2081 = vmatpush.xpose.msra.mxu0 %v2061
  %2082 = vmatpush.xpose.msra.mxu0 %v2059
  %2083 = vmatmul.f32.gmra.mxu0 %v2051
  %v2084 = vpop.f32.mrf.mxu0
  %v2085 = vadd.f32 0.0, %v2084
  %2086 = vmatmul.f32.gmra.mxu0 %v2053
  %v2087 = vpop.f32.mrf.mxu0
  %v2088 = vadd.f32 0.0, %v2087
  %2089 = vmatmul.f32.gmra.mxu0 %v2055
  %v2090 = vpop.f32.mrf.mxu0
  %v2091 = vadd.f32 0.0, %v2090
  %2092 = vmatmul.f32.gmra.mxu0 %v2057
  %v2093 = vpop.f32.mrf.mxu0
  %v2094 = vadd.f32 0.0, %v2093
  %2095 = vdwg.mxu0
  %v2096 = vmul.f32 %v2085, 0.35355338
  %v2097 = vmul.f32 %v2088, 0.35355338
  %v2098 = vmul.f32 %v2091, 0.35355338
  %v2099 = vmul.f32 %v2094, 0.35355338
  %v2100 = vadd.f32 %v2096, %v353
  %v2101 = vadd.f32 %v2097, %v354
  %v2102 = vadd.f32 %v2098, %v355
  %v2103 = vadd.f32 %v2099, %v356
  %v2104 = vsel %vm71, %v2100, -inf
  %2105 = vmax.xlane.f32.xlu0 %v2104
  %v2106 = vpop.xlane.xlu0 %2105
  %v2107 = vsel %vm71, %v2101, -inf
  %2108 = vmax.xlane.f32.xlu0 %v2107
  %v2109 = vpop.xlane.xlu0 %2108
  %v2110 = vsel %vm71, %v2102, -inf
  %2111 = vmax.xlane.f32.xlu0 %v2110
  %v2112 = vpop.xlane.xlu0 %2111
  %v2113 = vsel %vm71, %v2103, -inf
  %2114 = vmax.xlane.f32.xlu0 %v2113
  %v2115 = vpop.xlane.xlu0 %2114
  %v2116 = vsub.f32 %v2100, %v2106
  %v2117 = vsub.f32 %v2101, %v2109
  %v2118 = vsub.f32 %v2102, %v2112
  %v2119 = vsub.f32 %v2103, %v2115
  %v2120 = vmul.f32 %v2116, 1.442695
  %v2121 = vpow.pop %v2120
  %v2122 = vmul.f32 %v2117, 1.442695
  %v2123 = vpow.pop %v2122
  %v2124 = vmul.f32 %v2118, 1.442695
  %v2125 = vpow.pop %v2124
  %v2126 = vmul.f32 %v2119, 1.442695
  %v2127 = vpow.pop %v2126
  %v2128 = vsel %vm71, %v2121, 0.0
  %2129 = vadd.xlane.f32.xlu0 %v2128
  %v2130 = vpop.xlane.xlu0 %2129
  %v2131 = vsel %vm71, %v2123, 0.0
  %2132 = vadd.xlane.f32.xlu0 %v2131
  %v2133 = vpop.xlane.xlu0 %2132
  %v2134 = vsel %vm71, %v2125, 0.0
  %2135 = vadd.xlane.f32.xlu0 %v2134
  %v2136 = vpop.xlane.xlu0 %2135
  %v2137 = vsel %vm71, %v2127, 0.0
  %2138 = vadd.xlane.f32.xlu0 %v2137
  %v2139 = vpop.xlane.xlu0 %2138
  %v2140 = vrcp.pop %v2130
  %v2141 = vrcp.pop %v2133
  %v2142 = vrcp.pop %v2136
  %v2143 = vrcp.pop %v2139
  %v2144 = vmul.f32 %v2121, %v2140
  %v2145 = vmul.f32 %v2123, %v2141
  %v2146 = vmul.f32 %v2125, %v2142
  %v2147 = vmul.f32 %v2127, %v2143
  %2148 = vrot.lane.b32.xlu0 %v1612, 48
  %v2149 = vpop.permute.xlu0 %2148
  %2150 = vrot.lane.b32.xlu0 %v1615, 48
  %v2151 = vpop.permute.xlu0 %2150
  %2152 = vrot.lane.b32.xlu0 %v1618, 48
  %v2153 = vpop.permute.xlu0 %2152
  %2154 = vrot.lane.b32.xlu0 %v1621, 48
  %v2155 = vpop.permute.xlu0 %2154
  %v2161 = vsel %vm71, %v2144, 0
  %v2164 = vsel %vm71, %v2145, 0
  %v2167 = vsel %vm71, %v2146, 0
  %v2170 = vsel %vm71, %v2147, 0
  %2172 = vmatpush.msra.mxu0 0.0
  %2173 = vmatpush.msra.mxu0 0.0
  %2174 = vmatpush.msra.mxu0 0.0
  %2175 = vmatpush.msra.mxu0 0.0
  %2176 = vmatpush.msra.mxu0 0.0
  %2177 = vmatpush.msra.mxu0 0.0
  %2178 = vmatpush.msra.mxu0 0.0
  %2179 = vmatpush.msra.mxu0 0.0
  %2180 = vmatpush.msra.mxu0 0.0
  %2181 = vmatpush.msra.mxu0 0.0
  %2182 = vmatpush.msra.mxu0 0.0
  %2183 = vmatpush.msra.mxu0 0.0
  %2184 = vmatpush.msra.mxu0 %v2155
  %2185 = vmatpush.msra.mxu0 %v2153
  %2186 = vmatpush.msra.mxu0 %v2151
  %2187 = vmatpush.msra.mxu0 %v2149
  %2188 = vmatmul.f32.gmra.mxu0 %v2161
  %v2189 = vpop.f32.mrf.mxu0
  %v2190 = vadd.f32 0.0, %v2189
  %2191 = vmatmul.f32.gmra.mxu0 %v2164
  %v2192 = vpop.f32.mrf.mxu0
  %v2193 = vadd.f32 0.0, %v2192
  %2194 = vmatmul.f32.gmra.mxu0 %v2167
  %v2195 = vpop.f32.mrf.mxu0
  %v2196 = vadd.f32 0.0, %v2195
  %2197 = vmatmul.f32.gmra.mxu0 %v2170
  %v2198 = vpop.f32.mrf.mxu0
  %v2199 = vadd.f32 0.0, %v2198
  %2200 = vdwg.mxu0
  %v2201 = vld [vmem:[%s3 + $0xd8] sm:$0xff]
  %v2203 = vsel %vm27, %v2190, 0
  %v2206 = vsel %vm27, %v2193, 0
  %v2209 = vsel %vm27, %v2196, 0
  %v2212 = vsel %vm27, %v2199, 0
  %2214 = vmatpush.msra.mxu0 0.0
  %2215 = vmatpush.msra.mxu0 0.0
  %2216 = vmatpush.msra.mxu0 0.0
  %2217 = vmatpush.msra.mxu0 0.0
  %2218 = vmatpush.msra.mxu0 0.0
  %2219 = vmatpush.msra.mxu0 0.0
  %2220 = vmatpush.msra.mxu0 0.0
  %2221 = vmatpush.msra.mxu0 0.0
  %2222 = vmatpush.msra.mxu0 0.0
  %2223 = vmatpush.msra.mxu0 0.0
  %2224 = vmatpush.msra.mxu0 0.0
  %2225 = vmatpush.msra.mxu0 0.0
  %2226 = vmatpush.msra.mxu0 0.0
  %2227 = vmatpush.msra.mxu0 0.0
  %2228 = vmatpush.msra.mxu0 0.0
  %2229 = vmatpush.msra.mxu0 %v2201
  %2230 = vmatmul.f32.gmra.mxu0 %v2203
  %v2231 = vpop.f32.mrf.mxu0
  %v2232 = vadd.f32 0.0, %v2231
  %2233 = vmatmul.f32.gmra.mxu0 %v2206
  %v2234 = vpop.f32.mrf.mxu0
  %v2235 = vadd.f32 0.0, %v2234
  %2236 = vmatmul.f32.gmra.mxu0 %v2209
  %v2237 = vpop.f32.mrf.mxu0
  %v2238 = vadd.f32 0.0, %v2237
  %2239 = vmatmul.f32.gmra.mxu0 %v2212
  %v2240 = vpop.f32.mrf.mxu0
  %v2241 = vadd.f32 0.0, %v2240
  %2242 = vdwg.mxu0
  %v2243 = vadd.f32 %v2024, %v2232
  %v2244 = vadd.f32 %v2027, %v2235
  %v2245 = vadd.f32 %v2030, %v2238
  %v2246 = vadd.f32 %v2033, %v2241
  %2247 = vrot.lane.b32.xlu0 %v1612, 104
  %v2248 = vpop.permute.xlu0 %2247
  %2249 = vrot.lane.b32.xlu0 %v1615, 104
  %v2250 = vpop.permute.xlu0 %2249
  %2251 = vrot.lane.b32.xlu0 %v1618, 104
  %v2252 = vpop.permute.xlu0 %2251
  %2253 = vrot.lane.b32.xlu0 %v1621, 104
  %v2254 = vpop.permute.xlu0 %2253
  %2255 = vrot.lane.b32.xlu0 %v1612, 72
  %v2256 = vpop.permute.xlu0 %2255
  %2257 = vrot.lane.b32.xlu0 %v1615, 72
  %v2258 = vpop.permute.xlu0 %2257
  %2259 = vrot.lane.b32.xlu0 %v1618, 72
  %v2260 = vpop.permute.xlu0 %2259
  %2261 = vrot.lane.b32.xlu0 %v1621, 72
  %v2262 = vpop.permute.xlu0 %2261
  %v2263 = vsel %vm27, %v2248, 0
  %v2265 = vsel %vm27, %v2250, 0
  %v2267 = vsel %vm27, %v2252, 0
  %v2269 = vsel %vm27, %v2254, 0
  %v2271 = vsel %vm27, %v2256, 0
  %v2273 = vsel %vm27, %v2258, 0
  %v2275 = vsel %vm27, %v2260, 0
  %v2277 = vsel %vm27, %v2262, 0
  %2279 = vmatpush.xpose.msra.mxu0 0.0
  %2280 = vmatpush.xpose.msra.mxu0 0.0
  %2281 = vmatpush.xpose.msra.mxu0 0.0
  %2282 = vmatpush.xpose.msra.mxu0 0.0
  %2283 = vmatpush.xpose.msra.mxu0 0.0
  %2284 = vmatpush.xpose.msra.mxu0 0.0
  %2285 = vmatpush.xpose.msra.mxu0 0.0
  %2286 = vmatpush.xpose.msra.mxu0 0.0
  %2287 = vmatpush.xpose.msra.mxu0 0.0
  %2288 = vmatpush.xpose.msra.mxu0 0.0
  %2289 = vmatpush.xpose.msra.mxu0 0.0
  %2290 = vmatpush.xpose.msra.mxu0 0.0
  %2291 = vmatpush.xpose.msra.mxu0 %v2277
  %2292 = vmatpush.xpose.msra.mxu0 %v2275
  %2293 = vmatpush.xpose.msra.mxu0 %v2273
  %2294 = vmatpush.xpose.msra.mxu0 %v2271
  %2295 = vmatmul.f32.gmra.mxu0 %v2263
  %v2296 = vpop.f32.mrf.mxu0
  %v2297 = vadd.f32 0.0, %v2296
  %2298 = vmatmul.f32.gmra.mxu0 %v2265
  %v2299 = vpop.f32.mrf.mxu0
  %v2300 = vadd.f32 0.0, %v2299
  %2301 = vmatmul.f32.gmra.mxu0 %v2267
  %v2302 = vpop.f32.mrf.mxu0
  %v2303 = vadd.f32 0.0, %v2302
  %2304 = vmatmul.f32.gmra.mxu0 %v2269
  %v2305 = vpop.f32.mrf.mxu0
  %v2306 = vadd.f32 0.0, %v2305
  %2307 = vdwg.mxu0
  %v2308 = vmul.f32 %v2297, 0.35355338
  %v2309 = vmul.f32 %v2300, 0.35355338
  %v2310 = vmul.f32 %v2303, 0.35355338
  %v2311 = vmul.f32 %v2306, 0.35355338
  %v2312 = vadd.f32 %v2308, %v353
  %v2313 = vadd.f32 %v2309, %v354
  %v2314 = vadd.f32 %v2310, %v355
  %v2315 = vadd.f32 %v2311, %v356
  %v2316 = vsel %vm71, %v2312, -inf
  %2317 = vmax.xlane.f32.xlu0 %v2316
  %v2318 = vpop.xlane.xlu0 %2317
  %v2319 = vsel %vm71, %v2313, -inf
  %2320 = vmax.xlane.f32.xlu0 %v2319
  %v2321 = vpop.xlane.xlu0 %2320
  %v2322 = vsel %vm71, %v2314, -inf
  %2323 = vmax.xlane.f32.xlu0 %v2322
  %v2324 = vpop.xlane.xlu0 %2323
  %v2325 = vsel %vm71, %v2315, -inf
  %2326 = vmax.xlane.f32.xlu0 %v2325
  %v2327 = vpop.xlane.xlu0 %2326
  %v2328 = vsub.f32 %v2312, %v2318
  %v2329 = vsub.f32 %v2313, %v2321
  %v2330 = vsub.f32 %v2314, %v2324
  %v2331 = vsub.f32 %v2315, %v2327
  %v2332 = vmul.f32 %v2328, 1.442695
  %v2333 = vpow.pop %v2332
  %v2334 = vmul.f32 %v2329, 1.442695
  %v2335 = vpow.pop %v2334
  %v2336 = vmul.f32 %v2330, 1.442695
  %v2337 = vpow.pop %v2336
  %v2338 = vmul.f32 %v2331, 1.442695
  %v2339 = vpow.pop %v2338
  %v2340 = vsel %vm71, %v2333, 0.0
  %2341 = vadd.xlane.f32.xlu0 %v2340
  %v2342 = vpop.xlane.xlu0 %2341
  %v2343 = vsel %vm71, %v2335, 0.0
  %2344 = vadd.xlane.f32.xlu0 %v2343
  %v2345 = vpop.xlane.xlu0 %2344
  %v2346 = vsel %vm71, %v2337, 0.0
  %2347 = vadd.xlane.f32.xlu0 %v2346
  %v2348 = vpop.xlane.xlu0 %2347
  %v2349 = vsel %vm71, %v2339, 0.0
  %2350 = vadd.xlane.f32.xlu0 %v2349
  %v2351 = vpop.xlane.xlu0 %2350
  %v2352 = vrcp.pop %v2342
  %v2353 = vrcp.pop %v2345
  %v2354 = vrcp.pop %v2348
  %v2355 = vrcp.pop %v2351
  %v2356 = vmul.f32 %v2333, %v2352
  %v2357 = vmul.f32 %v2335, %v2353
  %v2358 = vmul.f32 %v2337, %v2354
  %v2359 = vmul.f32 %v2339, %v2355
  %2360 = vrot.lane.b32.xlu0 %v1612, 40
  %v2361 = vpop.permute.xlu0 %2360
  %2362 = vrot.lane.b32.xlu0 %v1615, 40
  %v2363 = vpop.permute.xlu0 %2362
  %2364 = vrot.lane.b32.xlu0 %v1618, 40
  %v2365 = vpop.permute.xlu0 %2364
  %2366 = vrot.lane.b32.xlu0 %v1621, 40
  %v2367 = vpop.permute.xlu0 %2366
  %v2373 = vsel %vm71, %v2356, 0
  %v2376 = vsel %vm71, %v2357, 0
  %v2379 = vsel %vm71, %v2358, 0
  %v2382 = vsel %vm71, %v2359, 0
  %2384 = vmatpush.msra.mxu0 0.0
  %2385 = vmatpush.msra.mxu0 0.0
  %2386 = vmatpush.msra.mxu0 0.0
  %2387 = vmatpush.msra.mxu0 0.0
  %2388 = vmatpush.msra.mxu0 0.0
  %2389 = vmatpush.msra.mxu0 0.0
  %2390 = vmatpush.msra.mxu0 0.0
  %2391 = vmatpush.msra.mxu0 0.0
  %2392 = vmatpush.msra.mxu0 0.0
  %2393 = vmatpush.msra.mxu0 0.0
  %2394 = vmatpush.msra.mxu0 0.0
  %2395 = vmatpush.msra.mxu0 0.0
  %2396 = vmatpush.msra.mxu0 %v2367
  %2397 = vmatpush.msra.mxu0 %v2365
  %2398 = vmatpush.msra.mxu0 %v2363
  %2399 = vmatpush.msra.mxu0 %v2361
  %2400 = vmatmul.f32.gmra.mxu0 %v2373
  %v2401 = vpop.f32.mrf.mxu0
  %v2402 = vadd.f32 0.0, %v2401
  %2403 = vmatmul.f32.gmra.mxu0 %v2376
  %v2404 = vpop.f32.mrf.mxu0
  %v2405 = vadd.f32 0.0, %v2404
  %2406 = vmatmul.f32.gmra.mxu0 %v2379
  %v2407 = vpop.f32.mrf.mxu0
  %v2408 = vadd.f32 0.0, %v2407
  %2409 = vmatmul.f32.gmra.mxu0 %v2382
  %v2410 = vpop.f32.mrf.mxu0
  %v2411 = vadd.f32 0.0, %v2410
  %2412 = vdwg.mxu0
  %v2413 = vld [vmem:[%s3 + $0xe0] sm:$0xff]
  %v2415 = vsel %vm27, %v2402, 0
  %v2418 = vsel %vm27, %v2405, 0
  %v2421 = vsel %vm27, %v2408, 0
  %v2424 = vsel %vm27, %v2411, 0
  %2426 = vmatpush.msra.mxu0 0.0
  %2427 = vmatpush.msra.mxu0 0.0
  %2428 = vmatpush.msra.mxu0 0.0
  %2429 = vmatpush.msra.mxu0 0.0
  %2430 = vmatpush.msra.mxu0 0.0
  %2431 = vmatpush.msra.mxu0 0.0
  %2432 = vmatpush.msra.mxu0 0.0
  %2433 = vmatpush.msra.mxu0 0.0
  %2434 = vmatpush.msra.mxu0 0.0
  %2435 = vmatpush.msra.mxu0 0.0
  %2436 = vmatpush.msra.mxu0 0.0
  %2437 = vmatpush.msra.mxu0 0.0
  %2438 = vmatpush.msra.mxu0 0.0
  %2439 = vmatpush.msra.mxu0 0.0
  %2440 = vmatpush.msra.mxu0 0.0
  %2441 = vmatpush.msra.mxu0 %v2413
  %2442 = vmatmul.f32.gmra.mxu0 %v2415
  %v2443 = vpop.f32.mrf.mxu0
  %v2444 = vadd.f32 0.0, %v2443
  %2445 = vmatmul.f32.gmra.mxu0 %v2418
  %v2446 = vpop.f32.mrf.mxu0
  %v2447 = vadd.f32 0.0, %v2446
  %2448 = vmatmul.f32.gmra.mxu0 %v2421
  %v2449 = vpop.f32.mrf.mxu0
  %v2450 = vadd.f32 0.0, %v2449
  %2451 = vmatmul.f32.gmra.mxu0 %v2424
  %v2452 = vpop.f32.mrf.mxu0
  %v2453 = vadd.f32 0.0, %v2452
  %2454 = vdwg.mxu0
  %v2455 = vadd.f32 %v2243, %v2444
  %v2456 = vadd.f32 %v2244, %v2447
  %v2457 = vadd.f32 %v2245, %v2450
  %v2458 = vadd.f32 %v2246, %v2453
  %v2459 = vperm.slane %v1574, 0
  %v2460 = vadd.f32 %v2455, %v2459
  %v2461 = vadd.f32 %v2456, %v2459
  %v2462 = vadd.f32 %v2457, %v2459
  %v2463 = vadd.f32 %v2458, %v2459
  %v2464 = vadd.f32 %v1553, %v2460
  %v2465 = vadd.f32 %v1554, %v2461
  %v2466 = vadd.f32 %v1555, %v2462
  %v2467 = vadd.f32 %v1556, %v2463
  %v2468 = vsel %vm71, %v2464, 0.0
  %2469 = vadd.xlane.f32.xlu0 %v2468
  %v2470 = vpop.xlane.xlu0 %2469
  %v2471 = vsel %vm71, %v2465, 0.0
  %2472 = vadd.xlane.f32.xlu0 %v2471
  %v2473 = vpop.xlane.xlu0 %2472
  %v2474 = vsel %vm71, %v2466, 0.0
  %2475 = vadd.xlane.f32.xlu0 %v2474
  %v2476 = vpop.xlane.xlu0 %2475
  %v2477 = vsel %vm71, %v2467, 0.0
  %2478 = vadd.xlane.f32.xlu0 %v2477
  %v2479 = vpop.xlane.xlu0 %2478
  %v2480 = vmul.f32 %v2470, %v90
  %v2481 = vmul.f32 %v2473, %v90
  %v2482 = vmul.f32 %v2476, %v90
  %v2483 = vmul.f32 %v2479, %v90
  %v2484 = vsub.f32 %v2464, %v2480
  %v2485 = vsub.f32 %v2465, %v2481
  %v2486 = vsub.f32 %v2466, %v2482
  %v2487 = vsub.f32 %v2467, %v2483
  %v2488 = vmul.f32 %v2484, %v2484
  %v2489 = vmul.f32 %v2485, %v2485
  %v2490 = vmul.f32 %v2486, %v2486
  %v2491 = vmul.f32 %v2487, %v2487
  %v2492 = vsel %vm71, %v2488, 0.0
  %2493 = vadd.xlane.f32.xlu0 %v2492
  %v2494 = vpop.xlane.xlu0 %2493
  %v2495 = vsel %vm71, %v2489, 0.0
  %2496 = vadd.xlane.f32.xlu0 %v2495
  %v2497 = vpop.xlane.xlu0 %2496
  %v2498 = vsel %vm71, %v2490, 0.0
  %2499 = vadd.xlane.f32.xlu0 %v2498
  %v2500 = vpop.xlane.xlu0 %2499
  %v2501 = vsel %vm71, %v2491, 0.0
  %2502 = vadd.xlane.f32.xlu0 %v2501
  %v2503 = vpop.xlane.xlu0 %2502
  %v2504 = vmul.f32 %v2494, %v90
  %v2505 = vmul.f32 %v2497, %v90
  %v2506 = vmul.f32 %v2500, %v90
  %v2507 = vmul.f32 %v2503, %v90
  %v2508 = vadd.f32 %v2504, 1e-05
  %v2509 = vadd.f32 %v2505, 1e-05
  %v2510 = vadd.f32 %v2506, 1e-05
  %v2511 = vadd.f32 %v2507, 1e-05
  %v2512 = vrsqrt.pop %v2508
  %v2513 = vmul.f32 %v2512, %v2508
  %v2514 = vmul.f32 %v2513, %v2512
  %v2515 = vmul.f32 0.5, %v2514
  %v2516 = vsub.f32 1.5, %v2515
  %v2517 = vmul.f32 %v2512, %v2516
  %vm2518 = vweird.f32 %v2508
  %vm2519 = vweird.f32 %v2512
  %vm2520 = vmor %vm2518, %vm2519
  %v2521 = vsel %vm2520, %v2512, %v2517
  %v2522 = vrsqrt.pop %v2509
  %v2523 = vmul.f32 %v2522, %v2509
  %v2524 = vmul.f32 %v2523, %v2522
  %v2525 = vmul.f32 0.5, %v2524
  %v2526 = vsub.f32 1.5, %v2525
  %v2527 = vmul.f32 %v2522, %v2526
  %vm2528 = vweird.f32 %v2509
  %vm2529 = vweird.f32 %v2522
  %vm2530 = vmor %vm2528, %vm2529
  %v2531 = vsel %vm2530, %v2522, %v2527
  %v2532 = vrsqrt.pop %v2510
  %v2533 = vmul.f32 %v2532, %v2510
  %v2534 = vmul.f32 %v2533, %v2532
  %v2535 = vmul.f32 0.5, %v2534
  %v2536 = vsub.f32 1.5, %v2535
  %v2537 = vmul.f32 %v2532, %v2536
  %vm2538 = vweird.f32 %v2510
  %vm2539 = vweird.f32 %v2532
  %vm2540 = vmor %vm2538, %vm2539
  %v2541 = vsel %vm2540, %v2532, %v2537
  %v2542 = vrsqrt.pop %v2511
  %v2543 = vmul.f32 %v2542, %v2511
  %v2544 = vmul.f32 %v2543, %v2542
  %v2545 = vmul.f32 0.5, %v2544
  %v2546 = vsub.f32 1.5, %v2545
  %v2547 = vmul.f32 %v2542, %v2546
  %vm2548 = vweird.f32 %v2511
  %vm2549 = vweird.f32 %v2542
  %vm2550 = vmor %vm2548, %vm2549
  %v2551 = vsel %vm2550, %v2542, %v2547
  %v2552 = vmul.f32 %v2484, %v2521
  %v2553 = vmul.f32 %v2485, %v2531
  %v2554 = vmul.f32 %v2486, %v2541
  %v2555 = vmul.f32 %v2487, %v2551
  %v2556 = vperm.slane %v1575, 0
  %v2557 = vmul.f32 %v2552, %v2556
  %v2558 = vmul.f32 %v2553, %v2556
  %v2559 = vmul.f32 %v2554, %v2556
  %v2560 = vmul.f32 %v2555, %v2556
  %v2561 = vperm.slane %v1576, 0
  %v2562 = vadd.f32 %v2557, %v2561
  %v2563 = vadd.f32 %v2558, %v2561
  %v2564 = vadd.f32 %v2559, %v2561
  %v2565 = vadd.f32 %v2560, %v2561
  %v2566 = vperm.slane %v1577, 0
  %v2568 = vsel %vm71, %v2562, 0
  %v2571 = vsel %vm71, %v2563, 0
  %v2574 = vsel %vm71, %v2564, 0
  %v2577 = vsel %vm71, %v2565, 0
  %2579 = vmatpush.msra.mxu0 0.0
  %2580 = vmatpush.msra.mxu0 0.0
  %2581 = vmatpush.msra.mxu0 0.0
  %2582 = vmatpush.msra.mxu0 0.0
  %2583 = vmatpush.msra.mxu0 0.0
  %2584 = vmatpush.msra.mxu0 0.0
  %2585 = vmatpush.msra.mxu0 0.0
  %2586 = vmatpush.msra.mxu0 0.0
  %2587 = vmatpush.msra.mxu0 0.0
  %2588 = vmatpush.msra.mxu0 0.0
  %2589 = vmatpush.msra.mxu0 0.0
  %2590 = vmatpush.msra.mxu0 0.0
  %2591 = vmatpush.msra.mxu0 %v1564
  %2592 = vmatpush.msra.mxu0 %v1563
  %2593 = vmatpush.msra.mxu0 %v1562
  %2594 = vmatpush.msra.mxu0 %v1561
  %2595 = vmatmul.f32.gmra.mxu0 %v2568
  %v2596 = vpop.f32.mrf.mxu0
  %v2597 = vadd.f32 %v2566, %v2596
  %2598 = vmatmul.f32.gmra.mxu0 %v2571
  %v2599 = vpop.f32.mrf.mxu0
  %v2600 = vadd.f32 %v2566, %v2599
  %2601 = vmatmul.f32.gmra.mxu0 %v2574
  %v2602 = vpop.f32.mrf.mxu0
  %v2603 = vadd.f32 %v2566, %v2602
  %2604 = vmatmul.f32.gmra.mxu0 %v2577
  %v2605 = vpop.f32.mrf.mxu0
  %v2606 = vadd.f32 %v2566, %v2605
  %2607 = vdwg.mxu0
  %v2608 = vmax.f32 %v2597, 0.0
  %v2609 = vmax.f32 %v2600, 0.0
  %v2610 = vmax.f32 %v2603, 0.0
  %v2611 = vmax.f32 %v2606, 0.0
  %v2612 = vperm.slane %v1578, 0
  %v2614 = vsel %vm1413, %v2608, 0
  %v2617 = vsel %vm1413, %v2609, 0
  %v2620 = vsel %vm1413, %v2610, 0
  %v2623 = vsel %vm1413, %v2611, 0
  %2625 = vmatpush.msra.mxu0 0.0
  %2626 = vmatpush.msra.mxu0 0.0
  %2627 = vmatpush.msra.mxu0 0.0
  %2628 = vmatpush.msra.mxu0 0.0
  %2629 = vmatpush.msra.mxu0 0.0
  %2630 = vmatpush.msra.mxu0 0.0
  %2631 = vmatpush.msra.mxu0 0.0
  %2632 = vmatpush.msra.mxu0 0.0
  %2633 = vmatpush.msra.mxu0 %v1572
  %2634 = vmatpush.msra.mxu0 %v1571
  %2635 = vmatpush.msra.mxu0 %v1570
  %2636 = vmatpush.msra.mxu0 %v1569
  %2637 = vmatpush.msra.mxu0 %v1568
  %2638 = vmatpush.msra.mxu0 %v1567
  %2639 = vmatpush.msra.mxu0 %v1566
  %2640 = vmatpush.msra.mxu0 %v1565
  %2641 = vmatmul.f32.gmra.mxu0 %v2614
  %v2642 = vpop.f32.mrf.mxu0
  %v2643 = vadd.f32 %v2612, %v2642
  %2644 = vmatmul.f32.gmra.mxu0 %v2617
  %v2645 = vpop.f32.mrf.mxu0
  %v2646 = vadd.f32 %v2612, %v2645
  %2647 = vmatmul.f32.gmra.mxu0 %v2620
  %v2648 = vpop.f32.mrf.mxu0
  %v2649 = vadd.f32 %v2612, %v2648
  %2650 = vmatmul.f32.gmra.mxu0 %v2623
  %v2651 = vpop.f32.mrf.mxu0
  %v2652 = vadd.f32 %v2612, %v2651
  %2653 = vdwg.mxu0
  %v2654 = vadd.f32 %v2562, %v2643
  %v2655 = vadd.f32 %v2563, %v2646
  %v2656 = vadd.f32 %v2564, %v2649
  %v2657 = vadd.f32 %v2565, %v2652
  %v2658 = vsel %vm71, %v2654, 0.0
  %2659 = vadd.xlane.f32.xlu0 %v2658
  %v2660 = vpop.xlane.xlu0 %2659
  %v2661 = vsel %vm71, %v2655, 0.0
  %2662 = vadd.xlane.f32.xlu0 %v2661
  %v2663 = vpop.xlane.xlu0 %2662
  %v2664 = vsel %vm71, %v2656, 0.0
  %2665 = vadd.xlane.f32.xlu0 %v2664
  %v2666 = vpop.xlane.xlu0 %2665
  %v2667 = vsel %vm71, %v2657, 0.0
  %2668 = vadd.xlane.f32.xlu0 %v2667
  %v2669 = vpop.xlane.xlu0 %2668
  %v2670 = vmul.f32 %v2660, %v90
  %v2671 = vmul.f32 %v2663, %v90
  %v2672 = vmul.f32 %v2666, %v90
  %v2673 = vmul.f32 %v2669, %v90
  %v2674 = vsub.f32 %v2654, %v2670
  %v2675 = vsub.f32 %v2655, %v2671
  %v2676 = vsub.f32 %v2656, %v2672
  %v2677 = vsub.f32 %v2657, %v2673
  %v2678 = vmul.f32 %v2674, %v2674
  %v2679 = vmul.f32 %v2675, %v2675
  %v2680 = vmul.f32 %v2676, %v2676
  %v2681 = vmul.f32 %v2677, %v2677
  %v2682 = vsel %vm71, %v2678, 0.0
  %2683 = vadd.xlane.f32.xlu0 %v2682
  %v2684 = vpop.xlane.xlu0 %2683
  %v2685 = vsel %vm71, %v2679, 0.0
  %2686 = vadd.xlane.f32.xlu0 %v2685
  %v2687 = vpop.xlane.xlu0 %2686
  %v2688 = vsel %vm71, %v2680, 0.0
  %2689 = vadd.xlane.f32.xlu0 %v2688
  %v2690 = vpop.xlane.xlu0 %2689
  %v2691 = vsel %vm71, %v2681, 0.0
  %2692 = vadd.xlane.f32.xlu0 %v2691
  %v2693 = vpop.xlane.xlu0 %2692
  %v2694 = vmul.f32 %v2684, %v90
  %v2695 = vmul.f32 %v2687, %v90
  %v2696 = vmul.f32 %v2690, %v90
  %v2697 = vmul.f32 %v2693, %v90
  %v2698 = vadd.f32 %v2694, 1e-05
  %v2699 = vadd.f32 %v2695, 1e-05
  %v2700 = vadd.f32 %v2696, 1e-05
  %v2701 = vadd.f32 %v2697, 1e-05
  %v2702 = vrsqrt.pop %v2698
  %v2703 = vmul.f32 %v2702, %v2698
  %v2704 = vmul.f32 %v2703, %v2702
  %v2705 = vmul.f32 0.5, %v2704
  %v2706 = vsub.f32 1.5, %v2705
  %v2707 = vmul.f32 %v2702, %v2706
  %vm2708 = vweird.f32 %v2698
  %vm2709 = vweird.f32 %v2702
  %vm2710 = vmor %vm2708, %vm2709
  %v2711 = vsel %vm2710, %v2702, %v2707
  %v2712 = vrsqrt.pop %v2699
  %v2713 = vmul.f32 %v2712, %v2699
  %v2714 = vmul.f32 %v2713, %v2712
  %v2715 = vmul.f32 0.5, %v2714
  %v2716 = vsub.f32 1.5, %v2715
  %v2717 = vmul.f32 %v2712, %v2716
  %vm2718 = vweird.f32 %v2699
  %vm2719 = vweird.f32 %v2712
  %vm2720 = vmor %vm2718, %vm2719
  %v2721 = vsel %vm2720, %v2712, %v2717
  %v2722 = vrsqrt.pop %v2700
  %v2723 = vmul.f32 %v2722, %v2700
  %v2724 = vmul.f32 %v2723, %v2722
  %v2725 = vmul.f32 0.5, %v2724
  %v2726 = vsub.f32 1.5, %v2725
  %v2727 = vmul.f32 %v2722, %v2726
  %vm2728 = vweird.f32 %v2700
  %vm2729 = vweird.f32 %v2722
  %vm2730 = vmor %vm2728, %vm2729
  %v2731 = vsel %vm2730, %v2722, %v2727
  %v2732 = vrsqrt.pop %v2701
  %v2733 = vmul.f32 %v2732, %v2701
  %v2734 = vmul.f32 %v2733, %v2732
  %v2735 = vmul.f32 0.5, %v2734
  %v2736 = vsub.f32 1.5, %v2735
  %v2737 = vmul.f32 %v2732, %v2736
  %vm2738 = vweird.f32 %v2701
  %vm2739 = vweird.f32 %v2732
  %vm2740 = vmor %vm2738, %vm2739
  %v2741 = vsel %vm2740, %v2732, %v2737
  %v2742 = vmul.f32 %v2674, %v2711
  %v2743 = vmul.f32 %v2675, %v2721
  %v2744 = vmul.f32 %v2676, %v2731
  %v2745 = vmul.f32 %v2677, %v2741
  %v2746 = vperm.slane %v1579, 0
  %v2747 = vmul.f32 %v2742, %v2746
  %v2748 = vmul.f32 %v2743, %v2746
  %v2749 = vmul.f32 %v2744, %v2746
  %v2750 = vmul.f32 %v2745, %v2746
  %v2751 = vperm.slane %v1580, 0
  %v2752 = vadd.f32 %v2747, %v2751
  %v2753 = vadd.f32 %v2748, %v2751
  %v2754 = vadd.f32 %v2749, %v2751
  %v2755 = vadd.f32 %v2750, %v2751
  %v2756 = vld [vmem:[%s2] sm:$0x3]
  %v2758 = vsel %vm71, %v2756, 0
  %2760 = vmatpush.msra.mxu0 0.0
  %2761 = vmatpush.msra.mxu0 0.0
  %2762 = vmatpush.msra.mxu0 0.0
  %2763 = vmatpush.msra.mxu0 0.0
  %2764 = vmatpush.msra.mxu0 0.0
  %2765 = vmatpush.msra.mxu0 0.0
  %2766 = vmatpush.msra.mxu0 0.0
  %2767 = vmatpush.msra.mxu0 0.0
  %2768 = vmatpush.msra.mxu0 0.0
  %2769 = vmatpush.msra.mxu0 0.0
  %2770 = vmatpush.msra.mxu0 0.0
  %2771 = vmatpush.msra.mxu0 0.0
  %2772 = vmatpush.msra.mxu0 %v2755
  %2773 = vmatpush.msra.mxu0 %v2754
  %2774 = vmatpush.msra.mxu0 %v2753
  %2775 = vmatpush.msra.mxu0 %v2752
  %2776 = vmatmul.f32.gmra.mxu0 %v2758
  %v2777 = vpop.f32.mrf.mxu0
  %v2778 = vadd.f32 0.0, %v2777
  %2779 = vdwg.mxu0
  %v2780 = vand.u32 2147483647, %v2778
  %v2781 = vld [vmem:[%s4 + $0x13] sm:$0x1]
  %v2782 = vld [vmem:[%s4 + $0x14] sm:$0x1]
  %v2783 = vperm.slane %v2781, 0
  %v2784 = vmul.f32 %v2780, %v2783
  %vm2785 = vcmask 254976
  %v2786 = vsel %vm2785, %v2784, 0.0
  %2787 = vadd.xlane.f32.xlu0 %v2786
  %v2788 = vpop.xlane.xlu0 %2787
  %v2789 = vperm.slane %v2782, 0
  %v2790 = vadd.f32 %v2788, %v2789
  %v2791 = vsub.f32 0.0, %v2790
  %v2792 = vmul.f32 %v2791, 1.442695
  %v2793 = vpow.pop %v2792
  %v2794 = vadd.f32 %v2793, 1.0
  %v2795 = vrcp.pop %v2794
  %v2796 = vmul.f32 %v2794, %v2795
  %v2797 = vsub.f32 1.0, %v2796
  %v2798 = vmul.f32 %v2795, %v2797
  %v2799 = vadd.f32 %v2795, %v2798
  %vm2800 = vweird.f32 %v2794
  %vm2801 = vweird.f32 %v2795
  %vm2802 = vmor %vm2800, %vm2801
  %v2803 = vsel %vm2802, %v2795, %v2799
  %v2804 = vand.u32 2147483647, %v2794
  %vm2805 = vcmp.eq.f32.partialorder %v2804, 8.507059e+37
  %v2806 = vand.u32 %v2794, 2147483648
  %v2807 = vor.u32 1.1754944e-38, %v2806
  %v2808 = vsel %vm2805, %v2807, %v2803
  %v2809 = vmul.f32 1.0, %v2808
  %2811 = vset.pattern.permute.xlu0 0
  %2812 = vperm.xlu0 %2811, %v2809
  %v2813 = vpop.permute.xlu0 %2812
  %2815 = vst [vmem:[%s5] sm:$0x3] %v2813
  // Predicated region
  $region22: #{tfeita_forward.1} parent=0 // pred_check
    _
  $region23: #{tfeita_forward.1} parent=0 // pred_check_branch
    %2817 = sbr.rel (0) target = $region25
  $region24: #{tfeita_forward.1} parent=0 // pred_region
    _
  $region25: #{tfeita_forward.1} parent=0 // pred_fallthru
    _
  // Predicated region
  $region26: #{tfeita_forward.1} parent=0 // pred_check
    _
  $region27: #{tfeita_forward.1} parent=0 // pred_check_branch
    %2819 = sbr.rel (0) target = $region29
  $region28: #{tfeita_forward.1} parent=0 // pred_region
    _
  $region29: #{tfeita_forward.1} parent=0 // pred_fallthru
    _

</llo_original>
